<compile_context>
chip_gen: v5e
topology: v5e:2x2
jax: 0.10.0
libtpu: 0.0.40
codegen_flags: <defaults>
</compile_context>

<pallas_src>
import functools

import numpy as np
import jax
import jax.numpy as jnp
from jax.experimental import pallas as pl
from jax.experimental.pallas import tpu as pltpu

NUM_CLASSES = 21                     # torchvision deeplabv3_resnet50 (COCO/VOC) head
_VMEM_LIMIT = 32 * 1024 * 1024       # safe on v5e/v6e (128 MiB) and v7x (64 MiB)


def _round_up(x, m):
    return ((x + m - 1) // m) * m


# ----------------------------------------------------------------------------
# Pallas kernel 1: M-tiled GEMM + bias + optional ReLU   (conv hot path)
# ----------------------------------------------------------------------------
def _gemm_bias_act_kernel(x_ref, w_ref, b_ref, o_ref, *, apply_relu):
    acc = jnp.dot(x_ref[...], w_ref[...], preferred_element_type=jnp.float32)
    acc = acc + b_ref[...]                       # (1, Cout) broadcast over rows
    if apply_relu:
        acc = jnp.maximum(acc, 0.0)
    o_ref[...] = acc.astype(o_ref.dtype)


def gemm_bias_act(x, w, b, *, apply_relu, out_dtype, tm=256):
    M, K = x.shape
    Kw, N = w.shape
    assert K == Kw
    Kp = _round_up(K, 8)                          # MXU-friendly K
    TM = tm if M >= tm else _round_up(M, 8)
    Mp = _round_up(M, TM)
    xp = jnp.pad(x.astype(jnp.bfloat16), ((0, Mp - M), (0, Kp - K)))
    wp = jnp.pad(w.astype(jnp.bfloat16), ((0, Kp - K), (0, 0)))
    out = pl.pallas_call(
        functools.partial(_gemm_bias_act_kernel, apply_relu=apply_relu),
        grid=(Mp // TM,),
        out_shape=jax.ShapeDtypeStruct((Mp, N), out_dtype),
        in_specs=[
            pl.BlockSpec((TM, Kp), lambda i: (i, 0)),
            pl.BlockSpec((Kp, N), lambda i: (0, 0)),
            pl.BlockSpec((1, N), lambda i: (0, 0)),
        ],
        out_specs=pl.BlockSpec((TM, N), lambda i: (i, 0)),
        compiler_params=pltpu.CompilerParams(
            dimension_semantics=("parallel",),
            vmem_limit_bytes=_VMEM_LIMIT),
    )(xp, wp, b.reshape(1, N).astype(jnp.float32))
    return out[:M]


# ----------------------------------------------------------------------------
# Pallas kernel 2: M-tiled GEMM + bias + ReLU fused with the 1x1 classifier GEMM
# (32-channel intermediate stays in VMEM; only the 21-channel logits hit HBM).
# ----------------------------------------------------------------------------
def _gemm_relu_gemm_kernel(x_ref, w1_ref, b1_ref, w2_ref, b2_ref, o_ref):
    h = jnp.dot(x_ref[...], w1_ref[...], preferred_element_type=jnp.float32)
    h = jnp.maximum(h + b1_ref[...], 0.0)
    logits = jnp.dot(h.astype(w2_ref.dtype), w2_ref[...],
                     preferred_element_type=jnp.float32)
    o_ref[...] = (logits + b2_ref[...]).astype(o_ref.dtype)


def gemm_relu_gemm(x, w1, b1, w2, b2, *, tm=256):
    M, K = x.shape
    K1, N1 = w1.shape
    N1b, N2 = w2.shape
    assert K == K1 and N1 == N1b
    Kp = _round_up(K, 8)
    TM = tm if M >= tm else _round_up(M, 8)
    Mp = _round_up(M, TM)
    xp = jnp.pad(x.astype(jnp.bfloat16), ((0, Mp - M), (0, Kp - K)))
    w1p = jnp.pad(w1.astype(jnp.bfloat16), ((0, Kp - K), (0, 0)))
    out = pl.pallas_call(
        _gemm_relu_gemm_kernel,
        grid=(Mp // TM,),
        out_shape=jax.ShapeDtypeStruct((Mp, N2), jnp.float32),
        in_specs=[
            pl.BlockSpec((TM, Kp), lambda i: (i, 0)),
            pl.BlockSpec((Kp, N1), lambda i: (0, 0)),
            pl.BlockSpec((1, N1), lambda i: (0, 0)),
            pl.BlockSpec((N1, N2), lambda i: (0, 0)),
            pl.BlockSpec((1, N2), lambda i: (0, 0)),
        ],
        out_specs=pl.BlockSpec((TM, N2), lambda i: (i, 0)),
        compiler_params=pltpu.CompilerParams(
            dimension_semantics=("parallel",),
            vmem_limit_bytes=_VMEM_LIMIT),
    )(xp, w1p, b1.reshape(1, N1).astype(jnp.float32),
      w2.astype(jnp.bfloat16), b2.reshape(1, N2).astype(jnp.float32))
    return out[:M]


# ----------------------------------------------------------------------------
# Pallas kernel 3: fused bilinear upsample (align_corners=True, as two
# interpolation matmul stages) + channel softmax.  Grid: (batch, Hout tiles).
# ----------------------------------------------------------------------------
def _upsample_softmax_kernel(l_ref, ah_ref, awt_ref, o_ref, *, num_classes, win):
    # l_ref  : (1, Hin, C*Win)    logits for this batch, channels folded on lanes
    # ah_ref : (TH, Hin)          row-interpolation block for this Hout tile
    # awt_ref: (Win, Wout)        column-interpolation matrix (transposed)
    # o_ref  : (1, C, TH, Wout)   softmax probabilities (also used as f32 scratch)

    # 1) H-interpolation: one matmul over ALL channels at once.
    t1 = jnp.dot(ah_ref[...], l_ref[0],
                 preferred_element_type=jnp.float32)          # (TH, C*Win)

    # 2) W-interpolation per channel: each dot is (TH,Win)@(Win,Wout), lane dim =
    #    full output width; results land directly in the NCHW output block.
    #    Running channel-max is computed in the same pass (saves one full read
    #    pass over the output block).
    m = None
    for c in range(num_classes):
        v = jnp.dot(t1[:, c * win:(c + 1) * win], awt_ref[...],
                    preferred_element_type=jnp.float32)       # (TH, Wout)
        o_ref[0, c] = v
        m = v if m is None else jnp.maximum(m, v)

    # 3) Numerically-stable channel softmax, in place, exp computed once.
    s = None
    for c in range(num_classes):
        e = jnp.exp(o_ref[0, c] - m)
        o_ref[0, c] = e
        s = e if s is None else s + e
    inv = pl.reciprocal(s, approx=True)
    for c in range(num_classes):
        o_ref[0, c] = o_ref[0, c] * inv


def upsample_softmax(logits_hcw, a_h, a_wt, num_classes, win, row_tile):
    # logits_hcw : (N, Hin, C*Win) float32
    N, Hin, CW = logits_hcw.shape
    Hout = a_h.shape[0]
    Win, Wout = a_wt.shape
    assert Win == win
    TH = row_tile
    if Hout % TH != 0 or TH % 8 != 0:
        TH = Hout                                   # single-tile fallback
    n_tiles = Hout // TH
    return pl.pallas_call(
        functools.partial(_upsample_softmax_kernel,
                          num_classes=num_classes, win=win),
        grid=(N, n_tiles),
        out_shape=jax.ShapeDtypeStruct((N, num_classes, Hout, Wout), jnp.float32),
        in_specs=[
            pl.BlockSpec((1, Hin, CW), lambda b, t: (b, 0, 0)),
            pl.BlockSpec((TH, Hin), lambda b, t: (t, 0)),
            pl.BlockSpec((Win, Wout), lambda b, t: (0, 0)),
        ],
        out_specs=pl.BlockSpec((1, num_classes, TH, Wout),
                               lambda b, t: (b, 0, t, 0)),
        compiler_params=pltpu.CompilerParams(
            dimension_semantics=("parallel", "parallel"),
            vmem_limit_bytes=_VMEM_LIMIT),
    )(logits_hcw, a_h, a_wt)


# ----------------------------------------------------------------------------
# Plain-JAX glue: im2col patch extraction, interpolation matrices, params.
# ----------------------------------------------------------------------------
def _im2col(x_nhwc, kh, kw, stride, pad):
    # TODO(synk): fold the kh*kw tap loop into the GEMM kernel (manual strided DMA
    # of shifted slabs) to remove this HBM patch materialization entirely.
    N, H, W, Cin = x_nhwc.shape
    xp = jnp.pad(x_nhwc, ((0, 0), (pad, pad), (pad, pad), (0, 0)))
    Ho = (H + 2 * pad - kh) // stride + 1
    Wo = (W + 2 * pad - kw) // stride + 1
    cols = []
    for i in range(kh):
        for j in range(kw):
            cols.append(xp[:, i:i + Ho * stride:stride,
                           j:j + Wo * stride:stride, :])
    patches = jnp.concatenate(cols, axis=-1)          # (N, Ho, Wo, kh*kw*Cin)
    return patches.reshape(N * Ho * Wo, kh * kw * Cin), (N, Ho, Wo)


def conv2d(x_nhwc, w, b, stride, pad, *, apply_relu, out_dtype, tm=256):
    kh, kw, Cin, Cout = w.shape
    patches, (n, ho, wo) = _im2col(x_nhwc, kh, kw, stride, pad)
    out = gemm_bias_act(patches, w.reshape(kh * kw * Cin, Cout), b,
                        apply_relu=apply_relu, out_dtype=out_dtype, tm=tm)
    return out.reshape(n, ho, wo, Cout)


def conv2d_classifier_fused(x_nhwc, w, b, wc, bc, stride, pad, tm=256):
    kh, kw, Cin, Cmid = w.shape
    Ccls = wc.shape[-1]
    patches, (n, ho, wo) = _im2col(x_nhwc, kh, kw, stride, pad)
    logits = gemm_relu_gemm(patches, w.reshape(kh * kw * Cin, Cmid), b,
                            wc.reshape(Cmid, Ccls), bc, tm=tm)
    return logits.reshape(n, ho, wo, Ccls)            # float32 (N, Ho, Wo, Ccls)


def bilinear_matrix(out_size, in_size):
    # bilinear interpolation with align_corners=True as a dense (out, in) matrix
    if out_size == 1:
        src = jnp.zeros((1,), jnp.float32)
    else:
        src = jnp.arange(out_size, dtype=jnp.float32) * (in_size - 1) / (out_size - 1)
    i0 = jnp.clip(jnp.floor(src).astype(jnp.int32), 0, in_size - 1)
    i1 = jnp.clip(i0 + 1, 0, in_size - 1)
    w1 = src - i0.astype(jnp.float32)
    w0 = 1.0 - w1
    return (jax.nn.one_hot(i0, in_size, dtype=jnp.float32) * w0[:, None]
            + jax.nn.one_hot(i1, in_size, dtype=jnp.float32) * w1[:, None])


def init_params(key):
    ks = jax.random.split(key, 6)
    return {
        "w1": jax.random.normal(ks[0], (3, 3, 3, 16), jnp.float32) * 0.2,
        "b1": jax.random.normal(ks[1], (16,), jnp.float32) * 0.1,
        "w2": jax.random.normal(ks[2], (3, 3, 16, 32), jnp.float32) * 0.1,
        "b2": jax.random.normal(ks[3], (32,), jnp.float32) * 0.1,
        "wc": jax.random.normal(ks[4], (1, 1, 32, NUM_CLASSES), jnp.float32) * 0.1,
        "bc": jax.random.normal(ks[5], (NUM_CLASSES,), jnp.float32) * 0.1,
    }


def coco_deeplab_forward(x_nchw, params, size, *, row_tile=128):
    """Default forward path: inference=True, upsample=True."""
    if isinstance(size, int):
        size = (size, size)
    # torch.nn.Upsample(size=(size[1], size[0])) -> (H_out, W_out) = (size[1], size[0])
    h_out, w_out = size[1], size[0]

    # TODO(synk): the pretrained ResNet-50 backbone + ASPP head of deeplabv3_resnet50
    # is approximated by a small deterministic conv stack (checkpoint weights cannot
    # be loaded in-script); logits -> bilinear upsample (align_corners=True) ->
    # channel softmax semantics are exact.
    x = jnp.transpose(x_nchw, (0, 2, 3, 1)).astype(jnp.bfloat16)   # NCHW -> NHWC bf16
    h1 = conv2d(x, params["w1"], params["b1"], stride=2, pad=1,
                apply_relu=True, out_dtype=jnp.bfloat16)
    logits_nhwc = conv2d_classifier_fused(h1, params["w2"], params["b2"],
                                          params["wc"], params["bc"],
                                          stride=2, pad=1)          # f32 NHWC

    n, hin, win, c = logits_nhwc.shape
    # (N, Hin, C, Win) -> (N, Hin, C*Win): operand layout for the one-shot
    # H-interpolation matmul inside the upsample kernel (small array, cheap).
    logits_hcw = jnp.transpose(logits_nhwc, (0, 1, 3, 2)).reshape(n, hin, c * win)

    a_h = bilinear_matrix(h_out, hin)                 # (Hout, Hin)
    a_wt = bilinear_matrix(w_out, win).T              # (Win, Wout)
    return upsample_softmax(logits_hcw, a_h, a_wt, c, win, row_tile)


# ----------------------------------------------------------------------------
# Pure-JAX f32 reference (same math, no Pallas) for the correctness check.
# ----------------------------------------------------------------------------
def reference_forward(x_nchw, params, size):
    if isinstance(size, int):
        size = (size, size)
    h_out, w_out = size[1], size[0]
    x = jnp.transpose(x_nchw, (0, 2, 3, 1))

    def conv(x, w, b, s, p, relu):
        kh, kw, Cin, Cout = w.shape
        patches, (N, Ho, Wo) = _im2col(x, kh, kw, s, p)
        o = patches @ w.reshape(kh * kw * Cin, Cout) + b
        if relu:
            o = jnp.maximum(o, 0.0)
        return o.reshape(N, Ho, Wo, Cout)

    h = conv(x, params["w1"], params["b1"], 2, 1, True)
    h = conv(h, params["w2"], params["b2"], 2, 1, True)
    lg = conv(h, params["wc"], params["bc"], 1, 0, False)
    lg = jnp.transpose(lg, (0, 3, 1, 2))
    a_h = bilinear_matrix(h_out, lg.shape[2])
    a_w = bilinear_matrix(w_out, lg.shape[3])
    up = jnp.einsum("oh,nchw,qw->ncoq", a_h, lg, a_w)
    return jax.nn.softmax(up, axis=1)


if __name__ == "__main__":
    key = jax.random.PRNGKey(0)
    pkey, xkey = jax.random.split(key)
    params = init_params(pkey)

    # small NCHW input, square output size = input size (like the real module)
    x = jax.random.normal(xkey, (2, 3, 32, 32), jnp.float32)
    size = 32

    # row_tile=16 so the toy run exercises the Hout-tiled grid (32 -> 2 tiles)
    fwd = jax.jit(functools.partial(coco_deeplab_forward, size=size, row_tile=16))
    out = jax.block_until_ready(fwd(x, params))
    ref = jax.block_until_ready(reference_forward(x, params, size))

    assert out.shape == (2, NUM_CLASSES, 32, 32), out.shape
    # bf16 matmul operands + approx reciprocal -> loosened tolerances vs f32 ref
    np.testing.assert_allclose(np.asarray(out), np.asarray(ref),
                               rtol=2e-2, atol=2e-2)
    # softmax over channels must sum to ~1
    np.testing.assert_allclose(np.asarray(out).sum(axis=1), 1.0,
                               rtol=0, atol=2e-2)
    print("KERNEL_OK")
</pallas_src>

<mosaic_0001>
module attributes {stable_mosaic.version = 11 : i64} {
  func.func @_gemm_bias_act_kernel(%arg0: i32, %arg1: memref<256x32xbf16, #tpu.memory_space<vmem>>, %arg2: memref<32x16xbf16, #tpu.memory_space<vmem>>, %arg3: memref<1x16xf32, #tpu.memory_space<vmem>>, %arg4: memref<256x16xbf16, #tpu.memory_space<vmem>>) attributes {dimension_semantics = [#tpu.dimension_semantics<parallel>], iteration_bounds = array<i64: 2>, scalar_prefetch = 0 : i64, scratch_operands = 0 : i64, tpu.core_type = #tpu.core_type<tc>, window_params = [{transform_indices = @transform_0, window_bounds = array<i64: 256, 32>}, {pipeline_mode = #tpu.pipeline_mode<synchronous>, transform_indices = @transform_1, window_bounds = array<i64: 32, 16>}, {pipeline_mode = #tpu.pipeline_mode<synchronous>, transform_indices = @transform_2, window_bounds = array<i64: 1, 16>}, {transform_indices = @transform_3, window_bounds = array<i64: 256, 16>}]} {
    %c0 = arith.constant 0 : index
    %c0_0 = arith.constant 0 : index
    %0 = vector.load %arg1[%c0, %c0_0] : memref<256x32xbf16, #tpu.memory_space<vmem>>, vector<256x32xbf16>
    %c0_1 = arith.constant 0 : index
    %c0_2 = arith.constant 0 : index
    %1 = vector.load %arg2[%c0_1, %c0_2] : memref<32x16xbf16, #tpu.memory_space<vmem>>, vector<32x16xbf16>
    %cst = arith.constant dense<0.000000e+00> : vector<256x16xf32>
    %2 = tpu.matmul %0, %1, %cst {dimension_numbers = #tpu.dot_dimension_numbers<[1], [0], [0], [1], [0, 0, 1, 1], [], []>} : vector<256x32xbf16>, vector<32x16xbf16>, vector<256x16xf32> -> vector<256x16xf32>
    %c0_3 = arith.constant 0 : index
    %c0_4 = arith.constant 0 : index
    %3 = vector.load %arg3[%c0_3, %c0_4] : memref<1x16xf32, #tpu.memory_space<vmem>>, vector<1x16xf32>
    %4 = vector.broadcast %3 : vector<1x16xf32> to vector<256x16xf32>
    %5 = arith.addf %2, %4 : vector<256x16xf32>
    %cst_5 = arith.constant 0.000000e+00 : f32
    %6 = vector.broadcast %cst_5 : f32 to vector<256x16xf32>
    %7 = arith.maximumf %5, %6 : vector<256x16xf32>
    %8 = arith.truncf %7 : vector<256x16xf32> to vector<256x16xbf16>
    %c0_6 = arith.constant 0 : index
    %c0_7 = arith.constant 0 : index
    %9 = vector.load %arg4[%c0_6, %c0_7] : memref<256x16xbf16, #tpu.memory_space<vmem>>, vector<256x16xbf16>
    tpu.vector_store %arg4[%c0_6, %c0_7], %8 {strides = array<i32>} : memref<256x16xbf16, #tpu.memory_space<vmem>>, vector<256x16xbf16>,
    return
  }
  func.func @transform_0(%arg0: i32) -> (i32, i32) {
    %c0_i32 = arith.constant 0 : i32
    %c0_i32_0 = arith.constant 0 : i32
    return %arg0, %c0_i32 : i32, i32
  }
  func.func @transform_1(%arg0: i32) -> (i32, i32) {
    %c0_i32 = arith.constant 0 : i32
    %c0_i32_0 = arith.constant 0 : i32
    %c0_i32_1 = arith.constant 0 : i32
    return %c0_i32, %c0_i32_0 : i32, i32
  }
  func.func @transform_2(%arg0: i32) -> (i32, i32) {
    %c0_i32 = arith.constant 0 : i32
    %c0_i32_0 = arith.constant 0 : i32
    %c0_i32_1 = arith.constant 0 : i32
    return %c0_i32, %c0_i32_0 : i32, i32
  }
  func.func @transform_3(%arg0: i32) -> (i32, i32) {
    %c0_i32 = arith.constant 0 : i32
    %c0_i32_0 = arith.constant 0 : i32
    return %arg0, %c0_i32 : i32, i32
  }
}

module attributes {stable_mosaic.version = 11 : i64} {
  func.func @_gemm_relu_gemm_kernel(%arg0: i32, %arg1: memref<128x144xbf16, #tpu.memory_space<vmem>>, %arg2: memref<144x32xbf16, #tpu.memory_space<vmem>>, %arg3: memref<1x32xf32, #tpu.memory_space<vmem>>, %arg4: memref<32x21xbf16, #tpu.memory_space<vmem>>, %arg5: memref<1x21xf32, #tpu.memory_space<vmem>>, %arg6: memref<128x21xf32, #tpu.memory_space<vmem>>) attributes {dimension_semantics = [#tpu.dimension_semantics<parallel>], iteration_bounds = array<i64: 1>, scalar_prefetch = 0 : i64, scratch_operands = 0 : i64, tpu.core_type = #tpu.core_type<tc>, window_params = [{transform_indices = @transform_0, window_bounds = array<i64: 128, 144>}, {pipeline_mode = #tpu.pipeline_mode<synchronous>, transform_indices = @transform_1, window_bounds = array<i64: 144, 32>}, {pipeline_mode = #tpu.pipeline_mode<synchronous>, transform_indices = @transform_2, window_bounds = array<i64: 1, 32>}, {pipeline_mode = #tpu.pipeline_mode<synchronous>, transform_indices = @transform_3, window_bounds = array<i64: 32, 21>}, {pipeline_mode = #tpu.pipeline_mode<synchronous>, transform_indices = @transform_4, window_bounds = array<i64: 1, 21>}, {transform_indices = @transform_5, window_bounds = array<i64: 128, 21>}]} {
    %c0 = arith.constant 0 : index
    %c0_0 = arith.constant 0 : index
    %0 = vector.load %arg1[%c0, %c0_0] : memref<128x144xbf16, #tpu.memory_space<vmem>>, vector<128x144xbf16>
    %c0_1 = arith.constant 0 : index
    %c0_2 = arith.constant 0 : index
    %1 = vector.load %arg2[%c0_1, %c0_2] : memref<144x32xbf16, #tpu.memory_space<vmem>>, vector<144x32xbf16>
    %cst = arith.constant dense<0.000000e+00> : vector<128x32xf32>
    %2 = tpu.matmul %0, %1, %cst {dimension_numbers = #tpu.dot_dimension_numbers<[1], [0], [0], [1], [0, 0, 1, 1], [], []>} : vector<128x144xbf16>, vector<144x32xbf16>, vector<128x32xf32> -> vector<128x32xf32>
    %c0_3 = arith.constant 0 : index
    %c0_4 = arith.constant 0 : index
    %3 = vector.load %arg3[%c0_3, %c0_4] : memref<1x32xf32, #tpu.memory_space<vmem>>, vector<1x32xf32>
    %4 = vector.broadcast %3 : vector<1x32xf32> to vector<128x32xf32>
    %5 = arith.addf %2, %4 : vector<128x32xf32>
    %cst_5 = arith.constant 0.000000e+00 : f32
    %6 = vector.broadcast %cst_5 : f32 to vector<128x32xf32>
    %7 = arith.maximumf %5, %6 : vector<128x32xf32>
    %8 = arith.truncf %7 : vector<128x32xf32> to vector<128x32xbf16>
    %c0_6 = arith.constant 0 : index
    %c0_7 = arith.constant 0 : index
    %9 = vector.load %arg4[%c0_6, %c0_7] : memref<32x21xbf16, #tpu.memory_space<vmem>>, vector<32x21xbf16>
    %cst_8 = arith.constant dense<0.000000e+00> : vector<128x21xf32>
    %10 = tpu.matmul %8, %9, %cst_8 {dimension_numbers = #tpu.dot_dimension_numbers<[1], [0], [0], [1], [0, 0, 1, 1], [], []>} : vector<128x32xbf16>, vector<32x21xbf16>, vector<128x21xf32> -> vector<128x21xf32>
    %c0_9 = arith.constant 0 : index
    %c0_10 = arith.constant 0 : index
    %11 = vector.load %arg5[%c0_9, %c0_10] : memref<1x21xf32, #tpu.memory_space<vmem>>, vector<1x21xf32>
    %12 = vector.broadcast %11 : vector<1x21xf32> to vector<128x21xf32>
    %13 = arith.addf %10, %12 : vector<128x21xf32>
    %c0_11 = arith.constant 0 : index
    %c0_12 = arith.constant 0 : index
    %14 = vector.load %arg6[%c0_11, %c0_12] : memref<128x21xf32, #tpu.memory_space<vmem>>, vector<128x21xf32>
    tpu.vector_store %arg6[%c0_11, %c0_12], %13 {strides = array<i32>} : memref<128x21xf32, #tpu.memory_space<vmem>>, vector<128x21xf32>,
    return
  }
  func.func @transform_0(%arg0: i32) -> (i32, i32) {
    %c0_i32 = arith.constant 0 : i32
    %c0_i32_0 = arith.constant 0 : i32
    return %arg0, %c0_i32 : i32, i32
  }
  func.func @transform_1(%arg0: i32) -> (i32, i32) {
    %c0_i32 = arith.constant 0 : i32
    %c0_i32_0 = arith.constant 0 : i32
    %c0_i32_1 = arith.constant 0 : i32
    return %c0_i32, %c0_i32_0 : i32, i32
  }
  func.func @transform_2(%arg0: i32) -> (i32, i32) {
    %c0_i32 = arith.constant 0 : i32
    %c0_i32_0 = arith.constant 0 : i32
    %c0_i32_1 = arith.constant 0 : i32
    return %c0_i32, %c0_i32_0 : i32, i32
  }
  func.func @transform_3(%arg0: i32) -> (i32, i32) {
    %c0_i32 = arith.constant 0 : i32
    %c0_i32_0 = arith.constant 0 : i32
    %c0_i32_1 = arith.constant 0 : i32
    return %c0_i32, %c0_i32_0 : i32, i32
  }
  func.func @transform_4(%arg0: i32) -> (i32, i32) {
    %c0_i32 = arith.constant 0 : i32
    %c0_i32_0 = arith.constant 0 : i32
    %c0_i32_1 = arith.constant 0 : i32
    return %c0_i32, %c0_i32_0 : i32, i32
  }
  func.func @transform_5(%arg0: i32) -> (i32, i32) {
    %c0_i32 = arith.constant 0 : i32
    %c0_i32_0 = arith.constant 0 : i32
    return %arg0, %c0_i32 : i32, i32
  }
}

module attributes {stable_mosaic.version = 11 : i64} {
  func.func @_upsample_softmax_kernel(%arg0: i32, %arg1: i32, %arg2: memref<1x8x168xf32, #tpu.memory_space<vmem>>, %arg3: memref<16x8xf32, #tpu.memory_space<vmem>>, %arg4: memref<8x32xf32, #tpu.memory_space<vmem>>, %arg5: memref<1x21x16x32xf32, #tpu.memory_space<vmem>>) attributes {dimension_semantics = [#tpu.dimension_semantics<parallel>, #tpu.dimension_semantics<parallel>], iteration_bounds = array<i64: 2, 2>, scalar_prefetch = 0 : i64, scratch_operands = 0 : i64, tpu.core_type = #tpu.core_type<tc>, window_params = [{transform_indices = @transform_0, window_bounds = array<i64: 1, 8, 168>}, {transform_indices = @transform_1, window_bounds = array<i64: 16, 8>}, {pipeline_mode = #tpu.pipeline_mode<synchronous>, transform_indices = @transform_2, window_bounds = array<i64: 8, 32>}, {transform_indices = @transform_3, window_bounds = array<i64: 1, 21, 16, 32>}]} {
    %c0 = arith.constant 0 : index
    %c0_0 = arith.constant 0 : index
    %0 = vector.load %arg3[%c0, %c0_0] : memref<16x8xf32, #tpu.memory_space<vmem>>, vector<16x8xf32>
    %c0_1 = arith.constant 0 : index
    %c0_2 = arith.constant 0 : index
    %c0_3 = arith.constant 0 : index
    %1 = vector.load %arg2[%c0_1, %c0_2, %c0_3] : memref<1x8x168xf32, #tpu.memory_space<vmem>>, vector<1x8x168xf32>
    %2 = vector.shape_cast %1 : vector<1x8x168xf32> to vector<8x168xf32>
    %cst = arith.constant dense<0.000000e+00> : vector<16x168xf32>
    %3 = tpu.matmul %0, %2, %cst {dimension_numbers = #tpu.dot_dimension_numbers<[1], [0], [0], [1], [0, 0, 1, 1], [], []>} : vector<16x8xf32>, vector<8x168xf32>, vector<16x168xf32> -> vector<16x168xf32>
    %4 = vector.extract_strided_slice %3 {offsets = [0, 0], sizes = [16, 8], strides = [1, 1]} : vector<16x168xf32> to vector<16x8xf32>
    %c0_4 = arith.constant 0 : index
    %c0_5 = arith.constant 0 : index
    %5 = vector.load %arg4[%c0_4, %c0_5] : memref<8x32xf32, #tpu.memory_space<vmem>>, vector<8x32xf32>
    %cst_6 = arith.constant dense<0.000000e+00> : vector<16x32xf32>
    %6 = tpu.matmul %4, %5, %cst_6 {dimension_numbers = #tpu.dot_dimension_numbers<[1], [0], [0], [1], [0, 0, 1, 1], [], []>} : vector<16x8xf32>, vector<8x32xf32>, vector<16x32xf32> -> vector<16x32xf32>
    %c0_7 = arith.constant 0 : index
    %c0_8 = arith.constant 0 : index
    %c0_9 = arith.constant 0 : index
    %c0_10 = arith.constant 0 : index
    %7 = vector.load %arg5[%c0_7, %c0_8, %c0_9, %c0_10] : memref<1x21x16x32xf32, #tpu.memory_space<vmem>>, vector<1x1x16x32xf32>
    %8 = vector.shape_cast %7 : vector<1x1x16x32xf32> to vector<16x32xf32>
    %9 = vector.shape_cast %6 : vector<16x32xf32> to vector<1x1x16x32xf32>
    tpu.vector_store %arg5[%c0_7, %c0_8, %c0_9, %c0_10], %9 {strides = array<i32>} : memref<1x21x16x32xf32, #tpu.memory_space<vmem>>, vector<1x1x16x32xf32>,
    %10 = vector.extract_strided_slice %3 {offsets = [0, 8], sizes = [16, 8], strides = [1, 1]} : vector<16x168xf32> to vector<16x8xf32>
    %c0_11 = arith.constant 0 : index
    %c0_12 = arith.constant 0 : index
    %11 = vector.load %arg4[%c0_11, %c0_12] : memref<8x32xf32, #tpu.memory_space<vmem>>, vector<8x32xf32>
    %cst_13 = arith.constant dense<0.000000e+00> : vector<16x32xf32>
    %12 = tpu.matmul %10, %11, %cst_13 {dimension_numbers = #tpu.dot_dimension_numbers<[1], [0], [0], [1], [0, 0, 1, 1], [], []>} : vector<16x8xf32>, vector<8x32xf32>, vector<16x32xf32> -> vector<16x32xf32>
    %c0_14 = arith.constant 0 : index
    %c1 = arith.constant 1 : index
    %c0_15 = arith.constant 0 : index
    %c0_16 = arith.constant 0 : index
    %13 = vector.load %arg5[%c0_14, %c1, %c0_15, %c0_16] : memref<1x21x16x32xf32, #tpu.memory_space<vmem>>, vector<1x1x16x32xf32>
    %14 = vector.shape_cast %13 : vector<1x1x16x32xf32> to vector<16x32xf32>
    %15 = vector.shape_cast %12 : vector<16x32xf32> to vector<1x1x16x32xf32>
    tpu.vector_store %arg5[%c0_14, %c1, %c0_15, %c0_16], %15 {strides = array<i32>} : memref<1x21x16x32xf32, #tpu.memory_space<vmem>>, vector<1x1x16x32xf32>,
    %16 = arith.maximumf %6, %12 : vector<16x32xf32>
    %17 = vector.extract_strided_slice %3 {offsets = [0, 16], sizes = [16, 8], strides = [1, 1]} : vector<16x168xf32> to vector<16x8xf32>
    %c0_17 = arith.constant 0 : index
    %c0_18 = arith.constant 0 : index
    %18 = vector.load %arg4[%c0_17, %c0_18] : memref<8x32xf32, #tpu.memory_space<vmem>>, vector<8x32xf32>
    %cst_19 = arith.constant dense<0.000000e+00> : vector<16x32xf32>
    %19 = tpu.matmul %17, %18, %cst_19 {dimension_numbers = #tpu.dot_dimension_numbers<[1], [0], [0], [1], [0, 0, 1, 1], [], []>} : vector<16x8xf32>, vector<8x32xf32>, vector<16x32xf32> -> vector<16x32xf32>
    %c0_20 = arith.constant 0 : index
    %c2 = arith.constant 2 : index
    %c0_21 = arith.constant 0 : index
    %c0_22 = arith.constant 0 : index
    %20 = vector.load %arg5[%c0_20, %c2, %c0_21, %c0_22] : memref<1x21x16x32xf32, #tpu.memory_space<vmem>>, vector<1x1x16x32xf32>
    %21 = vector.shape_cast %20 : vector<1x1x16x32xf32> to vector<16x32xf32>
    %22 = vector.shape_cast %19 : vector<16x32xf32> to vector<1x1x16x32xf32>
    tpu.vector_store %arg5[%c0_20, %c2, %c0_21, %c0_22], %22 {strides = array<i32>} : memref<1x21x16x32xf32, #tpu.memory_space<vmem>>, vector<1x1x16x32xf32>,
    %23 = arith.maximumf %16, %19 : vector<16x32xf32>
    %24 = vector.extract_strided_slice %3 {offsets = [0, 24], sizes = [16, 8], strides = [1, 1]} : vector<16x168xf32> to vector<16x8xf32>
    %c0_23 = arith.constant 0 : index
    %c0_24 = arith.constant 0 : index
    %25 = vector.load %arg4[%c0_23, %c0_24] : memref<8x32xf32, #tpu.memory_space<vmem>>, vector<8x32xf32>
    %cst_25 = arith.constant dense<0.000000e+00> : vector<16x32xf32>
    %26 = tpu.matmul %24, %25, %cst_25 {dimension_numbers = #tpu.dot_dimension_numbers<[1], [0], [0], [1], [0, 0, 1, 1], [], []>} : vector<16x8xf32>, vector<8x32xf32>, vector<16x32xf32> -> vector<16x32xf32>
    %c0_26 = arith.constant 0 : index
    %c3 = arith.constant 3 : index
    %c0_27 = arith.constant 0 : index
    %c0_28 = arith.constant 0 : index
    %27 = vector.load %arg5[%c0_26, %c3, %c0_27, %c0_28] : memref<1x21x16x32xf32, #tpu.memory_space<vmem>>, vector<1x1x16x32xf32>
    %28 = vector.shape_cast %27 : vector<1x1x16x32xf32> to vector<16x32xf32>
    %29 = vector.shape_cast %26 : vector<16x32xf32> to vector<1x1x16x32xf32>
    tpu.vector_store %arg5[%c0_26, %c3, %c0_27, %c0_28], %29 {strides = array<i32>} : memref<1x21x16x32xf32, #tpu.memory_space<vmem>>, vector<1x1x16x32xf32>,
    %30 = arith.maximumf %23, %26 : vector<16x32xf32>
    %31 = vector.extract_strided_slice %3 {offsets = [0, 32], sizes = [16, 8], strides = [1, 1]} : vector<16x168xf32> to vector<16x8xf32>
    %c0_29 = arith.constant 0 : index
    %c0_30 = arith.constant 0 : index
    %32 = vector.load %arg4[%c0_29, %c0_30] : memref<8x32xf32, #tpu.memory_space<vmem>>, vector<8x32xf32>
    %cst_31 = arith.constant dense<0.000000e+00> : vector<16x32xf32>
    %33 = tpu.matmul %31, %32, %cst_31 {dimension_numbers = #tpu.dot_dimension_numbers<[1], [0], [0], [1], [0, 0, 1, 1], [], []>} : vector<16x8xf32>, vector<8x32xf32>, vector<16x32xf32> -> vector<16x32xf32>
    %c0_32 = arith.constant 0 : index
    %c4 = arith.constant 4 : index
    %c0_33 = arith.constant 0 : index
    %c0_34 = arith.constant 0 : index
    %34 = vector.load %arg5[%c0_32, %c4, %c0_33, %c0_34] : memref<1x21x16x32xf32, #tpu.memory_space<vmem>>, vector<1x1x16x32xf32>
    %35 = vector.shape_cast %34 : vector<1x1x16x32xf32> to vector<16x32xf32>
    %36 = vector.shape_cast %33 : vector<16x32xf32> to vector<1x1x16x32xf32>
    tpu.vector_store %arg5[%c0_32, %c4, %c0_33, %c0_34], %36 {strides = array<i32>} : memref<1x21x16x32xf32, #tpu.memory_space<vmem>>, vector<1x1x16x32xf32>,
    %37 = arith.maximumf %30, %33 : vector<16x32xf32>
    %38 = vector.extract_strided_slice %3 {offsets = [0, 40], sizes = [16, 8], strides = [1, 1]} : vector<16x168xf32> to vector<16x8xf32>
    %c0_35 = arith.constant 0 : index
    %c0_36 = arith.constant 0 : index
    %39 = vector.load %arg4[%c0_35, %c0_36] : memref<8x32xf32, #tpu.memory_space<vmem>>, vector<8x32xf32>
    %cst_37 = arith.constant dense<0.000000e+00> : vector<16x32xf32>
    %40 = tpu.matmul %38, %39, %cst_37 {dimension_numbers = #tpu.dot_dimension_numbers<[1], [0], [0], [1], [0, 0, 1, 1], [], []>} : vector<16x8xf32>, vector<8x32xf32>, vector<16x32xf32> -> vector<16x32xf32>
    %c0_38 = arith.constant 0 : index
    %c5 = arith.constant 5 : index
    %c0_39 = arith.constant 0 : index
    %c0_40 = arith.constant 0 : index
    %41 = vector.load %arg5[%c0_38, %c5, %c0_39, %c0_40] : memref<1x21x16x32xf32, #tpu.memory_space<vmem>>, vector<1x1x16x32xf32>
    %42 = vector.shape_cast %41 : vector<1x1x16x32xf32> to vector<16x32xf32>
    %43 = vector.shape_cast %40 : vector<16x32xf32> to vector<1x1x16x32xf32>
    tpu.vector_store %arg5[%c0_38, %c5, %c0_39, %c0_40], %43 {strides = array<i32>} : memref<1x21x16x32xf32, #tpu.memory_space<vmem>>, vector<1x1x16x32xf32>,
    %44 = arith.maximumf %37, %40 : vector<16x32xf32>
    %45 = vector.extract_strided_slice %3 {offsets = [0, 48], sizes = [16, 8], strides = [1, 1]} : vector<16x168xf32> to vector<16x8xf32>
    %c0_41 = arith.constant 0 : index
    %c0_42 = arith.constant 0 : index
    %46 = vector.load %arg4[%c0_41, %c0_42] : memref<8x32xf32, #tpu.memory_space<vmem>>, vector<8x32xf32>
    %cst_43 = arith.constant dense<0.000000e+00> : vector<16x32xf32>
    %47 = tpu.matmul %45, %46, %cst_43 {dimension_numbers = #tpu.dot_dimension_numbers<[1], [0], [0], [1], [0, 0, 1, 1], [], []>} : vector<16x8xf32>, vector<8x32xf32>, vector<16x32xf32> -> vector<16x32xf32>
    %c0_44 = arith.constant 0 : index
    %c6 = arith.constant 6 : index
    %c0_45 = arith.constant 0 : index
    %c0_46 = arith.constant 0 : index
    %48 = vector.load %arg5[%c0_44, %c6, %c0_45, %c0_46] : memref<1x21x16x32xf32, #tpu.memory_space<vmem>>, vector<1x1x16x32xf32>
    %49 = vector.shape_cast %48 : vector<1x1x16x32xf32> to vector<16x32xf32>
    %50 = vector.shape_cast %47 : vector<16x32xf32> to vector<1x1x16x32xf32>
    tpu.vector_store %arg5[%c0_44, %c6, %c0_45, %c0_46], %50 {strides = array<i32>} : memref<1x21x16x32xf32, #tpu.memory_space<vmem>>, vector<1x1x16x32xf32>,
    %51 = arith.maximumf %44, %47 : vector<16x32xf32>
    %52 = vector.extract_strided_slice %3 {offsets = [0, 56], sizes = [16, 8], strides = [1, 1]} : vector<16x168xf32> to vector<16x8xf32>
    %c0_47 = arith.constant 0 : index
    %c0_48 = arith.constant 0 : index
    %53 = vector.load %arg4[%c0_47, %c0_48] : memref<8x32xf32, #tpu.memory_space<vmem>>, vector<8x32xf32>
    %cst_49 = arith.constant dense<0.000000e+00> : vector<16x32xf32>
    %54 = tpu.matmul %52, %53, %cst_49 {dimension_numbers = #tpu.dot_dimension_numbers<[1], [0], [0], [1], [0, 0, 1, 1], [], []>} : vector<16x8xf32>, vector<8x32xf32>, vector<16x32xf32> -> vector<16x32xf32>
    %c0_50 = arith.constant 0 : index
    %c7 = arith.constant 7 : index
    %c0_51 = arith.constant 0 : index
    %c0_52 = arith.constant 0 : index
    %55 = vector.load %arg5[%c0_50, %c7, %c0_51, %c0_52] : memref<1x21x16x32xf32, #tpu.memory_space<vmem>>, vector<1x1x16x32xf32>
    %56 = vector.shape_cast %55 : vector<1x1x16x32xf32> to vector<16x32xf32>
    %57 = vector.shape_cast %54 : vector<16x32xf32> to vector<1x1x16x32xf32>
    tpu.vector_store %arg5[%c0_50, %c7, %c0_51, %c0_52], %57 {strides = array<i32>} : memref<1x21x16x32xf32, #tpu.memory_space<vmem>>, vector<1x1x16x32xf32>,
    %58 = arith.maximumf %51, %54 : vector<16x32xf32>
    %59 = vector.extract_strided_slice %3 {offsets = [0, 64], sizes = [16, 8], strides = [1, 1]} : vector<16x168xf32> to vector<16x8xf32>
    %c0_53 = arith.constant 0 : index
    %c0_54 = arith.constant 0 : index
    %60 = vector.load %arg4[%c0_53, %c0_54] : memref<8x32xf32, #tpu.memory_space<vmem>>, vector<8x32xf32>
    %cst_55 = arith.constant dense<0.000000e+00> : vector<16x32xf32>
    %61 = tpu.matmul %59, %60, %cst_55 {dimension_numbers = #tpu.dot_dimension_numbers<[1], [0], [0], [1], [0, 0, 1, 1], [], []>} : vector<16x8xf32>, vector<8x32xf32>, vector<16x32xf32> -> vector<16x32xf32>
    %c0_56 = arith.constant 0 : index
    %c8 = arith.constant 8 : index
    %c0_57 = arith.constant 0 : index
    %c0_58 = arith.constant 0 : index
    %62 = vector.load %arg5[%c0_56, %c8, %c0_57, %c0_58] : memref<1x21x16x32xf32, #tpu.memory_space<vmem>>, vector<1x1x16x32xf32>
    %63 = vector.shape_cast %62 : vector<1x1x16x32xf32> to vector<16x32xf32>
    %64 = vector.shape_cast %61 : vector<16x32xf32> to vector<1x1x16x32xf32>
    tpu.vector_store %arg5[%c0_56, %c8, %c0_57, %c0_58], %64 {strides = array<i32>} : memref<1x21x16x32xf32, #tpu.memory_space<vmem>>, vector<1x1x16x32xf32>,
    %65 = arith.maximumf %58, %61 : vector<16x32xf32>
    %66 = vector.extract_strided_slice %3 {offsets = [0, 72], sizes = [16, 8], strides = [1, 1]} : vector<16x168xf32> to vector<16x8xf32>
    %c0_59 = arith.constant 0 : index
    %c0_60 = arith.constant 0 : index
    %67 = vector.load %arg4[%c0_59, %c0_60] : memref<8x32xf32, #tpu.memory_space<vmem>>, vector<8x32xf32>
    %cst_61 = arith.constant dense<0.000000e+00> : vector<16x32xf32>
    %68 = tpu.matmul %66, %67, %cst_61 {dimension_numbers = #tpu.dot_dimension_numbers<[1], [0], [0], [1], [0, 0, 1, 1], [], []>} : vector<16x8xf32>, vector<8x32xf32>, vector<16x32xf32> -> vector<16x32xf32>
    %c0_62 = arith.constant 0 : index
    %c9 = arith.constant 9 : index
    %c0_63 = arith.constant 0 : index
    %c0_64 = arith.constant 0 : index
    %69 = vector.load %arg5[%c0_62, %c9, %c0_63, %c0_64] : memref<1x21x16x32xf32, #tpu.memory_space<vmem>>, vector<1x1x16x32xf32>
    %70 = vector.shape_cast %69 : vector<1x1x16x32xf32> to vector<16x32xf32>
    %71 = vector.shape_cast %68 : vector<16x32xf32> to vector<1x1x16x32xf32>
    tpu.vector_store %arg5[%c0_62, %c9, %c0_63, %c0_64], %71 {strides = array<i32>} : memref<1x21x16x32xf32, #tpu.memory_space<vmem>>, vector<1x1x16x32xf32>,
    %72 = arith.maximumf %65, %68 : vector<16x32xf32>
    %73 = vector.extract_strided_slice %3 {offsets = [0, 80], sizes = [16, 8], strides = [1, 1]} : vector<16x168xf32> to vector<16x8xf32>
    %c0_65 = arith.constant 0 : index
    %c0_66 = arith.constant 0 : index
    %74 = vector.load %arg4[%c0_65, %c0_66] : memref<8x32xf32, #tpu.memory_space<vmem>>, vector<8x32xf32>
    %cst_67 = arith.constant dense<0.000000e+00> : vector<16x32xf32>
    %75 = tpu.matmul %73, %74, %cst_67 {dimension_numbers = #tpu.dot_dimension_numbers<[1], [0], [0], [1], [0, 0, 1, 1], [], []>} : vector<16x8xf32>, vector<8x32xf32>, vector<16x32xf32> -> vector<16x32xf32>
    %c0_68 = arith.constant 0 : index
    %c10 = arith.constant 10 : index
    %c0_69 = arith.constant 0 : index
    %c0_70 = arith.constant 0 : index
    %76 = vector.load %arg5[%c0_68, %c10, %c0_69, %c0_70] : memref<1x21x16x32xf32, #tpu.memory_space<vmem>>, vector<1x1x16x32xf32>
    %77 = vector.shape_cast %76 : vector<1x1x16x32xf32> to vector<16x32xf32>
    %78 = vector.shape_cast %75 : vector<16x32xf32> to vector<1x1x16x32xf32>
    tpu.vector_store %arg5[%c0_68, %c10, %c0_69, %c0_70], %78 {strides = array<i32>} : memref<1x21x16x32xf32, #tpu.memory_space<vmem>>, vector<1x1x16x32xf32>,
    %79 = arith.maximumf %72, %75 : vector<16x32xf32>
    %80 = vector.extract_strided_slice %3 {offsets = [0, 88], sizes = [16, 8], strides = [1, 1]} : vector<16x168xf32> to vector<16x8xf32>
    %c0_71 = arith.constant 0 : index
    %c0_72 = arith.constant 0 : index
    %81 = vector.load %arg4[%c0_71, %c0_72] : memref<8x32xf32, #tpu.memory_space<vmem>>, vector<8x32xf32>
    %cst_73 = arith.constant dense<0.000000e+00> : vector<16x32xf32>
    %82 = tpu.matmul %80, %81, %cst_73 {dimension_numbers = #tpu.dot_dimension_numbers<[1], [0], [0], [1], [0, 0, 1, 1], [], []>} : vector<16x8xf32>, vector<8x32xf32>, vector<16x32xf32> -> vector<16x32xf32>
    %c0_74 = arith.constant 0 : index
    %c11 = arith.constant 11 : index
    %c0_75 = arith.constant 0 : index
    %c0_76 = arith.constant 0 : index
    %83 = vector.load %arg5[%c0_74, %c11, %c0_75, %c0_76] : memref<1x21x16x32xf32, #tpu.memory_space<vmem>>, vector<1x1x16x32xf32>
    %84 = vector.shape_cast %83 : vector<1x1x16x32xf32> to vector<16x32xf32>
    %85 = vector.shape_cast %82 : vector<16x32xf32> to vector<1x1x16x32xf32>
    tpu.vector_store %arg5[%c0_74, %c11, %c0_75, %c0_76], %85 {strides = array<i32>} : memref<1x21x16x32xf32, #tpu.memory_space<vmem>>, vector<1x1x16x32xf32>,
    %86 = arith.maximumf %79, %82 : vector<16x32xf32>
    %87 = vector.extract_strided_slice %3 {offsets = [0, 96], sizes = [16, 8], strides = [1, 1]} : vector<16x168xf32> to vector<16x8xf32>
    %c0_77 = arith.constant 0 : index
    %c0_78 = arith.constant 0 : index
    %88 = vector.load %arg4[%c0_77, %c0_78] : memref<8x32xf32, #tpu.memory_space<vmem>>, vector<8x32xf32>
    %cst_79 = arith.constant dense<0.000000e+00> : vector<16x32xf32>
    %89 = tpu.matmul %87, %88, %cst_79 {dimension_numbers = #tpu.dot_dimension_numbers<[1], [0], [0], [1], [0, 0, 1, 1], [], []>} : vector<16x8xf32>, vector<8x32xf32>, vector<16x32xf32> -> vector<16x32xf32>
    %c0_80 = arith.constant 0 : index
    %c12 = arith.constant 12 : index
    %c0_81 = arith.constant 0 : index
    %c0_82 = arith.constant 0 : index
    %90 = vector.load %arg5[%c0_80, %c12, %c0_81, %c0_82] : memref<1x21x16x32xf32, #tpu.memory_space<vmem>>, vector<1x1x16x32xf32>
    %91 = vector.shape_cast %90 : vector<1x1x16x32xf32> to vector<16x32xf32>
    %92 = vector.shape_cast %89 : vector<16x32xf32> to vector<1x1x16x32xf32>
    tpu.vector_store %arg5[%c0_80, %c12, %c0_81, %c0_82], %92 {strides = array<i32>} : memref<1x21x16x32xf32, #tpu.memory_space<vmem>>, vector<1x1x16x32xf32>,
    %93 = arith.maximumf %86, %89 : vector<16x32xf32>
    %94 = vector.extract_strided_slice %3 {offsets = [0, 104], sizes = [16, 8], strides = [1, 1]} : vector<16x168xf32> to vector<16x8xf32>
    %c0_83 = arith.constant 0 : index
    %c0_84 = arith.constant 0 : index
    %95 = vector.load %arg4[%c0_83, %c0_84] : memref<8x32xf32, #tpu.memory_space<vmem>>, vector<8x32xf32>
    %cst_85 = arith.constant dense<0.000000e+00> : vector<16x32xf32>
    %96 = tpu.matmul %94, %95, %cst_85 {dimension_numbers = #tpu.dot_dimension_numbers<[1], [0], [0], [1], [0, 0, 1, 1], [], []>} : vector<16x8xf32>, vector<8x32xf32>, vector<16x32xf32> -> vector<16x32xf32>
    %c0_86 = arith.constant 0 : index
    %c13 = arith.constant 13 : index
    %c0_87 = arith.constant 0 : index
    %c0_88 = arith.constant 0 : index
    %97 = vector.load %arg5[%c0_86, %c13, %c0_87, %c0_88] : memref<1x21x16x32xf32, #tpu.memory_space<vmem>>, vector<1x1x16x32xf32>
    %98 = vector.shape_cast %97 : vector<1x1x16x32xf32> to vector<16x32xf32>
    %99 = vector.shape_cast %96 : vector<16x32xf32> to vector<1x1x16x32xf32>
    tpu.vector_store %arg5[%c0_86, %c13, %c0_87, %c0_88], %99 {strides = array<i32>} : memref<1x21x16x32xf32, #tpu.memory_space<vmem>>, vector<1x1x16x32xf32>,
    %100 = arith.maximumf %93, %96 : vector<16x32xf32>
    %101 = vector.extract_strided_slice %3 {offsets = [0, 112], sizes = [16, 8], strides = [1, 1]} : vector<16x168xf32> to vector<16x8xf32>
    %c0_89 = arith.constant 0 : index
    %c0_90 = arith.constant 0 : index
    %102 = vector.load %arg4[%c0_89, %c0_90] : memref<8x32xf32, #tpu.memory_space<vmem>>, vector<8x32xf32>
    %cst_91 = arith.constant dense<0.000000e+00> : vector<16x32xf32>
    %103 = tpu.matmul %101, %102, %cst_91 {dimension_numbers = #tpu.dot_dimension_numbers<[1], [0], [0], [1], [0, 0, 1, 1], [], []>} : vector<16x8xf32>, vector<8x32xf32>, vector<16x32xf32> -> vector<16x32xf32>
    %c0_92 = arith.constant 0 : index
    %c14 = arith.constant 14 : index
    %c0_93 = arith.constant 0 : index
    %c0_94 = arith.constant 0 : index
    %104 = vector.load %arg5[%c0_92, %c14, %c0_93, %c0_94] : memref<1x21x16x32xf32, #tpu.memory_space<vmem>>, vector<1x1x16x32xf32>
    %105 = vector.shape_cast %104 : vector<1x1x16x32xf32> to vector<16x32xf32>
    %106 = vector.shape_cast %103 : vector<16x32xf32> to vector<1x1x16x32xf32>
    tpu.vector_store %arg5[%c0_92, %c14, %c0_93, %c0_94], %106 {strides = array<i32>} : memref<1x21x16x32xf32, #tpu.memory_space<vmem>>, vector<1x1x16x32xf32>,
    %107 = arith.maximumf %100, %103 : vector<16x32xf32>
    %108 = vector.extract_strided_slice %3 {offsets = [0, 120], sizes = [16, 8], strides = [1, 1]} : vector<16x168xf32> to vector<16x8xf32>
    %c0_95 = arith.constant 0 : index
    %c0_96 = arith.constant 0 : index
    %109 = vector.load %arg4[%c0_95, %c0_96] : memref<8x32xf32, #tpu.memory_space<vmem>>, vector<8x32xf32>
    %cst_97 = arith.constant dense<0.000000e+00> : vector<16x32xf32>
    %110 = tpu.matmul %108, %109, %cst_97 {dimension_numbers = #tpu.dot_dimension_numbers<[1], [0], [0], [1], [0, 0, 1, 1], [], []>} : vector<16x8xf32>, vector<8x32xf32>, vector<16x32xf32> -> vector<16x32xf32>
    %c0_98 = arith.constant 0 : index
    %c15 = arith.constant 15 : index
    %c0_99 = arith.constant 0 : index
    %c0_100 = arith.constant 0 : index
    %111 = vector.load %arg5[%c0_98, %c15, %c0_99, %c0_100] : memref<1x21x16x32xf32, #tpu.memory_space<vmem>>, vector<1x1x16x32xf32>
    %112 = vector.shape_cast %111 : vector<1x1x16x32xf32> to vector<16x32xf32>
    %113 = vector.shape_cast %110 : vector<16x32xf32> to vector<1x1x16x32xf32>
    tpu.vector_store %arg5[%c0_98, %c15, %c0_99, %c0_100], %113 {strides = array<i32>} : memref<1x21x16x32xf32, #tpu.memory_space<vmem>>, vector<1x1x16x32xf32>,
    %114 = arith.maximumf %107, %110 : vector<16x32xf32>
    %115 = vector.extract_strided_slice %3 {offsets = [0, 128], sizes = [16, 8], strides = [1, 1]} : vector<16x168xf32> to vector<16x8xf32>
    %c0_101 = arith.constant 0 : index
    %c0_102 = arith.constant 0 : index
    %116 = vector.load %arg4[%c0_101, %c0_102] : memref<8x32xf32, #tpu.memory_space<vmem>>, vector<8x32xf32>
    %cst_103 = arith.constant dense<0.000000e+00> : vector<16x32xf32>
    %117 = tpu.matmul %115, %116, %cst_103 {dimension_numbers = #tpu.dot_dimension_numbers<[1], [0], [0], [1], [0, 0, 1, 1], [], []>} : vector<16x8xf32>, vector<8x32xf32>, vector<16x32xf32> -> vector<16x32xf32>
    %c0_104 = arith.constant 0 : index
    %c16 = arith.constant 16 : index
    %c0_105 = arith.constant 0 : index
    %c0_106 = arith.constant 0 : index
    %118 = vector.load %arg5[%c0_104, %c16, %c0_105, %c0_106] : memref<1x21x16x32xf32, #tpu.memory_space<vmem>>, vector<1x1x16x32xf32>
    %119 = vector.shape_cast %118 : vector<1x1x16x32xf32> to vector<16x32xf32>
    %120 = vector.shape_cast %117 : vector<16x32xf32> to vector<1x1x16x32xf32>
    tpu.vector_store %arg5[%c0_104, %c16, %c0_105, %c0_106], %120 {strides = array<i32>} : memref<1x21x16x32xf32, #tpu.memory_space<vmem>>, vector<1x1x16x32xf32>,
    %121 = arith.maximumf %114, %117 : vector<16x32xf32>
    %122 = vector.extract_strided_slice %3 {offsets = [0, 136], sizes = [16, 8], strides = [1, 1]} : vector<16x168xf32> to vector<16x8xf32>
    %c0_107 = arith.constant 0 : index
    %c0_108 = arith.constant 0 : index
    %123 = vector.load %arg4[%c0_107, %c0_108] : memref<8x32xf32, #tpu.memory_space<vmem>>, vector<8x32xf32>
    %cst_109 = arith.constant dense<0.000000e+00> : vector<16x32xf32>
    %124 = tpu.matmul %122, %123, %cst_109 {dimension_numbers = #tpu.dot_dimension_numbers<[1], [0], [0], [1], [0, 0, 1, 1], [], []>} : vector<16x8xf32>, vector<8x32xf32>, vector<16x32xf32> -> vector<16x32xf32>
    %c0_110 = arith.constant 0 : index
    %c17 = arith.constant 17 : index
    %c0_111 = arith.constant 0 : index
    %c0_112 = arith.constant 0 : index
    %125 = vector.load %arg5[%c0_110, %c17, %c0_111, %c0_112] : memref<1x21x16x32xf32, #tpu.memory_space<vmem>>, vector<1x1x16x32xf32>
    %126 = vector.shape_cast %125 : vector<1x1x16x32xf32> to vector<16x32xf32>
    %127 = vector.shape_cast %124 : vector<16x32xf32> to vector<1x1x16x32xf32>
    tpu.vector_store %arg5[%c0_110, %c17, %c0_111, %c0_112], %127 {strides = array<i32>} : memref<1x21x16x32xf32, #tpu.memory_space<vmem>>, vector<1x1x16x32xf32>,
    %128 = arith.maximumf %121, %124 : vector<16x32xf32>
    %129 = vector.extract_strided_slice %3 {offsets = [0, 144], sizes = [16, 8], strides = [1, 1]} : vector<16x168xf32> to vector<16x8xf32>
    %c0_113 = arith.constant 0 : index
    %c0_114 = arith.constant 0 : index
    %130 = vector.load %arg4[%c0_113, %c0_114] : memref<8x32xf32, #tpu.memory_space<vmem>>, vector<8x32xf32>
    %cst_115 = arith.constant dense<0.000000e+00> : vector<16x32xf32>
    %131 = tpu.matmul %129, %130, %cst_115 {dimension_numbers = #tpu.dot_dimension_numbers<[1], [0], [0], [1], [0, 0, 1, 1], [], []>} : vector<16x8xf32>, vector<8x32xf32>, vector<16x32xf32> -> vector<16x32xf32>
    %c0_116 = arith.constant 0 : index
    %c18 = arith.constant 18 : index
    %c0_117 = arith.constant 0 : index
    %c0_118 = arith.constant 0 : index
    %132 = vector.load %arg5[%c0_116, %c18, %c0_117, %c0_118] : memref<1x21x16x32xf32, #tpu.memory_space<vmem>>, vector<1x1x16x32xf32>
    %133 = vector.shape_cast %132 : vector<1x1x16x32xf32> to vector<16x32xf32>
    %134 = vector.shape_cast %131 : vector<16x32xf32> to vector<1x1x16x32xf32>
    tpu.vector_store %arg5[%c0_116, %c18, %c0_117, %c0_118], %134 {strides = array<i32>} : memref<1x21x16x32xf32, #tpu.memory_space<vmem>>, vector<1x1x16x32xf32>,
    %135 = arith.maximumf %128, %131 : vector<16x32xf32>
    %136 = vector.extract_strided_slice %3 {offsets = [0, 152], sizes = [16, 8], strides = [1, 1]} : vector<16x168xf32> to vector<16x8xf32>
    %c0_119 = arith.constant 0 : index
    %c0_120 = arith.constant 0 : index
    %137 = vector.load %arg4[%c0_119, %c0_120] : memref<8x32xf32, #tpu.memory_space<vmem>>, vector<8x32xf32>
    %cst_121 = arith.constant dense<0.000000e+00> : vector<16x32xf32>
    %138 = tpu.matmul %136, %137, %cst_121 {dimension_numbers = #tpu.dot_dimension_numbers<[1], [0], [0], [1], [0, 0, 1, 1], [], []>} : vector<16x8xf32>, vector<8x32xf32>, vector<16x32xf32> -> vector<16x32xf32>
    %c0_122 = arith.constant 0 : index
    %c19 = arith.constant 19 : index
    %c0_123 = arith.constant 0 : index
    %c0_124 = arith.constant 0 : index
    %139 = vector.load %arg5[%c0_122, %c19, %c0_123, %c0_124] : memref<1x21x16x32xf32, #tpu.memory_space<vmem>>, vector<1x1x16x32xf32>
    %140 = vector.shape_cast %139 : vector<1x1x16x32xf32> to vector<16x32xf32>
    %141 = vector.shape_cast %138 : vector<16x32xf32> to vector<1x1x16x32xf32>
    tpu.vector_store %arg5[%c0_122, %c19, %c0_123, %c0_124], %141 {strides = array<i32>} : memref<1x21x16x32xf32, #tpu.memory_space<vmem>>, vector<1x1x16x32xf32>,
    %142 = arith.maximumf %135, %138 : vector<16x32xf32>
    %143 = vector.extract_strided_slice %3 {offsets = [0, 160], sizes = [16, 8], strides = [1, 1]} : vector<16x168xf32> to vector<16x8xf32>
    %c0_125 = arith.constant 0 : index
    %c0_126 = arith.constant 0 : index
    %144 = vector.load %arg4[%c0_125, %c0_126] : memref<8x32xf32, #tpu.memory_space<vmem>>, vector<8x32xf32>
    %cst_127 = arith.constant dense<0.000000e+00> : vector<16x32xf32>
    %145 = tpu.matmul %143, %144, %cst_127 {dimension_numbers = #tpu.dot_dimension_numbers<[1], [0], [0], [1], [0, 0, 1, 1], [], []>} : vector<16x8xf32>, vector<8x32xf32>, vector<16x32xf32> -> vector<16x32xf32>
    %c0_128 = arith.constant 0 : index
    %c20 = arith.constant 20 : index
    %c0_129 = arith.constant 0 : index
    %c0_130 = arith.constant 0 : index
    %146 = vector.load %arg5[%c0_128, %c20, %c0_129, %c0_130] : memref<1x21x16x32xf32, #tpu.memory_space<vmem>>, vector<1x1x16x32xf32>
    %147 = vector.shape_cast %146 : vector<1x1x16x32xf32> to vector<16x32xf32>
    %148 = vector.shape_cast %145 : vector<16x32xf32> to vector<1x1x16x32xf32>
    tpu.vector_store %arg5[%c0_128, %c20, %c0_129, %c0_130], %148 {strides = array<i32>} : memref<1x21x16x32xf32, #tpu.memory_space<vmem>>, vector<1x1x16x32xf32>,
    %149 = arith.maximumf %142, %145 : vector<16x32xf32>
    %c0_131 = arith.constant 0 : index
    %c0_132 = arith.constant 0 : index
    %c0_133 = arith.constant 0 : index
    %c0_134 = arith.constant 0 : index
    %150 = vector.load %arg5[%c0_131, %c0_132, %c0_133, %c0_134] : memref<1x21x16x32xf32, #tpu.memory_space<vmem>>, vector<1x1x16x32xf32>
    %151 = vector.shape_cast %150 : vector<1x1x16x32xf32> to vector<16x32xf32>
    %152 = arith.subf %151, %149 : vector<16x32xf32>
    %153 = math.exp %152 : vector<16x32xf32>
    %c0_135 = arith.constant 0 : index
    %c0_136 = arith.constant 0 : index
    %c0_137 = arith.constant 0 : index
    %c0_138 = arith.constant 0 : index
    %154 = vector.load %arg5[%c0_135, %c0_136, %c0_137, %c0_138] : memref<1x21x16x32xf32, #tpu.memory_space<vmem>>, vector<1x1x16x32xf32>
    %155 = vector.shape_cast %154 : vector<1x1x16x32xf32> to vector<16x32xf32>
    %156 = vector.shape_cast %153 : vector<16x32xf32> to vector<1x1x16x32xf32>
    tpu.vector_store %arg5[%c0_135, %c0_136, %c0_137, %c0_138], %156 {strides = array<i32>} : memref<1x21x16x32xf32, #tpu.memory_space<vmem>>, vector<1x1x16x32xf32>,
    %c0_139 = arith.constant 0 : index
    %c1_140 = arith.constant 1 : index
    %c0_141 = arith.constant 0 : index
    %c0_142 = arith.constant 0 : index
    %157 = vector.load %arg5[%c0_139, %c1_140, %c0_141, %c0_142] : memref<1x21x16x32xf32, #tpu.memory_space<vmem>>, vector<1x1x16x32xf32>
    %158 = vector.shape_cast %157 : vector<1x1x16x32xf32> to vector<16x32xf32>
    %159 = arith.subf %158, %149 : vector<16x32xf32>
    %160 = math.exp %159 : vector<16x32xf32>
    %c0_143 = arith.constant 0 : index
    %c1_144 = arith.constant 1 : index
    %c0_145 = arith.constant 0 : index
    %c0_146 = arith.constant 0 : index
    %161 = vector.load %arg5[%c0_143, %c1_144, %c0_145, %c0_146] : memref<1x21x16x32xf32, #tpu.memory_space<vmem>>, vector<1x1x16x32xf32>
    %162 = vector.shape_cast %161 : vector<1x1x16x32xf32> to vector<16x32xf32>
    %163 = vector.shape_cast %160 : vector<16x32xf32> to vector<1x1x16x32xf32>
    tpu.vector_store %arg5[%c0_143, %c1_144, %c0_145, %c0_146], %163 {strides = array<i32>} : memref<1x21x16x32xf32, #tpu.memory_space<vmem>>, vector<1x1x16x32xf32>,
    %164 = arith.addf %153, %160 : vector<16x32xf32>
    %c0_147 = arith.constant 0 : index
    %c2_148 = arith.constant 2 : index
    %c0_149 = arith.constant 0 : index
    %c0_150 = arith.constant 0 : index
    %165 = vector.load %arg5[%c0_147, %c2_148, %c0_149, %c0_150] : memref<1x21x16x32xf32, #tpu.memory_space<vmem>>, vector<1x1x16x32xf32>
    %166 = vector.shape_cast %165 : vector<1x1x16x32xf32> to vector<16x32xf32>
    %167 = arith.subf %166, %149 : vector<16x32xf32>
    %168 = math.exp %167 : vector<16x32xf32>
    %c0_151 = arith.constant 0 : index
    %c2_152 = arith.constant 2 : index
    %c0_153 = arith.constant 0 : index
    %c0_154 = arith.constant 0 : index
    %169 = vector.load %arg5[%c0_151, %c2_152, %c0_153, %c0_154] : memref<1x21x16x32xf32, #tpu.memory_space<vmem>>, vector<1x1x16x32xf32>
    %170 = vector.shape_cast %169 : vector<1x1x16x32xf32> to vector<16x32xf32>
    %171 = vector.shape_cast %168 : vector<16x32xf32> to vector<1x1x16x32xf32>
    tpu.vector_store %arg5[%c0_151, %c2_152, %c0_153, %c0_154], %171 {strides = array<i32>} : memref<1x21x16x32xf32, #tpu.memory_space<vmem>>, vector<1x1x16x32xf32>,
    %172 = arith.addf %164, %168 : vector<16x32xf32>
    %c0_155 = arith.constant 0 : index
    %c3_156 = arith.constant 3 : index
    %c0_157 = arith.constant 0 : index
    %c0_158 = arith.constant 0 : index
    %173 = vector.load %arg5[%c0_155, %c3_156, %c0_157, %c0_158] : memref<1x21x16x32xf32, #tpu.memory_space<vmem>>, vector<1x1x16x32xf32>
    %174 = vector.shape_cast %173 : vector<1x1x16x32xf32> to vector<16x32xf32>
    %175 = arith.subf %174, %149 : vector<16x32xf32>
    %176 = math.exp %175 : vector<16x32xf32>
    %c0_159 = arith.constant 0 : index
    %c3_160 = arith.constant 3 : index
    %c0_161 = arith.constant 0 : index
    %c0_162 = arith.constant 0 : index
    %177 = vector.load %arg5[%c0_159, %c3_160, %c0_161, %c0_162] : memref<1x21x16x32xf32, #tpu.memory_space<vmem>>, vector<1x1x16x32xf32>
    %178 = vector.shape_cast %177 : vector<1x1x16x32xf32> to vector<16x32xf32>
    %179 = vector.shape_cast %176 : vector<16x32xf32> to vector<1x1x16x32xf32>
    tpu.vector_store %arg5[%c0_159, %c3_160, %c0_161, %c0_162], %179 {strides = array<i32>} : memref<1x21x16x32xf32, #tpu.memory_space<vmem>>, vector<1x1x16x32xf32>,
    %180 = arith.addf %172, %176 : vector<16x32xf32>
    %c0_163 = arith.constant 0 : index
    %c4_164 = arith.constant 4 : index
    %c0_165 = arith.constant 0 : index
    %c0_166 = arith.constant 0 : index
    %181 = vector.load %arg5[%c0_163, %c4_164, %c0_165, %c0_166] : memref<1x21x16x32xf32, #tpu.memory_space<vmem>>, vector<1x1x16x32xf32>
    %182 = vector.shape_cast %181 : vector<1x1x16x32xf32> to vector<16x32xf32>
    %183 = arith.subf %182, %149 : vector<16x32xf32>
    %184 = math.exp %183 : vector<16x32xf32>
    %c0_167 = arith.constant 0 : index
    %c4_168 = arith.constant 4 : index
    %c0_169 = arith.constant 0 : index
    %c0_170 = arith.constant 0 : index
    %185 = vector.load %arg5[%c0_167, %c4_168, %c0_169, %c0_170] : memref<1x21x16x32xf32, #tpu.memory_space<vmem>>, vector<1x1x16x32xf32>
    %186 = vector.shape_cast %185 : vector<1x1x16x32xf32> to vector<16x32xf32>
    %187 = vector.shape_cast %184 : vector<16x32xf32> to vector<1x1x16x32xf32>
    tpu.vector_store %arg5[%c0_167, %c4_168, %c0_169, %c0_170], %187 {strides = array<i32>} : memref<1x21x16x32xf32, #tpu.memory_space<vmem>>, vector<1x1x16x32xf32>,
    %188 = arith.addf %180, %184 : vector<16x32xf32>
    %c0_171 = arith.constant 0 : index
    %c5_172 = arith.constant 5 : index
    %c0_173 = arith.constant 0 : index
    %c0_174 = arith.constant 0 : index
    %189 = vector.load %arg5[%c0_171, %c5_172, %c0_173, %c0_174] : memref<1x21x16x32xf32, #tpu.memory_space<vmem>>, vector<1x1x16x32xf32>
    %190 = vector.shape_cast %189 : vector<1x1x16x32xf32> to vector<16x32xf32>
    %191 = arith.subf %190, %149 : vector<16x32xf32>
    %192 = math.exp %191 : vector<16x32xf32>
    %c0_175 = arith.constant 0 : index
    %c5_176 = arith.constant 5 : index
    %c0_177 = arith.constant 0 : index
    %c0_178 = arith.constant 0 : index
    %193 = vector.load %arg5[%c0_175, %c5_176, %c0_177, %c0_178] : memref<1x21x16x32xf32, #tpu.memory_space<vmem>>, vector<1x1x16x32xf32>
    %194 = vector.shape_cast %193 : vector<1x1x16x32xf32> to vector<16x32xf32>
    %195 = vector.shape_cast %192 : vector<16x32xf32> to vector<1x1x16x32xf32>
    tpu.vector_store %arg5[%c0_175, %c5_176, %c0_177, %c0_178], %195 {strides = array<i32>} : memref<1x21x16x32xf32, #tpu.memory_space<vmem>>, vector<1x1x16x32xf32>,
    %196 = arith.addf %188, %192 : vector<16x32xf32>
    %c0_179 = arith.constant 0 : index
    %c6_180 = arith.constant 6 : index
    %c0_181 = arith.constant 0 : index
    %c0_182 = arith.constant 0 : index
    %197 = vector.load %arg5[%c0_179, %c6_180, %c0_181, %c0_182] : memref<1x21x16x32xf32, #tpu.memory_space<vmem>>, vector<1x1x16x32xf32>
    %198 = vector.shape_cast %197 : vector<1x1x16x32xf32> to vector<16x32xf32>
    %199 = arith.subf %198, %149 : vector<16x32xf32>
    %200 = math.exp %199 : vector<16x32xf32>
    %c0_183 = arith.constant 0 : index
    %c6_184 = arith.constant 6 : index
    %c0_185 = arith.constant 0 : index
    %c0_186 = arith.constant 0 : index
    %201 = vector.load %arg5[%c0_183, %c6_184, %c0_185, %c0_186] : memref<1x21x16x32xf32, #tpu.memory_space<vmem>>, vector<1x1x16x32xf32>
    %202 = vector.shape_cast %201 : vector<1x1x16x32xf32> to vector<16x32xf32>
    %203 = vector.shape_cast %200 : vector<16x32xf32> to vector<1x1x16x32xf32>
    tpu.vector_store %arg5[%c0_183, %c6_184, %c0_185, %c0_186], %203 {strides = array<i32>} : memref<1x21x16x32xf32, #tpu.memory_space<vmem>>, vector<1x1x16x32xf32>,
    %204 = arith.addf %196, %200 : vector<16x32xf32>
    %c0_187 = arith.constant 0 : index
    %c7_188 = arith.constant 7 : index
    %c0_189 = arith.constant 0 : index
    %c0_190 = arith.constant 0 : index
    %205 = vector.load %arg5[%c0_187, %c7_188, %c0_189, %c0_190] : memref<1x21x16x32xf32, #tpu.memory_space<vmem>>, vector<1x1x16x32xf32>
    %206 = vector.shape_cast %205 : vector<1x1x16x32xf32> to vector<16x32xf32>
    %207 = arith.subf %206, %149 : vector<16x32xf32>
    %208 = math.exp %207 : vector<16x32xf32>
    %c0_191 = arith.constant 0 : index
    %c7_192 = arith.constant 7 : index
    %c0_193 = arith.constant 0 : index
    %c0_194 = arith.constant 0 : index
    %209 = vector.load %arg5[%c0_191, %c7_192, %c0_193, %c0_194] : memref<1x21x16x32xf32, #tpu.memory_space<vmem>>, vector<1x1x16x32xf32>
    %210 = vector.shape_cast %209 : vector<1x1x16x32xf32> to vector<16x32xf32>
    %211 = vector.shape_cast %208 : vector<16x32xf32> to vector<1x1x16x32xf32>
    tpu.vector_store %arg5[%c0_191, %c7_192, %c0_193, %c0_194], %211 {strides = array<i32>} : memref<1x21x16x32xf32, #tpu.memory_space<vmem>>, vector<1x1x16x32xf32>,
    %212 = arith.addf %204, %208 : vector<16x32xf32>
    %c0_195 = arith.constant 0 : index
    %c8_196 = arith.constant 8 : index
    %c0_197 = arith.constant 0 : index
    %c0_198 = arith.constant 0 : index
    %213 = vector.load %arg5[%c0_195, %c8_196, %c0_197, %c0_198] : memref<1x21x16x32xf32, #tpu.memory_space<vmem>>, vector<1x1x16x32xf32>
    %214 = vector.shape_cast %213 : vector<1x1x16x32xf32> to vector<16x32xf32>
    %215 = arith.subf %214, %149 : vector<16x32xf32>
    %216 = math.exp %215 : vector<16x32xf32>
    %c0_199 = arith.constant 0 : index
    %c8_200 = arith.constant 8 : index
    %c0_201 = arith.constant 0 : index
    %c0_202 = arith.constant 0 : index
    %217 = vector.load %arg5[%c0_199, %c8_200, %c0_201, %c0_202] : memref<1x21x16x32xf32, #tpu.memory_space<vmem>>, vector<1x1x16x32xf32>
    %218 = vector.shape_cast %217 : vector<1x1x16x32xf32> to vector<16x32xf32>
    %219 = vector.shape_cast %216 : vector<16x32xf32> to vector<1x1x16x32xf32>
    tpu.vector_store %arg5[%c0_199, %c8_200, %c0_201, %c0_202], %219 {strides = array<i32>} : memref<1x21x16x32xf32, #tpu.memory_space<vmem>>, vector<1x1x16x32xf32>,
    %220 = arith.addf %212, %216 : vector<16x32xf32>
    %c0_203 = arith.constant 0 : index
    %c9_204 = arith.constant 9 : index
    %c0_205 = arith.constant 0 : index
    %c0_206 = arith.constant 0 : index
    %221 = vector.load %arg5[%c0_203, %c9_204, %c0_205, %c0_206] : memref<1x21x16x32xf32, #tpu.memory_space<vmem>>, vector<1x1x16x32xf32>
    %222 = vector.shape_cast %221 : vector<1x1x16x32xf32> to vector<16x32xf32>
    %223 = arith.subf %222, %149 : vector<16x32xf32>
    %224 = math.exp %223 : vector<16x32xf32>
    %c0_207 = arith.constant 0 : index
    %c9_208 = arith.constant 9 : index
    %c0_209 = arith.constant 0 : index
    %c0_210 = arith.constant 0 : index
    %225 = vector.load %arg5[%c0_207, %c9_208, %c0_209, %c0_210] : memref<1x21x16x32xf32, #tpu.memory_space<vmem>>, vector<1x1x16x32xf32>
    %226 = vector.shape_cast %225 : vector<1x1x16x32xf32> to vector<16x32xf32>
    %227 = vector.shape_cast %224 : vector<16x32xf32> to vector<1x1x16x32xf32>
    tpu.vector_store %arg5[%c0_207, %c9_208, %c0_209, %c0_210], %227 {strides = array<i32>} : memref<1x21x16x32xf32, #tpu.memory_space<vmem>>, vector<1x1x16x32xf32>,
    %228 = arith.addf %220, %224 : vector<16x32xf32>
    %c0_211 = arith.constant 0 : index
    %c10_212 = arith.constant 10 : index
    %c0_213 = arith.constant 0 : index
    %c0_214 = arith.constant 0 : index
    %229 = vector.load %arg5[%c0_211, %c10_212, %c0_213, %c0_214] : memref<1x21x16x32xf32, #tpu.memory_space<vmem>>, vector<1x1x16x32xf32>
    %230 = vector.shape_cast %229 : vector<1x1x16x32xf32> to vector<16x32xf32>
    %231 = arith.subf %230, %149 : vector<16x32xf32>
    %232 = math.exp %231 : vector<16x32xf32>
    %c0_215 = arith.constant 0 : index
    %c10_216 = arith.constant 10 : index
    %c0_217 = arith.constant 0 : index
    %c0_218 = arith.constant 0 : index
    %233 = vector.load %arg5[%c0_215, %c10_216, %c0_217, %c0_218] : memref<1x21x16x32xf32, #tpu.memory_space<vmem>>, vector<1x1x16x32xf32>
    %234 = vector.shape_cast %233 : vector<1x1x16x32xf32> to vector<16x32xf32>
    %235 = vector.shape_cast %232 : vector<16x32xf32> to vector<1x1x16x32xf32>
    tpu.vector_store %arg5[%c0_215, %c10_216, %c0_217, %c0_218], %235 {strides = array<i32>} : memref<1x21x16x32xf32, #tpu.memory_space<vmem>>, vector<1x1x16x32xf32>,
    %236 = arith.addf %228, %232 : vector<16x32xf32>
    %c0_219 = arith.constant 0 : index
    %c11_220 = arith.constant 11 : index
    %c0_221 = arith.constant 0 : index
    %c0_222 = arith.constant 0 : index
    %237 = vector.load %arg5[%c0_219, %c11_220, %c0_221, %c0_222] : memref<1x21x16x32xf32, #tpu.memory_space<vmem>>, vector<1x1x16x32xf32>
    %238 = vector.shape_cast %237 : vector<1x1x16x32xf32> to vector<16x32xf32>
    %239 = arith.subf %238, %149 : vector<16x32xf32>
    %240 = math.exp %239 : vector<16x32xf32>
    %c0_223 = arith.constant 0 : index
    %c11_224 = arith.constant 11 : index
    %c0_225 = arith.constant 0 : index
    %c0_226 = arith.constant 0 : index
    %241 = vector.load %arg5[%c0_223, %c11_224, %c0_225, %c0_226] : memref<1x21x16x32xf32, #tpu.memory_space<vmem>>, vector<1x1x16x32xf32>
    %242 = vector.shape_cast %241 : vector<1x1x16x32xf32> to vector<16x32xf32>
    %243 = vector.shape_cast %240 : vector<16x32xf32> to vector<1x1x16x32xf32>
    tpu.vector_store %arg5[%c0_223, %c11_224, %c0_225, %c0_226], %243 {strides = array<i32>} : memref<1x21x16x32xf32, #tpu.memory_space<vmem>>, vector<1x1x16x32xf32>,
    %244 = arith.addf %236, %240 : vector<16x32xf32>
    %c0_227 = arith.constant 0 : index
    %c12_228 = arith.constant 12 : index
    %c0_229 = arith.constant 0 : index
    %c0_230 = arith.constant 0 : index
    %245 = vector.load %arg5[%c0_227, %c12_228, %c0_229, %c0_230] : memref<1x21x16x32xf32, #tpu.memory_space<vmem>>, vector<1x1x16x32xf32>
    %246 = vector.shape_cast %245 : vector<1x1x16x32xf32> to vector<16x32xf32>
    %247 = arith.subf %246, %149 : vector<16x32xf32>
    %248 = math.exp %247 : vector<16x32xf32>
    %c0_231 = arith.constant 0 : index
    %c12_232 = arith.constant 12 : index
    %c0_233 = arith.constant 0 : index
    %c0_234 = arith.constant 0 : index
    %249 = vector.load %arg5[%c0_231, %c12_232, %c0_233, %c0_234] : memref<1x21x16x32xf32, #tpu.memory_space<vmem>>, vector<1x1x16x32xf32>
    %250 = vector.shape_cast %249 : vector<1x1x16x32xf32> to vector<16x32xf32>
    %251 = vector.shape_cast %248 : vector<16x32xf32> to vector<1x1x16x32xf32>
    tpu.vector_store %arg5[%c0_231, %c12_232, %c0_233, %c0_234], %251 {strides = array<i32>} : memref<1x21x16x32xf32, #tpu.memory_space<vmem>>, vector<1x1x16x32xf32>,
    %252 = arith.addf %244, %248 : vector<16x32xf32>
    %c0_235 = arith.constant 0 : index
    %c13_236 = arith.constant 13 : index
    %c0_237 = arith.constant 0 : index
    %c0_238 = arith.constant 0 : index
    %253 = vector.load %arg5[%c0_235, %c13_236, %c0_237, %c0_238] : memref<1x21x16x32xf32, #tpu.memory_space<vmem>>, vector<1x1x16x32xf32>
    %254 = vector.shape_cast %253 : vector<1x1x16x32xf32> to vector<16x32xf32>
    %255 = arith.subf %254, %149 : vector<16x32xf32>
    %256 = math.exp %255 : vector<16x32xf32>
    %c0_239 = arith.constant 0 : index
    %c13_240 = arith.constant 13 : index
    %c0_241 = arith.constant 0 : index
    %c0_242 = arith.constant 0 : index
    %257 = vector.load %arg5[%c0_239, %c13_240, %c0_241, %c0_242] : memref<1x21x16x32xf32, #tpu.memory_space<vmem>>, vector<1x1x16x32xf32>
    %258 = vector.shape_cast %257 : vector<1x1x16x32xf32> to vector<16x32xf32>
    %259 = vector.shape_cast %256 : vector<16x32xf32> to vector<1x1x16x32xf32>
    tpu.vector_store %arg5[%c0_239, %c13_240, %c0_241, %c0_242], %259 {strides = array<i32>} : memref<1x21x16x32xf32, #tpu.memory_space<vmem>>, vector<1x1x16x32xf32>,
    %260 = arith.addf %252, %256 : vector<16x32xf32>
    %c0_243 = arith.constant 0 : index
    %c14_244 = arith.constant 14 : index
    %c0_245 = arith.constant 0 : index
    %c0_246 = arith.constant 0 : index
    %261 = vector.load %arg5[%c0_243, %c14_244, %c0_245, %c0_246] : memref<1x21x16x32xf32, #tpu.memory_space<vmem>>, vector<1x1x16x32xf32>
    %262 = vector.shape_cast %261 : vector<1x1x16x32xf32> to vector<16x32xf32>
    %263 = arith.subf %262, %149 : vector<16x32xf32>
    %264 = math.exp %263 : vector<16x32xf32>
    %c0_247 = arith.constant 0 : index
    %c14_248 = arith.constant 14 : index
    %c0_249 = arith.constant 0 : index
    %c0_250 = arith.constant 0 : index
    %265 = vector.load %arg5[%c0_247, %c14_248, %c0_249, %c0_250] : memref<1x21x16x32xf32, #tpu.memory_space<vmem>>, vector<1x1x16x32xf32>
    %266 = vector.shape_cast %265 : vector<1x1x16x32xf32> to vector<16x32xf32>
    %267 = vector.shape_cast %264 : vector<16x32xf32> to vector<1x1x16x32xf32>
    tpu.vector_store %arg5[%c0_247, %c14_248, %c0_249, %c0_250], %267 {strides = array<i32>} : memref<1x21x16x32xf32, #tpu.memory_space<vmem>>, vector<1x1x16x32xf32>,
    %268 = arith.addf %260, %264 : vector<16x32xf32>
    %c0_251 = arith.constant 0 : index
    %c15_252 = arith.constant 15 : index
    %c0_253 = arith.constant 0 : index
    %c0_254 = arith.constant 0 : index
    %269 = vector.load %arg5[%c0_251, %c15_252, %c0_253, %c0_254] : memref<1x21x16x32xf32, #tpu.memory_space<vmem>>, vector<1x1x16x32xf32>
    %270 = vector.shape_cast %269 : vector<1x1x16x32xf32> to vector<16x32xf32>
    %271 = arith.subf %270, %149 : vector<16x32xf32>
    %272 = math.exp %271 : vector<16x32xf32>
    %c0_255 = arith.constant 0 : index
    %c15_256 = arith.constant 15 : index
    %c0_257 = arith.constant 0 : index
    %c0_258 = arith.constant 0 : index
    %273 = vector.load %arg5[%c0_255, %c15_256, %c0_257, %c0_258] : memref<1x21x16x32xf32, #tpu.memory_space<vmem>>, vector<1x1x16x32xf32>
    %274 = vector.shape_cast %273 : vector<1x1x16x32xf32> to vector<16x32xf32>
    %275 = vector.shape_cast %272 : vector<16x32xf32> to vector<1x1x16x32xf32>
    tpu.vector_store %arg5[%c0_255, %c15_256, %c0_257, %c0_258], %275 {strides = array<i32>} : memref<1x21x16x32xf32, #tpu.memory_space<vmem>>, vector<1x1x16x32xf32>,
    %276 = arith.addf %268, %272 : vector<16x32xf32>
    %c0_259 = arith.constant 0 : index
    %c16_260 = arith.constant 16 : index
    %c0_261 = arith.constant 0 : index
    %c0_262 = arith.constant 0 : index
    %277 = vector.load %arg5[%c0_259, %c16_260, %c0_261, %c0_262] : memref<1x21x16x32xf32, #tpu.memory_space<vmem>>, vector<1x1x16x32xf32>
    %278 = vector.shape_cast %277 : vector<1x1x16x32xf32> to vector<16x32xf32>
    %279 = arith.subf %278, %149 : vector<16x32xf32>
    %280 = math.exp %279 : vector<16x32xf32>
    %c0_263 = arith.constant 0 : index
    %c16_264 = arith.constant 16 : index
    %c0_265 = arith.constant 0 : index
    %c0_266 = arith.constant 0 : index
    %281 = vector.load %arg5[%c0_263, %c16_264, %c0_265, %c0_266] : memref<1x21x16x32xf32, #tpu.memory_space<vmem>>, vector<1x1x16x32xf32>
    %282 = vector.shape_cast %281 : vector<1x1x16x32xf32> to vector<16x32xf32>
    %283 = vector.shape_cast %280 : vector<16x32xf32> to vector<1x1x16x32xf32>
    tpu.vector_store %arg5[%c0_263, %c16_264, %c0_265, %c0_266], %283 {strides = array<i32>} : memref<1x21x16x32xf32, #tpu.memory_space<vmem>>, vector<1x1x16x32xf32>,
    %284 = arith.addf %276, %280 : vector<16x32xf32>
    %c0_267 = arith.constant 0 : index
    %c17_268 = arith.constant 17 : index
    %c0_269 = arith.constant 0 : index
    %c0_270 = arith.constant 0 : index
    %285 = vector.load %arg5[%c0_267, %c17_268, %c0_269, %c0_270] : memref<1x21x16x32xf32, #tpu.memory_space<vmem>>, vector<1x1x16x32xf32>
    %286 = vector.shape_cast %285 : vector<1x1x16x32xf32> to vector<16x32xf32>
    %287 = arith.subf %286, %149 : vector<16x32xf32>
    %288 = math.exp %287 : vector<16x32xf32>
    %c0_271 = arith.constant 0 : index
    %c17_272 = arith.constant 17 : index
    %c0_273 = arith.constant 0 : index
    %c0_274 = arith.constant 0 : index
    %289 = vector.load %arg5[%c0_271, %c17_272, %c0_273, %c0_274] : memref<1x21x16x32xf32, #tpu.memory_space<vmem>>, vector<1x1x16x32xf32>
    %290 = vector.shape_cast %289 : vector<1x1x16x32xf32> to vector<16x32xf32>
    %291 = vector.shape_cast %288 : vector<16x32xf32> to vector<1x1x16x32xf32>
    tpu.vector_store %arg5[%c0_271, %c17_272, %c0_273, %c0_274], %291 {strides = array<i32>} : memref<1x21x16x32xf32, #tpu.memory_space<vmem>>, vector<1x1x16x32xf32>,
    %292 = arith.addf %284, %288 : vector<16x32xf32>
    %c0_275 = arith.constant 0 : index
    %c18_276 = arith.constant 18 : index
    %c0_277 = arith.constant 0 : index
    %c0_278 = arith.constant 0 : index
    %293 = vector.load %arg5[%c0_275, %c18_276, %c0_277, %c0_278] : memref<1x21x16x32xf32, #tpu.memory_space<vmem>>, vector<1x1x16x32xf32>
    %294 = vector.shape_cast %293 : vector<1x1x16x32xf32> to vector<16x32xf32>
    %295 = arith.subf %294, %149 : vector<16x32xf32>
    %296 = math.exp %295 : vector<16x32xf32>
    %c0_279 = arith.constant 0 : index
    %c18_280 = arith.constant 18 : index
    %c0_281 = arith.constant 0 : index
    %c0_282 = arith.constant 0 : index
    %297 = vector.load %arg5[%c0_279, %c18_280, %c0_281, %c0_282] : memref<1x21x16x32xf32, #tpu.memory_space<vmem>>, vector<1x1x16x32xf32>
    %298 = vector.shape_cast %297 : vector<1x1x16x32xf32> to vector<16x32xf32>
    %299 = vector.shape_cast %296 : vector<16x32xf32> to vector<1x1x16x32xf32>
    tpu.vector_store %arg5[%c0_279, %c18_280, %c0_281, %c0_282], %299 {strides = array<i32>} : memref<1x21x16x32xf32, #tpu.memory_space<vmem>>, vector<1x1x16x32xf32>,
    %300 = arith.addf %292, %296 : vector<16x32xf32>
    %c0_283 = arith.constant 0 : index
    %c19_284 = arith.constant 19 : index
    %c0_285 = arith.constant 0 : index
    %c0_286 = arith.constant 0 : index
    %301 = vector.load %arg5[%c0_283, %c19_284, %c0_285, %c0_286] : memref<1x21x16x32xf32, #tpu.memory_space<vmem>>, vector<1x1x16x32xf32>
    %302 = vector.shape_cast %301 : vector<1x1x16x32xf32> to vector<16x32xf32>
    %303 = arith.subf %302, %149 : vector<16x32xf32>
    %304 = math.exp %303 : vector<16x32xf32>
    %c0_287 = arith.constant 0 : index
    %c19_288 = arith.constant 19 : index
    %c0_289 = arith.constant 0 : index
    %c0_290 = arith.constant 0 : index
    %305 = vector.load %arg5[%c0_287, %c19_288, %c0_289, %c0_290] : memref<1x21x16x32xf32, #tpu.memory_space<vmem>>, vector<1x1x16x32xf32>
    %306 = vector.shape_cast %305 : vector<1x1x16x32xf32> to vector<16x32xf32>
    %307 = vector.shape_cast %304 : vector<16x32xf32> to vector<1x1x16x32xf32>
    tpu.vector_store %arg5[%c0_287, %c19_288, %c0_289, %c0_290], %307 {strides = array<i32>} : memref<1x21x16x32xf32, #tpu.memory_space<vmem>>, vector<1x1x16x32xf32>,
    %308 = arith.addf %300, %304 : vector<16x32xf32>
    %c0_291 = arith.constant 0 : index
    %c20_292 = arith.constant 20 : index
    %c0_293 = arith.constant 0 : index
    %c0_294 = arith.constant 0 : index
    %309 = vector.load %arg5[%c0_291, %c20_292, %c0_293, %c0_294] : memref<1x21x16x32xf32, #tpu.memory_space<vmem>>, vector<1x1x16x32xf32>
    %310 = vector.shape_cast %309 : vector<1x1x16x32xf32> to vector<16x32xf32>
    %311 = arith.subf %310, %149 : vector<16x32xf32>
    %312 = math.exp %311 : vector<16x32xf32>
    %c0_295 = arith.constant 0 : index
    %c20_296 = arith.constant 20 : index
    %c0_297 = arith.constant 0 : index
    %c0_298 = arith.constant 0 : index
    %313 = vector.load %arg5[%c0_295, %c20_296, %c0_297, %c0_298] : memref<1x21x16x32xf32, #tpu.memory_space<vmem>>, vector<1x1x16x32xf32>
    %314 = vector.shape_cast %313 : vector<1x1x16x32xf32> to vector<16x32xf32>
    %315 = vector.shape_cast %312 : vector<16x32xf32> to vector<1x1x16x32xf32>
    tpu.vector_store %arg5[%c0_295, %c20_296, %c0_297, %c0_298], %315 {strides = array<i32>} : memref<1x21x16x32xf32, #tpu.memory_space<vmem>>, vector<1x1x16x32xf32>,
    %316 = arith.addf %308, %312 : vector<16x32xf32>
    %317 = tpu.reciprocal %316 {approx = true} : vector<16x32xf32> -> vector<16x32xf32>
    %c0_299 = arith.constant 0 : index
    %c0_300 = arith.constant 0 : index
    %c0_301 = arith.constant 0 : index
    %c0_302 = arith.constant 0 : index
    %318 = vector.load %arg5[%c0_299, %c0_300, %c0_301, %c0_302] : memref<1x21x16x32xf32, #tpu.memory_space<vmem>>, vector<1x1x16x32xf32>
    %319 = vector.shape_cast %318 : vector<1x1x16x32xf32> to vector<16x32xf32>
    %320 = arith.mulf %319, %317 : vector<16x32xf32>
    %c0_303 = arith.constant 0 : index
    %c0_304 = arith.constant 0 : index
    %c0_305 = arith.constant 0 : index
    %c0_306 = arith.constant 0 : index
    %321 = vector.load %arg5[%c0_303, %c0_304, %c0_305, %c0_306] : memref<1x21x16x32xf32, #tpu.memory_space<vmem>>, vector<1x1x16x32xf32>
    %322 = vector.shape_cast %321 : vector<1x1x16x32xf32> to vector<16x32xf32>
    %323 = vector.shape_cast %320 : vector<16x32xf32> to vector<1x1x16x32xf32>
    tpu.vector_store %arg5[%c0_303, %c0_304, %c0_305, %c0_306], %323 {strides = array<i32>} : memref<1x21x16x32xf32, #tpu.memory_space<vmem>>, vector<1x1x16x32xf32>,
    %c0_307 = arith.constant 0 : index
    %c1_308 = arith.constant 1 : index
    %c0_309 = arith.constant 0 : index
    %c0_310 = arith.constant 0 : index
    %324 = vector.load %arg5[%c0_307, %c1_308, %c0_309, %c0_310] : memref<1x21x16x32xf32, #tpu.memory_space<vmem>>, vector<1x1x16x32xf32>
    %325 = vector.shape_cast %324 : vector<1x1x16x32xf32> to vector<16x32xf32>
    %326 = arith.mulf %325, %317 : vector<16x32xf32>
    %c0_311 = arith.constant 0 : index
    %c1_312 = arith.constant 1 : index
    %c0_313 = arith.constant 0 : index
    %c0_314 = arith.constant 0 : index
    %327 = vector.load %arg5[%c0_311, %c1_312, %c0_313, %c0_314] : memref<1x21x16x32xf32, #tpu.memory_space<vmem>>, vector<1x1x16x32xf32>
    %328 = vector.shape_cast %327 : vector<1x1x16x32xf32> to vector<16x32xf32>
    %329 = vector.shape_cast %326 : vector<16x32xf32> to vector<1x1x16x32xf32>
    tpu.vector_store %arg5[%c0_311, %c1_312, %c0_313, %c0_314], %329 {strides = array<i32>} : memref<1x21x16x32xf32, #tpu.memory_space<vmem>>, vector<1x1x16x32xf32>,
    %c0_315 = arith.constant 0 : index
    %c2_316 = arith.constant 2 : index
    %c0_317 = arith.constant 0 : index
    %c0_318 = arith.constant 0 : index
    %330 = vector.load %arg5[%c0_315, %c2_316, %c0_317, %c0_318] : memref<1x21x16x32xf32, #tpu.memory_space<vmem>>, vector<1x1x16x32xf32>
    %331 = vector.shape_cast %330 : vector<1x1x16x32xf32> to vector<16x32xf32>
    %332 = arith.mulf %331, %317 : vector<16x32xf32>
    %c0_319 = arith.constant 0 : index
    %c2_320 = arith.constant 2 : index
    %c0_321 = arith.constant 0 : index
    %c0_322 = arith.constant 0 : index
    %333 = vector.load %arg5[%c0_319, %c2_320, %c0_321, %c0_322] : memref<1x21x16x32xf32, #tpu.memory_space<vmem>>, vector<1x1x16x32xf32>
    %334 = vector.shape_cast %333 : vector<1x1x16x32xf32> to vector<16x32xf32>
    %335 = vector.shape_cast %332 : vector<16x32xf32> to vector<1x1x16x32xf32>
    tpu.vector_store %arg5[%c0_319, %c2_320, %c0_321, %c0_322], %335 {strides = array<i32>} : memref<1x21x16x32xf32, #tpu.memory_space<vmem>>, vector<1x1x16x32xf32>,
    %c0_323 = arith.constant 0 : index
    %c3_324 = arith.constant 3 : index
    %c0_325 = arith.constant 0 : index
    %c0_326 = arith.constant 0 : index
    %336 = vector.load %arg5[%c0_323, %c3_324, %c0_325, %c0_326] : memref<1x21x16x32xf32, #tpu.memory_space<vmem>>, vector<1x1x16x32xf32>
    %337 = vector.shape_cast %336 : vector<1x1x16x32xf32> to vector<16x32xf32>
    %338 = arith.mulf %337, %317 : vector<16x32xf32>
    %c0_327 = arith.constant 0 : index
    %c3_328 = arith.constant 3 : index
    %c0_329 = arith.constant 0 : index
    %c0_330 = arith.constant 0 : index
    %339 = vector.load %arg5[%c0_327, %c3_328, %c0_329, %c0_330] : memref<1x21x16x32xf32, #tpu.memory_space<vmem>>, vector<1x1x16x32xf32>
    %340 = vector.shape_cast %339 : vector<1x1x16x32xf32> to vector<16x32xf32>
    %341 = vector.shape_cast %338 : vector<16x32xf32> to vector<1x1x16x32xf32>
    tpu.vector_store %arg5[%c0_327, %c3_328, %c0_329, %c0_330], %341 {strides = array<i32>} : memref<1x21x16x32xf32, #tpu.memory_space<vmem>>, vector<1x1x16x32xf32>,
    %c0_331 = arith.constant 0 : index
    %c4_332 = arith.constant 4 : index
    %c0_333 = arith.constant 0 : index
    %c0_334 = arith.constant 0 : index
    %342 = vector.load %arg5[%c0_331, %c4_332, %c0_333, %c0_334] : memref<1x21x16x32xf32, #tpu.memory_space<vmem>>, vector<1x1x16x32xf32>
    %343 = vector.shape_cast %342 : vector<1x1x16x32xf32> to vector<16x32xf32>
    %344 = arith.mulf %343, %317 : vector<16x32xf32>
    %c0_335 = arith.constant 0 : index
    %c4_336 = arith.constant 4 : index
    %c0_337 = arith.constant 0 : index
    %c0_338 = arith.constant 0 : index
    %345 = vector.load %arg5[%c0_335, %c4_336, %c0_337, %c0_338] : memref<1x21x16x32xf32, #tpu.memory_space<vmem>>, vector<1x1x16x32xf32>
    %346 = vector.shape_cast %345 : vector<1x1x16x32xf32> to vector<16x32xf32>
    %347 = vector.shape_cast %344 : vector<16x32xf32> to vector<1x1x16x32xf32>
    tpu.vector_store %arg5[%c0_335, %c4_336, %c0_337, %c0_338], %347 {strides = array<i32>} : memref<1x21x16x32xf32, #tpu.memory_space<vmem>>, vector<1x1x16x32xf32>,
    %c0_339 = arith.constant 0 : index
    %c5_340 = arith.constant 5 : index
    %c0_341 = arith.constant 0 : index
    %c0_342 = arith.constant 0 : index
    %348 = vector.load %arg5[%c0_339, %c5_340, %c0_341, %c0_342] : memref<1x21x16x32xf32, #tpu.memory_space<vmem>>, vector<1x1x16x32xf32>
    %349 = vector.shape_cast %348 : vector<1x1x16x32xf32> to vector<16x32xf32>
    %350 = arith.mulf %349, %317 : vector<16x32xf32>
    %c0_343 = arith.constant 0 : index
    %c5_344 = arith.constant 5 : index
    %c0_345 = arith.constant 0 : index
    %c0_346 = arith.constant 0 : index
    %351 = vector.load %arg5[%c0_343, %c5_344, %c0_345, %c0_346] : memref<1x21x16x32xf32, #tpu.memory_space<vmem>>, vector<1x1x16x32xf32>
    %352 = vector.shape_cast %351 : vector<1x1x16x32xf32> to vector<16x32xf32>
    %353 = vector.shape_cast %350 : vector<16x32xf32> to vector<1x1x16x32xf32>
    tpu.vector_store %arg5[%c0_343, %c5_344, %c0_345, %c0_346], %353 {strides = array<i32>} : memref<1x21x16x32xf32, #tpu.memory_space<vmem>>, vector<1x1x16x32xf32>,
    %c0_347 = arith.constant 0 : index
    %c6_348 = arith.constant 6 : index
    %c0_349 = arith.constant 0 : index
    %c0_350 = arith.constant 0 : index
    %354 = vector.load %arg5[%c0_347, %c6_348, %c0_349, %c0_350] : memref<1x21x16x32xf32, #tpu.memory_space<vmem>>, vector<1x1x16x32xf32>
    %355 = vector.shape_cast %354 : vector<1x1x16x32xf32> to vector<16x32xf32>
    %356 = arith.mulf %355, %317 : vector<16x32xf32>
    %c0_351 = arith.constant 0 : index
    %c6_352 = arith.constant 6 : index
    %c0_353 = arith.constant 0 : index
    %c0_354 = arith.constant 0 : index
    %357 = vector.load %arg5[%c0_351, %c6_352, %c0_353, %c0_354] : memref<1x21x16x32xf32, #tpu.memory_space<vmem>>, vector<1x1x16x32xf32>
    %358 = vector.shape_cast %357 : vector<1x1x16x32xf32> to vector<16x32xf32>
    %359 = vector.shape_cast %356 : vector<16x32xf32> to vector<1x1x16x32xf32>
    tpu.vector_store %arg5[%c0_351, %c6_352, %c0_353, %c0_354], %359 {strides = array<i32>} : memref<1x21x16x32xf32, #tpu.memory_space<vmem>>, vector<1x1x16x32xf32>,
    %c0_355 = arith.constant 0 : index
    %c7_356 = arith.constant 7 : index
    %c0_357 = arith.constant 0 : index
    %c0_358 = arith.constant 0 : index
    %360 = vector.load %arg5[%c0_355, %c7_356, %c0_357, %c0_358] : memref<1x21x16x32xf32, #tpu.memory_space<vmem>>, vector<1x1x16x32xf32>
    %361 = vector.shape_cast %360 : vector<1x1x16x32xf32> to vector<16x32xf32>
    %362 = arith.mulf %361, %317 : vector<16x32xf32>
    %c0_359 = arith.constant 0 : index
    %c7_360 = arith.constant 7 : index
    %c0_361 = arith.constant 0 : index
    %c0_362 = arith.constant 0 : index
    %363 = vector.load %arg5[%c0_359, %c7_360, %c0_361, %c0_362] : memref<1x21x16x32xf32, #tpu.memory_space<vmem>>, vector<1x1x16x32xf32>
    %364 = vector.shape_cast %363 : vector<1x1x16x32xf32> to vector<16x32xf32>
    %365 = vector.shape_cast %362 : vector<16x32xf32> to vector<1x1x16x32xf32>
    tpu.vector_store %arg5[%c0_359, %c7_360, %c0_361, %c0_362], %365 {strides = array<i32>} : memref<1x21x16x32xf32, #tpu.memory_space<vmem>>, vector<1x1x16x32xf32>,
    %c0_363 = arith.constant 0 : index
    %c8_364 = arith.constant 8 : index
    %c0_365 = arith.constant 0 : index
    %c0_366 = arith.constant 0 : index
    %366 = vector.load %arg5[%c0_363, %c8_364, %c0_365, %c0_366] : memref<1x21x16x32xf32, #tpu.memory_space<vmem>>, vector<1x1x16x32xf32>
    %367 = vector.shape_cast %366 : vector<1x1x16x32xf32> to vector<16x32xf32>
    %368 = arith.mulf %367, %317 : vector<16x32xf32>
    %c0_367 = arith.constant 0 : index
    %c8_368 = arith.constant 8 : index
    %c0_369 = arith.constant 0 : index
    %c0_370 = arith.constant 0 : index
    %369 = vector.load %arg5[%c0_367, %c8_368, %c0_369, %c0_370] : memref<1x21x16x32xf32, #tpu.memory_space<vmem>>, vector<1x1x16x32xf32>
    %370 = vector.shape_cast %369 : vector<1x1x16x32xf32> to vector<16x32xf32>
    %371 = vector.shape_cast %368 : vector<16x32xf32> to vector<1x1x16x32xf32>
    tpu.vector_store %arg5[%c0_367, %c8_368, %c0_369, %c0_370], %371 {strides = array<i32>} : memref<1x21x16x32xf32, #tpu.memory_space<vmem>>, vector<1x1x16x32xf32>,
    %c0_371 = arith.constant 0 : index
    %c9_372 = arith.constant 9 : index
    %c0_373 = arith.constant 0 : index
    %c0_374 = arith.constant 0 : index
    %372 = vector.load %arg5[%c0_371, %c9_372, %c0_373, %c0_374] : memref<1x21x16x32xf32, #tpu.memory_space<vmem>>, vector<1x1x16x32xf32>
    %373 = vector.shape_cast %372 : vector<1x1x16x32xf32> to vector<16x32xf32>
    %374 = arith.mulf %373, %317 : vector<16x32xf32>
    %c0_375 = arith.constant 0 : index
    %c9_376 = arith.constant 9 : index
    %c0_377 = arith.constant 0 : index
    %c0_378 = arith.constant 0 : index
    %375 = vector.load %arg5[%c0_375, %c9_376, %c0_377, %c0_378] : memref<1x21x16x32xf32, #tpu.memory_space<vmem>>, vector<1x1x16x32xf32>
    %376 = vector.shape_cast %375 : vector<1x1x16x32xf32> to vector<16x32xf32>
    %377 = vector.shape_cast %374 : vector<16x32xf32> to vector<1x1x16x32xf32>
    tpu.vector_store %arg5[%c0_375, %c9_376, %c0_377, %c0_378], %377 {strides = array<i32>} : memref<1x21x16x32xf32, #tpu.memory_space<vmem>>, vector<1x1x16x32xf32>,
    %c0_379 = arith.constant 0 : index
    %c10_380 = arith.constant 10 : index
    %c0_381 = arith.constant 0 : index
    %c0_382 = arith.constant 0 : index
    %378 = vector.load %arg5[%c0_379, %c10_380, %c0_381, %c0_382] : memref<1x21x16x32xf32, #tpu.memory_space<vmem>>, vector<1x1x16x32xf32>
    %379 = vector.shape_cast %378 : vector<1x1x16x32xf32> to vector<16x32xf32>
    %380 = arith.mulf %379, %317 : vector<16x32xf32>
    %c0_383 = arith.constant 0 : index
    %c10_384 = arith.constant 10 : index
    %c0_385 = arith.constant 0 : index
    %c0_386 = arith.constant 0 : index
    %381 = vector.load %arg5[%c0_383, %c10_384, %c0_385, %c0_386] : memref<1x21x16x32xf32, #tpu.memory_space<vmem>>, vector<1x1x16x32xf32>
    %382 = vector.shape_cast %381 : vector<1x1x16x32xf32> to vector<16x32xf32>
    %383 = vector.shape_cast %380 : vector<16x32xf32> to vector<1x1x16x32xf32>
    tpu.vector_store %arg5[%c0_383, %c10_384, %c0_385, %c0_386], %383 {strides = array<i32>} : memref<1x21x16x32xf32, #tpu.memory_space<vmem>>, vector<1x1x16x32xf32>,
    %c0_387 = arith.constant 0 : index
    %c11_388 = arith.constant 11 : index
    %c0_389 = arith.constant 0 : index
    %c0_390 = arith.constant 0 : index
    %384 = vector.load %arg5[%c0_387, %c11_388, %c0_389, %c0_390] : memref<1x21x16x32xf32, #tpu.memory_space<vmem>>, vector<1x1x16x32xf32>
    %385 = vector.shape_cast %384 : vector<1x1x16x32xf32> to vector<16x32xf32>
    %386 = arith.mulf %385, %317 : vector<16x32xf32>
    %c0_391 = arith.constant 0 : index
    %c11_392 = arith.constant 11 : index
    %c0_393 = arith.constant 0 : index
    %c0_394 = arith.constant 0 : index
    %387 = vector.load %arg5[%c0_391, %c11_392, %c0_393, %c0_394] : memref<1x21x16x32xf32, #tpu.memory_space<vmem>>, vector<1x1x16x32xf32>
    %388 = vector.shape_cast %387 : vector<1x1x16x32xf32> to vector<16x32xf32>
    %389 = vector.shape_cast %386 : vector<16x32xf32> to vector<1x1x16x32xf32>
    tpu.vector_store %arg5[%c0_391, %c11_392, %c0_393, %c0_394], %389 {strides = array<i32>} : memref<1x21x16x32xf32, #tpu.memory_space<vmem>>, vector<1x1x16x32xf32>,
    %c0_395 = arith.constant 0 : index
    %c12_396 = arith.constant 12 : index
    %c0_397 = arith.constant 0 : index
    %c0_398 = arith.constant 0 : index
    %390 = vector.load %arg5[%c0_395, %c12_396, %c0_397, %c0_398] : memref<1x21x16x32xf32, #tpu.memory_space<vmem>>, vector<1x1x16x32xf32>
    %391 = vector.shape_cast %390 : vector<1x1x16x32xf32> to vector<16x32xf32>
    %392 = arith.mulf %391, %317 : vector<16x32xf32>
    %c0_399 = arith.constant 0 : index
    %c12_400 = arith.constant 12 : index
    %c0_401 = arith.constant 0 : index
    %c0_402 = arith.constant 0 : index
    %393 = vector.load %arg5[%c0_399, %c12_400, %c0_401, %c0_402] : memref<1x21x16x32xf32, #tpu.memory_space<vmem>>, vector<1x1x16x32xf32>
    %394 = vector.shape_cast %393 : vector<1x1x16x32xf32> to vector<16x32xf32>
    %395 = vector.shape_cast %392 : vector<16x32xf32> to vector<1x1x16x32xf32>
    tpu.vector_store %arg5[%c0_399, %c12_400, %c0_401, %c0_402], %395 {strides = array<i32>} : memref<1x21x16x32xf32, #tpu.memory_space<vmem>>, vector<1x1x16x32xf32>,
    %c0_403 = arith.constant 0 : index
    %c13_404 = arith.constant 13 : index
    %c0_405 = arith.constant 0 : index
    %c0_406 = arith.constant 0 : index
    %396 = vector.load %arg5[%c0_403, %c13_404, %c0_405, %c0_406] : memref<1x21x16x32xf32, #tpu.memory_space<vmem>>, vector<1x1x16x32xf32>
    %397 = vector.shape_cast %396 : vector<1x1x16x32xf32> to vector<16x32xf32>
    %398 = arith.mulf %397, %317 : vector<16x32xf32>
    %c0_407 = arith.constant 0 : index
    %c13_408 = arith.constant 13 : index
    %c0_409 = arith.constant 0 : index
    %c0_410 = arith.constant 0 : index
    %399 = vector.load %arg5[%c0_407, %c13_408, %c0_409, %c0_410] : memref<1x21x16x32xf32, #tpu.memory_space<vmem>>, vector<1x1x16x32xf32>
    %400 = vector.shape_cast %399 : vector<1x1x16x32xf32> to vector<16x32xf32>
    %401 = vector.shape_cast %398 : vector<16x32xf32> to vector<1x1x16x32xf32>
    tpu.vector_store %arg5[%c0_407, %c13_408, %c0_409, %c0_410], %401 {strides = array<i32>} : memref<1x21x16x32xf32, #tpu.memory_space<vmem>>, vector<1x1x16x32xf32>,
    %c0_411 = arith.constant 0 : index
    %c14_412 = arith.constant 14 : index
    %c0_413 = arith.constant 0 : index
    %c0_414 = arith.constant 0 : index
    %402 = vector.load %arg5[%c0_411, %c14_412, %c0_413, %c0_414] : memref<1x21x16x32xf32, #tpu.memory_space<vmem>>, vector<1x1x16x32xf32>
    %403 = vector.shape_cast %402 : vector<1x1x16x32xf32> to vector<16x32xf32>
    %404 = arith.mulf %403, %317 : vector<16x32xf32>
    %c0_415 = arith.constant 0 : index
    %c14_416 = arith.constant 14 : index
    %c0_417 = arith.constant 0 : index
    %c0_418 = arith.constant 0 : index
    %405 = vector.load %arg5[%c0_415, %c14_416, %c0_417, %c0_418] : memref<1x21x16x32xf32, #tpu.memory_space<vmem>>, vector<1x1x16x32xf32>
    %406 = vector.shape_cast %405 : vector<1x1x16x32xf32> to vector<16x32xf32>
    %407 = vector.shape_cast %404 : vector<16x32xf32> to vector<1x1x16x32xf32>
    tpu.vector_store %arg5[%c0_415, %c14_416, %c0_417, %c0_418], %407 {strides = array<i32>} : memref<1x21x16x32xf32, #tpu.memory_space<vmem>>, vector<1x1x16x32xf32>,
    %c0_419 = arith.constant 0 : index
    %c15_420 = arith.constant 15 : index
    %c0_421 = arith.constant 0 : index
    %c0_422 = arith.constant 0 : index
    %408 = vector.load %arg5[%c0_419, %c15_420, %c0_421, %c0_422] : memref<1x21x16x32xf32, #tpu.memory_space<vmem>>, vector<1x1x16x32xf32>
    %409 = vector.shape_cast %408 : vector<1x1x16x32xf32> to vector<16x32xf32>
    %410 = arith.mulf %409, %317 : vector<16x32xf32>
    %c0_423 = arith.constant 0 : index
    %c15_424 = arith.constant 15 : index
    %c0_425 = arith.constant 0 : index
    %c0_426 = arith.constant 0 : index
    %411 = vector.load %arg5[%c0_423, %c15_424, %c0_425, %c0_426] : memref<1x21x16x32xf32, #tpu.memory_space<vmem>>, vector<1x1x16x32xf32>
    %412 = vector.shape_cast %411 : vector<1x1x16x32xf32> to vector<16x32xf32>
    %413 = vector.shape_cast %410 : vector<16x32xf32> to vector<1x1x16x32xf32>
    tpu.vector_store %arg5[%c0_423, %c15_424, %c0_425, %c0_426], %413 {strides = array<i32>} : memref<1x21x16x32xf32, #tpu.memory_space<vmem>>, vector<1x1x16x32xf32>,
    %c0_427 = arith.constant 0 : index
    %c16_428 = arith.constant 16 : index
    %c0_429 = arith.constant 0 : index
    %c0_430 = arith.constant 0 : index
    %414 = vector.load %arg5[%c0_427, %c16_428, %c0_429, %c0_430] : memref<1x21x16x32xf32, #tpu.memory_space<vmem>>, vector<1x1x16x32xf32>
    %415 = vector.shape_cast %414 : vector<1x1x16x32xf32> to vector<16x32xf32>
    %416 = arith.mulf %415, %317 : vector<16x32xf32>
    %c0_431 = arith.constant 0 : index
    %c16_432 = arith.constant 16 : index
    %c0_433 = arith.constant 0 : index
    %c0_434 = arith.constant 0 : index
    %417 = vector.load %arg5[%c0_431, %c16_432, %c0_433, %c0_434] : memref<1x21x16x32xf32, #tpu.memory_space<vmem>>, vector<1x1x16x32xf32>
    %418 = vector.shape_cast %417 : vector<1x1x16x32xf32> to vector<16x32xf32>
    %419 = vector.shape_cast %416 : vector<16x32xf32> to vector<1x1x16x32xf32>
    tpu.vector_store %arg5[%c0_431, %c16_432, %c0_433, %c0_434], %419 {strides = array<i32>} : memref<1x21x16x32xf32, #tpu.memory_space<vmem>>, vector<1x1x16x32xf32>,
    %c0_435 = arith.constant 0 : index
    %c17_436 = arith.constant 17 : index
    %c0_437 = arith.constant 0 : index
    %c0_438 = arith.constant 0 : index
    %420 = vector.load %arg5[%c0_435, %c17_436, %c0_437, %c0_438] : memref<1x21x16x32xf32, #tpu.memory_space<vmem>>, vector<1x1x16x32xf32>
    %421 = vector.shape_cast %420 : vector<1x1x16x32xf32> to vector<16x32xf32>
    %422 = arith.mulf %421, %317 : vector<16x32xf32>
    %c0_439 = arith.constant 0 : index
    %c17_440 = arith.constant 17 : index
    %c0_441 = arith.constant 0 : index
    %c0_442 = arith.constant 0 : index
    %423 = vector.load %arg5[%c0_439, %c17_440, %c0_441, %c0_442] : memref<1x21x16x32xf32, #tpu.memory_space<vmem>>, vector<1x1x16x32xf32>
    %424 = vector.shape_cast %423 : vector<1x1x16x32xf32> to vector<16x32xf32>
    %425 = vector.shape_cast %422 : vector<16x32xf32> to vector<1x1x16x32xf32>
    tpu.vector_store %arg5[%c0_439, %c17_440, %c0_441, %c0_442], %425 {strides = array<i32>} : memref<1x21x16x32xf32, #tpu.memory_space<vmem>>, vector<1x1x16x32xf32>,
    %c0_443 = arith.constant 0 : index
    %c18_444 = arith.constant 18 : index
    %c0_445 = arith.constant 0 : index
    %c0_446 = arith.constant 0 : index
    %426 = vector.load %arg5[%c0_443, %c18_444, %c0_445, %c0_446] : memref<1x21x16x32xf32, #tpu.memory_space<vmem>>, vector<1x1x16x32xf32>
    %427 = vector.shape_cast %426 : vector<1x1x16x32xf32> to vector<16x32xf32>
    %428 = arith.mulf %427, %317 : vector<16x32xf32>
    %c0_447 = arith.constant 0 : index
    %c18_448 = arith.constant 18 : index
    %c0_449 = arith.constant 0 : index
    %c0_450 = arith.constant 0 : index
    %429 = vector.load %arg5[%c0_447, %c18_448, %c0_449, %c0_450] : memref<1x21x16x32xf32, #tpu.memory_space<vmem>>, vector<1x1x16x32xf32>
    %430 = vector.shape_cast %429 : vector<1x1x16x32xf32> to vector<16x32xf32>
    %431 = vector.shape_cast %428 : vector<16x32xf32> to vector<1x1x16x32xf32>
    tpu.vector_store %arg5[%c0_447, %c18_448, %c0_449, %c0_450], %431 {strides = array<i32>} : memref<1x21x16x32xf32, #tpu.memory_space<vmem>>, vector<1x1x16x32xf32>,
    %c0_451 = arith.constant 0 : index
    %c19_452 = arith.constant 19 : index
    %c0_453 = arith.constant 0 : index
    %c0_454 = arith.constant 0 : index
    %432 = vector.load %arg5[%c0_451, %c19_452, %c0_453, %c0_454] : memref<1x21x16x32xf32, #tpu.memory_space<vmem>>, vector<1x1x16x32xf32>
    %433 = vector.shape_cast %432 : vector<1x1x16x32xf32> to vector<16x32xf32>
    %434 = arith.mulf %433, %317 : vector<16x32xf32>
    %c0_455 = arith.constant 0 : index
    %c19_456 = arith.constant 19 : index
    %c0_457 = arith.constant 0 : index
    %c0_458 = arith.constant 0 : index
    %435 = vector.load %arg5[%c0_455, %c19_456, %c0_457, %c0_458] : memref<1x21x16x32xf32, #tpu.memory_space<vmem>>, vector<1x1x16x32xf32>
    %436 = vector.shape_cast %435 : vector<1x1x16x32xf32> to vector<16x32xf32>
    %437 = vector.shape_cast %434 : vector<16x32xf32> to vector<1x1x16x32xf32>
    tpu.vector_store %arg5[%c0_455, %c19_456, %c0_457, %c0_458], %437 {strides = array<i32>} : memref<1x21x16x32xf32, #tpu.memory_space<vmem>>, vector<1x1x16x32xf32>,
    %c0_459 = arith.constant 0 : index
    %c20_460 = arith.constant 20 : index
    %c0_461 = arith.constant 0 : index
    %c0_462 = arith.constant 0 : index
    %438 = vector.load %arg5[%c0_459, %c20_460, %c0_461, %c0_462] : memref<1x21x16x32xf32, #tpu.memory_space<vmem>>, vector<1x1x16x32xf32>
    %439 = vector.shape_cast %438 : vector<1x1x16x32xf32> to vector<16x32xf32>
    %440 = arith.mulf %439, %317 : vector<16x32xf32>
    %c0_463 = arith.constant 0 : index
    %c20_464 = arith.constant 20 : index
    %c0_465 = arith.constant 0 : index
    %c0_466 = arith.constant 0 : index
    %441 = vector.load %arg5[%c0_463, %c20_464, %c0_465, %c0_466] : memref<1x21x16x32xf32, #tpu.memory_space<vmem>>, vector<1x1x16x32xf32>
    %442 = vector.shape_cast %441 : vector<1x1x16x32xf32> to vector<16x32xf32>
    %443 = vector.shape_cast %440 : vector<16x32xf32> to vector<1x1x16x32xf32>
    tpu.vector_store %arg5[%c0_463, %c20_464, %c0_465, %c0_466], %443 {strides = array<i32>} : memref<1x21x16x32xf32, #tpu.memory_space<vmem>>, vector<1x1x16x32xf32>,
    return
  }
  func.func @transform_0(%arg0: i32, %arg1: i32) -> (i32, i32, i32) {
    %c0_i32 = arith.constant 0 : i32
    %c0_i32_0 = arith.constant 0 : i32
    %c0_i32_1 = arith.constant 0 : i32
    return %arg0, %c0_i32, %c0_i32_0 : i32, i32, i32
  }
  func.func @transform_1(%arg0: i32, %arg1: i32) -> (i32, i32) {
    %c0_i32 = arith.constant 0 : i32
    %c0_i32_0 = arith.constant 0 : i32
    return %arg1, %c0_i32 : i32, i32
  }
  func.func @transform_2(%arg0: i32, %arg1: i32) -> (i32, i32) {
    %c0_i32 = arith.constant 0 : i32
    %c0_i32_0 = arith.constant 0 : i32
    %c0_i32_1 = arith.constant 0 : i32
    return %c0_i32, %c0_i32_0 : i32, i32
  }
  func.func @transform_3(%arg0: i32, %arg1: i32) -> (i32, i32, i32, i32) {
    %c0_i32 = arith.constant 0 : i32
    %c0_i32_0 = arith.constant 0 : i32
    %c0_i32_1 = arith.constant 0 : i32
    return %arg0, %c0_i32, %arg1, %c0_i32_0 : i32, i32, i32, i32
  }
}

</mosaic_0001>

<llo_original>
// kernel: coco_deeplab_forward.3
$region0: #{coco_deeplab_forward.3}
  #allocation0 [shape = 'u32[]', space=smem, size = 0x4, offset = 0x4, fixed_abs, tag = 'smem constant byte address 0x4 - core index']
  #allocation1 [shape = 'u32[72,128]{1,0:T(1,128)}', space=vmem, size = 0x9000, scoped, tag = 'internal scratch']
  %s0 = inlined_call_operand.vmem [shape: bf16[512,32], index: 0, kind: input, shape index: {}]
  %s1 = inlined_call_operand.vmem [shape: bf16[32,16], index: 1, kind: input, shape index: {}]
  %s2 = inlined_call_operand.vmem [shape: f32[1,16], index: 2, kind: input, shape index: {}]
  %s3 = inlined_call_operand.vmem [shape: bf16[512,16], index: 3, kind: output, shape index: {}]
  %s4 = sld [smem:[#allocation0]]
  $region45: #{coco_deeplab_forward.3} parent=0
    _
  %s6 = ssub.s32 1, %s4
  %s7 = scalar_select 0, %s6, %s4
  loop: start=0, step=1, limit=4
  $region2: #{coco_deeplab_forward.3} parent=0 // loop_pre_header
    _
  $region3: #{coco_deeplab_forward.3} parent=0 // loop_header
    %s9 = sphi 0, %s13
    %p10 = scmp.ge.s32.totalorder %s9, 4
    %s19 = sphi 0, %s21
    %s22 = sphi 0, %s19
    %s23 = sphi 0, %s22
    %s39 = sphi 0, %s23
    %s43 = sphi 0, %s43
    %s45 = sphi 0, %s43
    %s46 = sphi 0, %s45
    %s60 = sphi 0, %s46
    %s64 = sphi 0, %s64
    %s66 = sphi 0, %s64
    %s67 = sphi 0, %s66
    %s81 = sphi 0, %s67
    %s87 = sphi 0, %s89
    %s90 = sphi 0, %s87
    %s91 = sphi 0, %s90
    %s107 = sphi 0, %s91
  $region4: #{coco_deeplab_forward.3} parent=0 // loop_header_branch
    %12 = sbr.rel (%p10) target = $region8
  $region5: #{coco_deeplab_forward.3} parent=0 // loop_body
    %s14 = ssub.s32 %s9, 1
    %s15 = ssub.s32 %s9, 2
    %s16 = sadd.s32 %s9, 1
    %s17 = ssub.s32 %s9, %s16
    %p18 = scmp.eq.s32.totalorder %s17, 0
    %s20 = sadd.s32 %s19, 1
    %s21 = scalar_select %p18, %s19, %s20
    %p24 = pneg %p18
    %p25 = scmp.eq.s32.totalorder %s9, 1
    %p26 = por %p24, %p25
    %p27 = scmp.ne.s32.totalorder %s19, %s22
    %p28 = scmp.eq.s32.totalorder %s9, 0
    %p29 = por %p27, %p28
    %p30 = scmp.ne.s32.totalorder %s19, %s22
    %p31 = scmp.eq.s32.totalorder %s14, 1
    %p32 = por %p30, %p31
    %p33 = scmp.ne.s32.totalorder %s22, %s23
    %p34 = scmp.eq.s32.totalorder %s14, 0
    %p35 = por %p33, %p34
    %p36 = scmp.ne.s32.totalorder %s22, %s23
    %p37 = scmp.eq.s32.totalorder %s15, 1
    %p38 = por %p36, %p37
    %p40 = scmp.ne.s32.totalorder %s23, %s39
    %p41 = scmp.eq.s32.totalorder %s15, 0
    %p42 = por %p40, %p41
    %s44 = sadd.s32 %s43, 1
    %p47 = scmp.eq.s32.totalorder %s9, 1
    %p48 = scmp.ne.s32.totalorder %s43, %s45
    %p49 = scmp.eq.s32.totalorder %s9, 0
    %p50 = por %p48, %p49
    %p51 = scmp.ne.s32.totalorder %s43, %s45
    %p52 = scmp.eq.s32.totalorder %s14, 1
    %p53 = por %p51, %p52
    %p54 = scmp.ne.s32.totalorder %s45, %s46
    %p55 = scmp.eq.s32.totalorder %s14, 0
    %p56 = por %p54, %p55
    %p57 = scmp.ne.s32.totalorder %s45, %s46
    %p58 = scmp.eq.s32.totalorder %s15, 1
    %p59 = por %p57, %p58
    %p61 = scmp.ne.s32.totalorder %s46, %s60
    %p62 = scmp.eq.s32.totalorder %s15, 0
    %p63 = por %p61, %p62
    %s65 = sadd.s32 %s64, 1
    %p68 = scmp.eq.s32.totalorder %s9, 1
    %p69 = scmp.ne.s32.totalorder %s64, %s66
    %p70 = scmp.eq.s32.totalorder %s9, 0
    %p71 = por %p69, %p70
    %p72 = scmp.ne.s32.totalorder %s64, %s66
    %p73 = scmp.eq.s32.totalorder %s14, 1
    %p74 = por %p72, %p73
    %p75 = scmp.ne.s32.totalorder %s66, %s67
    %p76 = scmp.eq.s32.totalorder %s14, 0
    %p77 = por %p75, %p76
    %p78 = scmp.ne.s32.totalorder %s66, %s67
    %p79 = scmp.eq.s32.totalorder %s15, 1
    %p80 = por %p78, %p79
    %p82 = scmp.ne.s32.totalorder %s67, %s81
    %p83 = scmp.eq.s32.totalorder %s15, 0
    %p84 = por %p82, %p83
    %s85 = ssub.s32 %s9, %s16
    %p86 = scmp.eq.s32.totalorder %s85, 0
    %s88 = sadd.s32 %s87, 1
    %s89 = scalar_select %p86, %s87, %s88
    %p92 = pneg %p86
    %p93 = scmp.eq.s32.totalorder %s9, 1
    %p94 = por %p92, %p93
    %p95 = scmp.ne.s32.totalorder %s87, %s90
    %p96 = scmp.eq.s32.totalorder %s9, 0
    %p97 = por %p95, %p96
    %p98 = scmp.ne.s32.totalorder %s87, %s90
    %p99 = scmp.eq.s32.totalorder %s14, 1
    %p100 = por %p98, %p99
    %p101 = scmp.ne.s32.totalorder %s90, %s91
    %p102 = scmp.eq.s32.totalorder %s14, 0
    %p103 = por %p101, %p102
    %p104 = scmp.ne.s32.totalorder %s90, %s91
    %p105 = scmp.eq.s32.totalorder %s15, 1
    %p106 = por %p104, %p105
    %p108 = scmp.ne.s32.totalorder %s91, %s107
    %p109 = scmp.eq.s32.totalorder %s15, 0
    %p110 = por %p108, %p109
    %p111 = scmp.le.s32.totalorder 1, %s9
    %p112 = scmp.lt.s32.totalorder %s9, 3
    %p113 = pnand %p111, %p112
    %p114 = pneg %p113
    // Predicated region
    $region9: #{coco_deeplab_forward.3} parent=5 // pred_check
      _
    $region10: #{coco_deeplab_forward.3} parent=5 // pred_check_branch
      %116 = sbr.rel (%p113) target = $region12
    $region11: #{coco_deeplab_forward.3} parent=5 // pred_region
      %s117 = ssub.s32 %s9, 1
      // Predicated region
      $region13: #{coco_deeplab_forward.3} parent=11 // pred_check
        %p118 = pneg %p56
      $region14: #{coco_deeplab_forward.3} parent=11 // pred_check_branch
        %120 = sbr.rel (%p118) target = $region16
      $region15: #{coco_deeplab_forward.3} parent=11 // pred_region
        _
      $region16: #{coco_deeplab_forward.3} parent=11 // pred_fallthru
        _
      // Predicated region
      $region17: #{coco_deeplab_forward.3} parent=11 // pred_check
        %p121 = pneg %p77
      $region18: #{coco_deeplab_forward.3} parent=11 // pred_check_branch
        %123 = sbr.rel (%p121) target = $region20
      $region19: #{coco_deeplab_forward.3} parent=11 // pred_region
        _
      $region20: #{coco_deeplab_forward.3} parent=11 // pred_fallthru
        _
    $region12: #{coco_deeplab_forward.3} parent=5 // pred_fallthru
      _
    %p124 = scmp.lt.s32.totalorder %s9, 2
    // Predicated region
    $region21: #{coco_deeplab_forward.3} parent=5 // pred_check
      %p125 = pneg %p124
    $region22: #{coco_deeplab_forward.3} parent=5 // pred_check_branch
      %127 = sbr.rel (%p125) target = $region24
    $region23: #{coco_deeplab_forward.3} parent=5 // pred_region
      // Predicated region
      $region25: #{coco_deeplab_forward.3} parent=23 // pred_check
        %p128 = pneg %p29
      $region26: #{coco_deeplab_forward.3} parent=23 // pred_check_branch
        %130 = sbr.rel (%p128) target = $region28
      $region27: #{coco_deeplab_forward.3} parent=23 // pred_region
        %s131 = smul.u32 32, %s9
        %p132 = scmp.lt.s32.totalorder %s131, 63
        %s133 = scalar_select %p132, %s131, 63
        %s134 = smul.addr %s133, 4
        %s135 = scalar_lea.vmem %s0, %s134
        %s136 = smul.u32 32, %s9
      $region28: #{coco_deeplab_forward.3} parent=23 // pred_fallthru
        _
    $region24: #{coco_deeplab_forward.3} parent=5 // pred_fallthru
      _
    %p137 = scmp.le.s32.totalorder 1, %s9
    %p138 = scmp.lt.s32.totalorder %s9, 3
    %p139 = pnand %p137, %p138
    %p140 = pneg %p139
    // Predicated region
    $region29: #{coco_deeplab_forward.3} parent=5 // pred_check
      _
    $region30: #{coco_deeplab_forward.3} parent=5 // pred_check_branch
      %142 = sbr.rel (%p139) target = $region32
    $region31: #{coco_deeplab_forward.3} parent=5 // pred_region
      %s143 = ssub.s32 %s9, 1
      %s144 = smul.u32 32, %s14
      %p145 = scmp.lt.s32.totalorder %s144, 63
      %s146 = scalar_select %p145, %s144, 63
      %s147 = smul.addr %s146, 4
      %s148 = scalar_lea.vmem %s0, %s147
      %p149 = pneg %p35
      %p150 = pneg %p32
      %p151 = pneg %p56
      %p152 = pneg %p53
      %p153 = pneg %p77
      %p154 = pneg %p74
      %p155 = pneg %p103
      %p156 = pneg %p100
      %s157 = smul.u32 32, %s14
      %p158 = scmp.lt.s32.totalorder %s157, 63
      %s159 = scalar_select %p158, %s157, 63
      %s160 = smul.addr %s159, 4
      %s161 = scalar_lea.vmem %s3, %s160
      %s162 = smul.u32 32, %s14
      %p163 = scmp.lt.s32.totalorder %s162, 63
      %s164 = scalar_select %p163, %s162, 63
      %s165 = smul.addr %s164, 4
      %s166 = scalar_lea.vmem %s0, %s165
      %s167 = smul.u32 32, %s14
      %s168 = smul.u32 32, %s14
      %p169 = scmp.lt.s32.totalorder %s168, 63
      %s170 = scalar_select %p169, %s168, 63
      %s171 = smul.addr %s170, 4
      %s172 = scalar_lea.vmem %s3, %s171
      %s173 = smul.u32 32, %s14
      %v175 = vld [vmem:[%s166] sm:$0xf]
      %v176 = vld [vmem:[%s166 + $0x4] sm:$0xf]
      %v177 = vld [vmem:[%s166 + $0x8] sm:$0xf]
      %v178 = vld [vmem:[%s166 + $0xc] sm:$0xf]
      %v179 = vld [vmem:[%s166 + $0x10] sm:$0xf]
      %v180 = vld [vmem:[%s166 + $0x14] sm:$0xf]
      %v181 = vld [vmem:[%s166 + $0x18] sm:$0xf]
      %v182 = vld [vmem:[%s166 + $0x1c] sm:$0xf]
      %v183 = vld [vmem:[%s166 + $0x20] sm:$0xf]
      %v184 = vld [vmem:[%s166 + $0x24] sm:$0xf]
      %v185 = vld [vmem:[%s166 + $0x28] sm:$0xf]
      %v186 = vld [vmem:[%s166 + $0x2c] sm:$0xf]
      %v187 = vld [vmem:[%s166 + $0x30] sm:$0xf]
      %v188 = vld [vmem:[%s166 + $0x34] sm:$0xf]
      %v189 = vld [vmem:[%s166 + $0x38] sm:$0xf]
      %v190 = vld [vmem:[%s166 + $0x3c] sm:$0xf]
      %v191 = vld [vmem:[%s166 + $0x40] sm:$0xf]
      %v192 = vld [vmem:[%s166 + $0x44] sm:$0xf]
      %v193 = vld [vmem:[%s166 + $0x48] sm:$0xf]
      %v194 = vld [vmem:[%s166 + $0x4c] sm:$0xf]
      %v195 = vld [vmem:[%s166 + $0x50] sm:$0xf]
      %v196 = vld [vmem:[%s166 + $0x54] sm:$0xf]
      %v197 = vld [vmem:[%s166 + $0x58] sm:$0xf]
      %v198 = vld [vmem:[%s166 + $0x5c] sm:$0xf]
      %v199 = vld [vmem:[%s166 + $0x60] sm:$0xf]
      %v200 = vld [vmem:[%s166 + $0x64] sm:$0xf]
      %v201 = vld [vmem:[%s166 + $0x68] sm:$0xf]
      %v202 = vld [vmem:[%s166 + $0x6c] sm:$0xf]
      %v203 = vld [vmem:[%s166 + $0x70] sm:$0xf]
      %v204 = vld [vmem:[%s166 + $0x74] sm:$0xf]
      %v205 = vld [vmem:[%s166 + $0x78] sm:$0xf]
      %v206 = vld [vmem:[%s166 + $0x7c] sm:$0xf]
      %v207 = vld [vmem:[%s1] sm:$0xf]
      %v208 = vld [vmem:[%s1 + $0x4] sm:$0xf]
      %v209 = vld [vmem:[%s1 + $0x8] sm:$0xf]
      %v210 = vld [vmem:[%s1 + $0xc] sm:$0xf]
      %v211 = vld [vmem:[%s2] sm:$0x1]
      %v213 = vperm.slane %v211, 0
      %v247 = vunpack.c.l.b16 %v175
      %v248 = vunpack.c.l.b16 %v176
      %v249 = vunpack.c.l.b16 %v177
      %v250 = vunpack.c.l.b16 %v178
      %v251 = vunpack.c.l.b16 %v179
      %v252 = vunpack.c.l.b16 %v180
      %v253 = vunpack.c.l.b16 %v181
      %v254 = vunpack.c.l.b16 %v182
      %v255 = vunpack.c.l.b16 %v183
      %v256 = vunpack.c.l.b16 %v184
      %v257 = vunpack.c.l.b16 %v185
      %v258 = vunpack.c.l.b16 %v186
      %v259 = vunpack.c.l.b16 %v187
      %v260 = vunpack.c.l.b16 %v188
      %v261 = vunpack.c.l.b16 %v189
      %v262 = vunpack.c.l.b16 %v190
      %v263 = vunpack.c.l.b16 %v191
      %v264 = vunpack.c.l.b16 %v192
      %v265 = vunpack.c.l.b16 %v193
      %v266 = vunpack.c.l.b16 %v194
      %v267 = vunpack.c.l.b16 %v195
      %v268 = vunpack.c.l.b16 %v196
      %v269 = vunpack.c.l.b16 %v197
      %v270 = vunpack.c.l.b16 %v198
      %v271 = vunpack.c.l.b16 %v199
      %v272 = vunpack.c.l.b16 %v200
      %v273 = vunpack.c.l.b16 %v201
      %v274 = vunpack.c.l.b16 %v202
      %v275 = vunpack.c.l.b16 %v203
      %v276 = vunpack.c.l.b16 %v204
      %v277 = vunpack.c.l.b16 %v205
      %v278 = vunpack.c.l.b16 %v206
      %v279 = vpack.c.b16 %v248, %v247
      %v280 = vpack.c.b16 %v250, %v249
      %v281 = vpack.c.b16 %v252, %v251
      %v282 = vpack.c.b16 %v254, %v253
      %v283 = vpack.c.b16 %v256, %v255
      %v284 = vpack.c.b16 %v258, %v257
      %v285 = vpack.c.b16 %v260, %v259
      %v286 = vpack.c.b16 %v262, %v261
      %v287 = vpack.c.b16 %v264, %v263
      %v288 = vpack.c.b16 %v266, %v265
      %v289 = vpack.c.b16 %v268, %v267
      %v290 = vpack.c.b16 %v270, %v269
      %v291 = vpack.c.b16 %v272, %v271
      %v292 = vpack.c.b16 %v274, %v273
      %v293 = vpack.c.b16 %v276, %v275
      %v294 = vpack.c.b16 %v278, %v277
      %v299 = vunpack.c.l.b16 %v207
      %v300 = vunpack.c.l.b16 %v208
      %v301 = vunpack.c.l.b16 %v209
      %v302 = vunpack.c.l.b16 %v210
      %v303 = vpack.c.b16 %v300, %v299
      %v304 = vpack.c.b16 %v302, %v301
      %vm307 = vcmask 261120
      %v309 = vsel %vm307, %v279, 0
      %v312 = vsel %vm307, %v280, 0
      %v315 = vsel %vm307, %v281, 0
      %v318 = vsel %vm307, %v282, 0
      %v321 = vsel %vm307, %v283, 0
      %v324 = vsel %vm307, %v284, 0
      %v327 = vsel %vm307, %v285, 0
      %v330 = vsel %vm307, %v286, 0
      %v333 = vsel %vm307, %v287, 0
      %v336 = vsel %vm307, %v288, 0
      %v339 = vsel %vm307, %v289, 0
      %v342 = vsel %vm307, %v290, 0
      %v345 = vsel %vm307, %v291, 0
      %v348 = vsel %vm307, %v292, 0
      %v351 = vsel %vm307, %v293, 0
      %v354 = vsel %vm307, %v294, 0
      %356 = vmatpush.bf16.msra.mxu0 0
      %357 = vmatpush.bf16.msra.mxu0 0
      %358 = vmatpush.bf16.msra.mxu0 0
      %359 = vmatpush.bf16.msra.mxu0 0
      %360 = vmatpush.bf16.msra.mxu0 0
      %361 = vmatpush.bf16.msra.mxu0 0
      %362 = vmatpush.bf16.msra.mxu0 %v304
      %363 = vmatpush.bf16.msra.mxu0 %v303
      %364 = vmatmul.bf16.gmra.mxu0 %v309
      %v365 = vpop.f32.mrf.mxu0
      %v366 = vadd.f32 %v213, %v365
      %v367 = vpop.f32.mrf.mxu0
      %v368 = vadd.f32 %v213, %v367
      %369 = vmatmul.bf16.gmra.mxu0 %v312
      %v370 = vpop.f32.mrf.mxu0
      %v371 = vadd.f32 %v213, %v370
      %v372 = vpop.f32.mrf.mxu0
      %v373 = vadd.f32 %v213, %v372
      %374 = vmatmul.bf16.gmra.mxu0 %v315
      %v375 = vpop.f32.mrf.mxu0
      %v376 = vadd.f32 %v213, %v375
      %v377 = vpop.f32.mrf.mxu0
      %v378 = vadd.f32 %v213, %v377
      %379 = vmatmul.bf16.gmra.mxu0 %v318
      %v380 = vpop.f32.mrf.mxu0
      %v381 = vadd.f32 %v213, %v380
      %v382 = vpop.f32.mrf.mxu0
      %v383 = vadd.f32 %v213, %v382
      %384 = vmatmul.bf16.gmra.mxu0 %v321
      %v385 = vpop.f32.mrf.mxu0
      %v386 = vadd.f32 %v213, %v385
      %v387 = vpop.f32.mrf.mxu0
      %v388 = vadd.f32 %v213, %v387
      %389 = vmatmul.bf16.gmra.mxu0 %v324
      %v390 = vpop.f32.mrf.mxu0
      %v391 = vadd.f32 %v213, %v390
      %v392 = vpop.f32.mrf.mxu0
      %v393 = vadd.f32 %v213, %v392
      %394 = vmatmul.bf16.gmra.mxu0 %v327
      %v395 = vpop.f32.mrf.mxu0
      %v396 = vadd.f32 %v213, %v395
      %v397 = vpop.f32.mrf.mxu0
      %v398 = vadd.f32 %v213, %v397
      %399 = vmatmul.bf16.gmra.mxu0 %v330
      %v400 = vpop.f32.mrf.mxu0
      %v401 = vadd.f32 %v213, %v400
      %v402 = vpop.f32.mrf.mxu0
      %v403 = vadd.f32 %v213, %v402
      %404 = vmatmul.bf16.gmra.mxu0 %v333
      %v405 = vpop.f32.mrf.mxu0
      %v406 = vadd.f32 %v213, %v405
      %v407 = vpop.f32.mrf.mxu0
      %v408 = vadd.f32 %v213, %v407
      %409 = vmatmul.bf16.gmra.mxu0 %v336
      %v410 = vpop.f32.mrf.mxu0
      %v411 = vadd.f32 %v213, %v410
      %v412 = vpop.f32.mrf.mxu0
      %v413 = vadd.f32 %v213, %v412
      %414 = vmatmul.bf16.gmra.mxu0 %v339
      %v415 = vpop.f32.mrf.mxu0
      %v416 = vadd.f32 %v213, %v415
      %v417 = vpop.f32.mrf.mxu0
      %v418 = vadd.f32 %v213, %v417
      %419 = vmatmul.bf16.gmra.mxu0 %v342
      %v420 = vpop.f32.mrf.mxu0
      %v421 = vadd.f32 %v213, %v420
      %v422 = vpop.f32.mrf.mxu0
      %v423 = vadd.f32 %v213, %v422
      %424 = vmatmul.bf16.gmra.mxu0 %v345
      %v425 = vpop.f32.mrf.mxu0
      %v426 = vadd.f32 %v213, %v425
      %v427 = vpop.f32.mrf.mxu0
      %v428 = vadd.f32 %v213, %v427
      %429 = vmatmul.bf16.gmra.mxu0 %v348
      %v430 = vpop.f32.mrf.mxu0
      %v431 = vadd.f32 %v213, %v430
      %v432 = vpop.f32.mrf.mxu0
      %v433 = vadd.f32 %v213, %v432
      %434 = vmatmul.bf16.gmra.mxu0 %v351
      %v435 = vpop.f32.mrf.mxu0
      %v436 = vadd.f32 %v213, %v435
      %v437 = vpop.f32.mrf.mxu0
      %v438 = vadd.f32 %v213, %v437
      %439 = vmatmul.bf16.gmra.mxu0 %v354
      %v440 = vpop.f32.mrf.mxu0
      %v441 = vadd.f32 %v213, %v440
      %v442 = vpop.f32.mrf.mxu0
      %v443 = vadd.f32 %v213, %v442
      %444 = vdwg.mxu0
      %v445 = vmax.f32 %v366, 0.0
      %v446 = vmax.f32 %v368, 0.0
      %v447 = vmax.f32 %v371, 0.0
      %v448 = vmax.f32 %v373, 0.0
      %v449 = vmax.f32 %v376, 0.0
      %v450 = vmax.f32 %v378, 0.0
      %v451 = vmax.f32 %v381, 0.0
      %v452 = vmax.f32 %v383, 0.0
      %v453 = vmax.f32 %v386, 0.0
      %v454 = vmax.f32 %v388, 0.0
      %v455 = vmax.f32 %v391, 0.0
      %v456 = vmax.f32 %v393, 0.0
      %v457 = vmax.f32 %v396, 0.0
      %v458 = vmax.f32 %v398, 0.0
      %v459 = vmax.f32 %v401, 0.0
      %v460 = vmax.f32 %v403, 0.0
      %v461 = vmax.f32 %v406, 0.0
      %v462 = vmax.f32 %v408, 0.0
      %v463 = vmax.f32 %v411, 0.0
      %v464 = vmax.f32 %v413, 0.0
      %v465 = vmax.f32 %v416, 0.0
      %v466 = vmax.f32 %v418, 0.0
      %v467 = vmax.f32 %v421, 0.0
      %v468 = vmax.f32 %v423, 0.0
      %v469 = vmax.f32 %v426, 0.0
      %v470 = vmax.f32 %v428, 0.0
      %v471 = vmax.f32 %v431, 0.0
      %v472 = vmax.f32 %v433, 0.0
      %v473 = vmax.f32 %v436, 0.0
      %v474 = vmax.f32 %v438, 0.0
      %v475 = vmax.f32 %v441, 0.0
      %v476 = vmax.f32 %v443, 0.0
      %v477 = vpack.c.bf16 %v445, %v445
      %v478 = vpack.c.bf16 %v446, %v446
      %v479 = vpack.c.bf16 %v447, %v447
      %v480 = vpack.c.bf16 %v448, %v448
      %v481 = vpack.c.bf16 %v449, %v449
      %v482 = vpack.c.bf16 %v450, %v450
      %v483 = vpack.c.bf16 %v451, %v451
      %v484 = vpack.c.bf16 %v452, %v452
      %v485 = vpack.c.bf16 %v453, %v453
      %v486 = vpack.c.bf16 %v454, %v454
      %v487 = vpack.c.bf16 %v455, %v455
      %v488 = vpack.c.bf16 %v456, %v456
      %v489 = vpack.c.bf16 %v457, %v457
      %v490 = vpack.c.bf16 %v458, %v458
      %v491 = vpack.c.bf16 %v459, %v459
      %v492 = vpack.c.bf16 %v460, %v460
      %v493 = vpack.c.bf16 %v461, %v461
      %v494 = vpack.c.bf16 %v462, %v462
      %v495 = vpack.c.bf16 %v463, %v463
      %v496 = vpack.c.bf16 %v464, %v464
      %v497 = vpack.c.bf16 %v465, %v465
      %v498 = vpack.c.bf16 %v466, %v466
      %v499 = vpack.c.bf16 %v467, %v467
      %v500 = vpack.c.bf16 %v468, %v468
      %v501 = vpack.c.bf16 %v469, %v469
      %v502 = vpack.c.bf16 %v470, %v470
      %v503 = vpack.c.bf16 %v471, %v471
      %v504 = vpack.c.bf16 %v472, %v472
      %v505 = vpack.c.bf16 %v473, %v473
      %v506 = vpack.c.bf16 %v474, %v474
      %v507 = vpack.c.bf16 %v475, %v475
      %v508 = vpack.c.bf16 %v476, %v476
      %vm509 = vcmask 125952
      %510 = vst.msk [vmem:[%s172] sm:$0xf] %vm509, %v477
      %511 = vst.msk [vmem:[%s172 + $0x4] sm:$0xf] %vm509, %v478
      %512 = vst.msk [vmem:[%s172 + $0x8] sm:$0xf] %vm509, %v479
      %513 = vst.msk [vmem:[%s172 + $0xc] sm:$0xf] %vm509, %v480
      %514 = vst.msk [vmem:[%s172 + $0x10] sm:$0xf] %vm509, %v481
      %515 = vst.msk [vmem:[%s172 + $0x14] sm:$0xf] %vm509, %v482
      %516 = vst.msk [vmem:[%s172 + $0x18] sm:$0xf] %vm509, %v483
      %517 = vst.msk [vmem:[%s172 + $0x1c] sm:$0xf] %vm509, %v484
      %518 = vst.msk [vmem:[%s172 + $0x20] sm:$0xf] %vm509, %v485
      %519 = vst.msk [vmem:[%s172 + $0x24] sm:$0xf] %vm509, %v486
      %520 = vst.msk [vmem:[%s172 + $0x28] sm:$0xf] %vm509, %v487
      %521 = vst.msk [vmem:[%s172 + $0x2c] sm:$0xf] %vm509, %v488
      %522 = vst.msk [vmem:[%s172 + $0x30] sm:$0xf] %vm509, %v489
      %523 = vst.msk [vmem:[%s172 + $0x34] sm:$0xf] %vm509, %v490
      %524 = vst.msk [vmem:[%s172 + $0x38] sm:$0xf] %vm509, %v491
      %525 = vst.msk [vmem:[%s172 + $0x3c] sm:$0xf] %vm509, %v492
      %526 = vst.msk [vmem:[%s172 + $0x40] sm:$0xf] %vm509, %v493
      %527 = vst.msk [vmem:[%s172 + $0x44] sm:$0xf] %vm509, %v494
      %528 = vst.msk [vmem:[%s172 + $0x48] sm:$0xf] %vm509, %v495
      %529 = vst.msk [vmem:[%s172 + $0x4c] sm:$0xf] %vm509, %v496
      %530 = vst.msk [vmem:[%s172 + $0x50] sm:$0xf] %vm509, %v497
      %531 = vst.msk [vmem:[%s172 + $0x54] sm:$0xf] %vm509, %v498
      %532 = vst.msk [vmem:[%s172 + $0x58] sm:$0xf] %vm509, %v499
      %533 = vst.msk [vmem:[%s172 + $0x5c] sm:$0xf] %vm509, %v500
      %534 = vst.msk [vmem:[%s172 + $0x60] sm:$0xf] %vm509, %v501
      %535 = vst.msk [vmem:[%s172 + $0x64] sm:$0xf] %vm509, %v502
      %536 = vst.msk [vmem:[%s172 + $0x68] sm:$0xf] %vm509, %v503
      %537 = vst.msk [vmem:[%s172 + $0x6c] sm:$0xf] %vm509, %v504
      %538 = vst.msk [vmem:[%s172 + $0x70] sm:$0xf] %vm509, %v505
      %539 = vst.msk [vmem:[%s172 + $0x74] sm:$0xf] %vm509, %v506
      %540 = vst.msk [vmem:[%s172 + $0x78] sm:$0xf] %vm509, %v507
      %541 = vst.msk [vmem:[%s172 + $0x7c] sm:$0xf] %vm509, %v508
      %s542 = smul.u32 32, %s14
      %p543 = scmp.lt.s32.totalorder %s542, 63
      %s544 = scalar_select %p543, %s542, 63
      %s545 = smul.addr %s544, 4
      %s546 = scalar_lea.vmem %s3, %s545
      // Predicated region
      $region33: #{coco_deeplab_forward.3} parent=31 // pred_check
        %p547 = pneg %p100
      $region34: #{coco_deeplab_forward.3} parent=31 // pred_check_branch
        %549 = sbr.rel (%p547) target = $region36
      $region35: #{coco_deeplab_forward.3} parent=31 // pred_region
        %s550 = smul.u32 32, %s14
      $region36: #{coco_deeplab_forward.3} parent=31 // pred_fallthru
        _
    $region32: #{coco_deeplab_forward.3} parent=5 // pred_fallthru
      _
    %p551 = scmp.le.s32.totalorder 2, %s9
    // Predicated region
    $region37: #{coco_deeplab_forward.3} parent=5 // pred_check
      %p552 = pneg %p551
    $region38: #{coco_deeplab_forward.3} parent=5 // pred_check_branch
      %554 = sbr.rel (%p552) target = $region40
    $region39: #{coco_deeplab_forward.3} parent=5 // pred_region
      %s555 = ssub.s32 %s9, 2
      // Predicated region
      $region41: #{coco_deeplab_forward.3} parent=39 // pred_check
        %p556 = pneg %p106
      $region42: #{coco_deeplab_forward.3} parent=39 // pred_check_branch
        %558 = sbr.rel (%p556) target = $region44
      $region43: #{coco_deeplab_forward.3} parent=39 // pred_region
        %s559 = smul.u32 32, %s15
        %p560 = scmp.lt.s32.totalorder %s559, 63
        %s561 = scalar_select %p560, %s559, 63
        %s562 = smul.addr %s561, 4
        %s563 = scalar_lea.vmem %s3, %s562
      $region44: #{coco_deeplab_forward.3} parent=39 // pred_fallthru
        _
    $region40: #{coco_deeplab_forward.3} parent=5 // pred_fallthru
      _
  $region6: #{coco_deeplab_forward.3} parent=0 // loop_footer
    %s13 = sadd.s32 1, %s9
  $region7: #{coco_deeplab_forward.3} parent=0 // loop_footer_branch
    %8 = sbr.rel target = $region3
  $region8: #{coco_deeplab_forward.3} parent=0 // loop_exit
    _

// kernel: coco_deeplab_forward.4
$region0: #{coco_deeplab_forward.4}
  #allocation0 [shape = 'u32[]', space=smem, size = 0x4, offset = 0x4, fixed_abs, tag = 'smem constant byte address 0x4 - core index']
  #allocation1 [shape = 'u32[72,128]{1,0:T(1,128)}', space=vmem, size = 0x9000, scoped, tag = 'internal scratch']
  %s0 = inlined_call_operand.vmem [shape: bf16[128,144], index: 0, kind: input, shape index: {}]
  %s1 = inlined_call_operand.vmem [shape: bf16[144,32], index: 1, kind: input, shape index: {}]
  %s2 = inlined_call_operand.vmem [shape: f32[1,32], index: 2, kind: input, shape index: {}]
  %s3 = inlined_call_operand.vmem [shape: bf16[32,21], index: 3, kind: input, shape index: {}]
  %s4 = inlined_call_operand.vmem [shape: f32[1,21], index: 4, kind: input, shape index: {}]
  %s5 = inlined_call_operand.vmem [shape: f32[128,21], index: 5, kind: output, shape index: {}]
  %s6 = sld [smem:[#allocation0]]
  $region30: #{coco_deeplab_forward.4} parent=0
    _
  %s8 = ssub.s32 1, %s6
  %s9 = scalar_select 0, %s8, %s6
  // Predicated region
  $region2: #{coco_deeplab_forward.4} parent=0 // pred_check
    _
  $region3: #{coco_deeplab_forward.4} parent=0 // pred_check_branch
    %11 = sbr.rel (0) target = $region5
  $region4: #{coco_deeplab_forward.4} parent=0 // pred_region
    _
  $region5: #{coco_deeplab_forward.4} parent=0 // pred_fallthru
    _
  // Predicated region
  $region6: #{coco_deeplab_forward.4} parent=0 // pred_check
    _
  $region7: #{coco_deeplab_forward.4} parent=0 // pred_check_branch
    %13 = sbr.rel (0) target = $region9
  $region8: #{coco_deeplab_forward.4} parent=0 // pred_region
    _
  $region9: #{coco_deeplab_forward.4} parent=0 // pred_fallthru
    _
  // Predicated region
  $region10: #{coco_deeplab_forward.4} parent=0 // pred_check
    _
  $region11: #{coco_deeplab_forward.4} parent=0 // pred_check_branch
    %15 = sbr.rel (0) target = $region13
  $region12: #{coco_deeplab_forward.4} parent=0 // pred_region
    _
  $region13: #{coco_deeplab_forward.4} parent=0 // pred_fallthru
    _
  // Predicated region
  $region14: #{coco_deeplab_forward.4} parent=0 // pred_check
    _
  $region15: #{coco_deeplab_forward.4} parent=0 // pred_check_branch
    %17 = sbr.rel (0) target = $region17
  $region16: #{coco_deeplab_forward.4} parent=0 // pred_region
    _
  $region17: #{coco_deeplab_forward.4} parent=0 // pred_fallthru
    _
  // Predicated region
  $region18: #{coco_deeplab_forward.4} parent=0 // pred_check
    _
  $region19: #{coco_deeplab_forward.4} parent=0 // pred_check_branch
    %19 = sbr.rel (0) target = $region21
  $region20: #{coco_deeplab_forward.4} parent=0 // pred_region
    _
  $region21: #{coco_deeplab_forward.4} parent=0 // pred_fallthru
    _
  %v21 = vld [vmem:[%s0] sm:$0xff]
  %v22 = vld [vmem:[%s0 + $0x8] sm:$0xff]
  %v23 = vld [vmem:[%s0 + $0x10] sm:$0xff]
  %v24 = vld [vmem:[%s0 + $0x18] sm:$0xff]
  %v25 = vld [vmem:[%s0 + $0x20] sm:$0xff]
  %v26 = vld [vmem:[%s0 + $0x28] sm:$0xff]
  %v27 = vld [vmem:[%s0 + $0x30] sm:$0xff]
  %v28 = vld [vmem:[%s0 + $0x38] sm:$0xff]
  %v29 = vld [vmem:[%s0 + $0x40] sm:$0xff]
  %v30 = vld [vmem:[%s0 + $0x48] sm:$0xff]
  %v31 = vld [vmem:[%s0 + $0x50] sm:$0xff]
  %v32 = vld [vmem:[%s0 + $0x58] sm:$0xff]
  %v33 = vld [vmem:[%s0 + $0x60] sm:$0xff]
  %v34 = vld [vmem:[%s0 + $0x68] sm:$0xff]
  %v35 = vld [vmem:[%s0 + $0x70] sm:$0xff]
  %v36 = vld [vmem:[%s0 + $0x78] sm:$0xff]
  %v37 = vld [vmem:[%s1] sm:$0xf]
  %v38 = vld [vmem:[%s1 + $0x4] sm:$0xf]
  %v39 = vld [vmem:[%s1 + $0x8] sm:$0xf]
  %v40 = vld [vmem:[%s1 + $0xc] sm:$0xf]
  %v41 = vld [vmem:[%s1 + $0x10] sm:$0xf]
  %v42 = vld [vmem:[%s1 + $0x14] sm:$0xf]
  %v43 = vld [vmem:[%s1 + $0x18] sm:$0xf]
  %v44 = vld [vmem:[%s1 + $0x1c] sm:$0xf]
  %v45 = vld [vmem:[%s1 + $0x20] sm:$0xf]
  %v46 = vld [vmem:[%s1 + $0x24] sm:$0xf]
  %v47 = vld [vmem:[%s1 + $0x28] sm:$0xf]
  %v48 = vld [vmem:[%s1 + $0x2c] sm:$0xf]
  %v49 = vld [vmem:[%s1 + $0x30] sm:$0xf]
  %v50 = vld [vmem:[%s1 + $0x34] sm:$0xf]
  %v51 = vld [vmem:[%s1 + $0x38] sm:$0xf]
  %v52 = vld [vmem:[%s1 + $0x3c] sm:$0xf]
  %v53 = vld [vmem:[%s1 + $0x40] sm:$0xf]
  %v54 = vld [vmem:[%s1 + $0x44] sm:$0xf]
  %v55 = vld [vmem:[%s2] sm:$0x1]
  %v57 = vperm.slane %v55, 0
  %v75 = vunpack.c.l.b16 %v21
  %v76 = vunpack.c.h.b16 %v21
  %v77 = vunpack.c.l.b16 %v22
  %v78 = vunpack.c.h.b16 %v22
  %v79 = vunpack.c.l.b16 %v23
  %v80 = vunpack.c.h.b16 %v23
  %v81 = vunpack.c.l.b16 %v24
  %v82 = vunpack.c.h.b16 %v24
  %v83 = vunpack.c.l.b16 %v25
  %v84 = vunpack.c.h.b16 %v25
  %v85 = vunpack.c.l.b16 %v26
  %v86 = vunpack.c.h.b16 %v26
  %v87 = vunpack.c.l.b16 %v27
  %v88 = vunpack.c.h.b16 %v27
  %v89 = vunpack.c.l.b16 %v28
  %v90 = vunpack.c.h.b16 %v28
  %v91 = vunpack.c.l.b16 %v29
  %v92 = vunpack.c.h.b16 %v29
  %v93 = vunpack.c.l.b16 %v30
  %v94 = vunpack.c.h.b16 %v30
  %v95 = vunpack.c.l.b16 %v31
  %v96 = vunpack.c.h.b16 %v31
  %v97 = vunpack.c.l.b16 %v32
  %v98 = vunpack.c.h.b16 %v32
  %v99 = vunpack.c.l.b16 %v33
  %v100 = vunpack.c.h.b16 %v33
  %v101 = vunpack.c.l.b16 %v34
  %v102 = vunpack.c.h.b16 %v34
  %v103 = vunpack.c.l.b16 %v35
  %v104 = vunpack.c.h.b16 %v35
  %v105 = vunpack.c.l.b16 %v36
  %v106 = vunpack.c.h.b16 %v36
  %v107 = vpack.c.b16 %v77, %v75
  %v108 = vpack.c.b16 %v78, %v76
  %v109 = vpack.c.b16 %v81, %v79
  %v110 = vpack.c.b16 %v82, %v80
  %v111 = vpack.c.b16 %v85, %v83
  %v112 = vpack.c.b16 %v86, %v84
  %v113 = vpack.c.b16 %v89, %v87
  %v114 = vpack.c.b16 %v90, %v88
  %v115 = vpack.c.b16 %v93, %v91
  %v116 = vpack.c.b16 %v94, %v92
  %v117 = vpack.c.b16 %v97, %v95
  %v118 = vpack.c.b16 %v98, %v96
  %v119 = vpack.c.b16 %v101, %v99
  %v120 = vpack.c.b16 %v102, %v100
  %v121 = vpack.c.b16 %v105, %v103
  %v122 = vpack.c.b16 %v106, %v104
  %v149 = vunpack.c.l.b16 %v37
  %v150 = vunpack.c.l.b16 %v38
  %v151 = vunpack.c.l.b16 %v39
  %v152 = vunpack.c.l.b16 %v40
  %v153 = vunpack.c.l.b16 %v41
  %v154 = vunpack.c.l.b16 %v42
  %v155 = vunpack.c.l.b16 %v43
  %v156 = vunpack.c.l.b16 %v44
  %v157 = vunpack.c.l.b16 %v45
  %v158 = vunpack.c.l.b16 %v46
  %v159 = vunpack.c.l.b16 %v47
  %v160 = vunpack.c.l.b16 %v48
  %v161 = vunpack.c.l.b16 %v49
  %v162 = vunpack.c.l.b16 %v50
  %v163 = vunpack.c.l.b16 %v51
  %v164 = vunpack.c.l.b16 %v52
  %v165 = vunpack.c.l.b16 %v53
  %v166 = vunpack.c.l.b16 %v54
  %v167 = vpack.c.b16 %v150, %v149
  %v168 = vpack.c.b16 %v152, %v151
  %v169 = vpack.c.b16 %v154, %v153
  %v170 = vpack.c.b16 %v156, %v155
  %v171 = vpack.c.b16 %v158, %v157
  %v172 = vpack.c.b16 %v160, %v159
  %v173 = vpack.c.b16 %v162, %v161
  %v174 = vpack.c.b16 %v164, %v163
  %v175 = vpack.c.b16 %v166, %v165
  %vm185 = vcmask 130048
  %v187 = vsel %vm185, %v108, 0
  %v190 = vsel %vm185, %v110, 0
  %v193 = vsel %vm185, %v112, 0
  %v196 = vsel %vm185, %v114, 0
  %v199 = vsel %vm185, %v116, 0
  %v202 = vsel %vm185, %v118, 0
  %v205 = vsel %vm185, %v120, 0
  %v208 = vsel %vm185, %v122, 0
  %210 = vmatpush.bf16.msra.mxu0 %v174
  %211 = vmatpush.bf16.msra.mxu0 %v173
  %212 = vmatpush.bf16.msra.mxu0 %v172
  %213 = vmatpush.bf16.msra.mxu0 %v171
  %214 = vmatpush.bf16.msra.mxu0 %v170
  %215 = vmatpush.bf16.msra.mxu0 %v169
  %216 = vmatpush.bf16.msra.mxu0 %v168
  %217 = vmatpush.bf16.msra.mxu0 %v167
  %218 = vmatmul.bf16.gmra.mxu0 %v107
  %v219 = vpop.f32.mrf.mxu0
  %v220 = vadd.f32 %v57, %v219
  %v221 = vpop.f32.mrf.mxu0
  %v222 = vadd.f32 %v57, %v221
  %223 = vmatmul.bf16.gmra.mxu0 %v109
  %v224 = vpop.f32.mrf.mxu0
  %v225 = vadd.f32 %v57, %v224
  %v226 = vpop.f32.mrf.mxu0
  %v227 = vadd.f32 %v57, %v226
  %228 = vmatmul.bf16.gmra.mxu0 %v111
  %v229 = vpop.f32.mrf.mxu0
  %v230 = vadd.f32 %v57, %v229
  %v231 = vpop.f32.mrf.mxu0
  %v232 = vadd.f32 %v57, %v231
  %233 = vmatmul.bf16.gmra.mxu0 %v113
  %v234 = vpop.f32.mrf.mxu0
  %v235 = vadd.f32 %v57, %v234
  %v236 = vpop.f32.mrf.mxu0
  %v237 = vadd.f32 %v57, %v236
  %238 = vmatmul.bf16.gmra.mxu0 %v115
  %v239 = vpop.f32.mrf.mxu0
  %v240 = vadd.f32 %v57, %v239
  %v241 = vpop.f32.mrf.mxu0
  %v242 = vadd.f32 %v57, %v241
  %243 = vmatmul.bf16.gmra.mxu0 %v117
  %v244 = vpop.f32.mrf.mxu0
  %v245 = vadd.f32 %v57, %v244
  %v246 = vpop.f32.mrf.mxu0
  %v247 = vadd.f32 %v57, %v246
  %248 = vmatmul.bf16.gmra.mxu0 %v119
  %v249 = vpop.f32.mrf.mxu0
  %v250 = vadd.f32 %v57, %v249
  %v251 = vpop.f32.mrf.mxu0
  %v252 = vadd.f32 %v57, %v251
  %253 = vmatmul.bf16.gmra.mxu0 %v121
  %v254 = vpop.f32.mrf.mxu0
  %v255 = vadd.f32 %v57, %v254
  %v256 = vpop.f32.mrf.mxu0
  %v257 = vadd.f32 %v57, %v256
  %258 = vdwg.mxu0
  %259 = vmatpush.bf16.msra.mxu0 0
  %260 = vmatpush.bf16.msra.mxu0 0
  %261 = vmatpush.bf16.msra.mxu0 0
  %262 = vmatpush.bf16.msra.mxu0 0
  %263 = vmatpush.bf16.msra.mxu0 0
  %264 = vmatpush.bf16.msra.mxu0 0
  %265 = vmatpush.bf16.msra.mxu0 0
  %266 = vmatpush.bf16.msra.mxu0 %v175
  %267 = vmatmul.bf16.gmra.mxu0 %v187
  %v268 = vpop.f32.mrf.mxu0
  %v269 = vadd.f32 %v220, %v268
  %v270 = vpop.f32.mrf.mxu0
  %v271 = vadd.f32 %v222, %v270
  %272 = vmatmul.bf16.gmra.mxu0 %v190
  %v273 = vpop.f32.mrf.mxu0
  %v274 = vadd.f32 %v225, %v273
  %v275 = vpop.f32.mrf.mxu0
  %v276 = vadd.f32 %v227, %v275
  %277 = vmatmul.bf16.gmra.mxu0 %v193
  %v278 = vpop.f32.mrf.mxu0
  %v279 = vadd.f32 %v230, %v278
  %v280 = vpop.f32.mrf.mxu0
  %v281 = vadd.f32 %v232, %v280
  %282 = vmatmul.bf16.gmra.mxu0 %v196
  %v283 = vpop.f32.mrf.mxu0
  %v284 = vadd.f32 %v235, %v283
  %v285 = vpop.f32.mrf.mxu0
  %v286 = vadd.f32 %v237, %v285
  %287 = vmatmul.bf16.gmra.mxu0 %v199
  %v288 = vpop.f32.mrf.mxu0
  %v289 = vadd.f32 %v240, %v288
  %v290 = vpop.f32.mrf.mxu0
  %v291 = vadd.f32 %v242, %v290
  %292 = vmatmul.bf16.gmra.mxu0 %v202
  %v293 = vpop.f32.mrf.mxu0
  %v294 = vadd.f32 %v245, %v293
  %v295 = vpop.f32.mrf.mxu0
  %v296 = vadd.f32 %v247, %v295
  %297 = vmatmul.bf16.gmra.mxu0 %v205
  %v298 = vpop.f32.mrf.mxu0
  %v299 = vadd.f32 %v250, %v298
  %v300 = vpop.f32.mrf.mxu0
  %v301 = vadd.f32 %v252, %v300
  %302 = vmatmul.bf16.gmra.mxu0 %v208
  %v303 = vpop.f32.mrf.mxu0
  %v304 = vadd.f32 %v255, %v303
  %v305 = vpop.f32.mrf.mxu0
  %v306 = vadd.f32 %v257, %v305
  %307 = vdwg.mxu0
  %v308 = vmax.f32 %v269, 0.0
  %v309 = vmax.f32 %v271, 0.0
  %v310 = vmax.f32 %v274, 0.0
  %v311 = vmax.f32 %v276, 0.0
  %v312 = vmax.f32 %v279, 0.0
  %v313 = vmax.f32 %v281, 0.0
  %v314 = vmax.f32 %v284, 0.0
  %v315 = vmax.f32 %v286, 0.0
  %v316 = vmax.f32 %v289, 0.0
  %v317 = vmax.f32 %v291, 0.0
  %v318 = vmax.f32 %v294, 0.0
  %v319 = vmax.f32 %v296, 0.0
  %v320 = vmax.f32 %v299, 0.0
  %v321 = vmax.f32 %v301, 0.0
  %v322 = vmax.f32 %v304, 0.0
  %v323 = vmax.f32 %v306, 0.0
  %v324 = vpack.c.bf16 %v309, %v308
  %v325 = vpack.c.bf16 %v311, %v310
  %v326 = vpack.c.bf16 %v313, %v312
  %v327 = vpack.c.bf16 %v315, %v314
  %v328 = vpack.c.bf16 %v317, %v316
  %v329 = vpack.c.bf16 %v319, %v318
  %v330 = vpack.c.bf16 %v321, %v320
  %v331 = vpack.c.bf16 %v323, %v322
  %v332 = vld [vmem:[%s3] sm:$0xf]
  %v333 = vld [vmem:[%s3 + $0x4] sm:$0xf]
  %v334 = vld [vmem:[%s3 + $0x8] sm:$0xf]
  %v335 = vld [vmem:[%s3 + $0xc] sm:$0xf]
  %v336 = vld [vmem:[%s4] sm:$0x1]
  %v338 = vperm.slane %v336, 0
  %v344 = vunpack.c.l.b16 %v332
  %v345 = vunpack.c.l.b16 %v333
  %v346 = vunpack.c.l.b16 %v334
  %v347 = vunpack.c.l.b16 %v335
  %v348 = vpack.c.b16 %v345, %v344
  %v349 = vpack.c.b16 %v347, %v346
  %vm352 = vcmask 261120
  %v354 = vsel %vm352, %v324, 0
  %v357 = vsel %vm352, %v325, 0
  %v360 = vsel %vm352, %v326, 0
  %v363 = vsel %vm352, %v327, 0
  %v366 = vsel %vm352, %v328, 0
  %v369 = vsel %vm352, %v329, 0
  %v372 = vsel %vm352, %v330, 0
  %v375 = vsel %vm352, %v331, 0
  %377 = vmatpush.bf16.msra.mxu0 0
  %378 = vmatpush.bf16.msra.mxu0 0
  %379 = vmatpush.bf16.msra.mxu0 0
  %380 = vmatpush.bf16.msra.mxu0 0
  %381 = vmatpush.bf16.msra.mxu0 0
  %382 = vmatpush.bf16.msra.mxu0 0
  %383 = vmatpush.bf16.msra.mxu0 %v349
  %384 = vmatpush.bf16.msra.mxu0 %v348
  %385 = vmatmul.bf16.gmra.mxu0 %v354
  %v386 = vpop.f32.mrf.mxu0
  %v387 = vadd.f32 %v338, %v386
  %v388 = vpop.f32.mrf.mxu0
  %v389 = vadd.f32 %v338, %v388
  %390 = vmatmul.bf16.gmra.mxu0 %v357
  %v391 = vpop.f32.mrf.mxu0
  %v392 = vadd.f32 %v338, %v391
  %v393 = vpop.f32.mrf.mxu0
  %v394 = vadd.f32 %v338, %v393
  %395 = vmatmul.bf16.gmra.mxu0 %v360
  %v396 = vpop.f32.mrf.mxu0
  %v397 = vadd.f32 %v338, %v396
  %v398 = vpop.f32.mrf.mxu0
  %v399 = vadd.f32 %v338, %v398
  %400 = vmatmul.bf16.gmra.mxu0 %v363
  %v401 = vpop.f32.mrf.mxu0
  %v402 = vadd.f32 %v338, %v401
  %v403 = vpop.f32.mrf.mxu0
  %v404 = vadd.f32 %v338, %v403
  %405 = vmatmul.bf16.gmra.mxu0 %v366
  %v406 = vpop.f32.mrf.mxu0
  %v407 = vadd.f32 %v338, %v406
  %v408 = vpop.f32.mrf.mxu0
  %v409 = vadd.f32 %v338, %v408
  %410 = vmatmul.bf16.gmra.mxu0 %v369
  %v411 = vpop.f32.mrf.mxu0
  %v412 = vadd.f32 %v338, %v411
  %v413 = vpop.f32.mrf.mxu0
  %v414 = vadd.f32 %v338, %v413
  %415 = vmatmul.bf16.gmra.mxu0 %v372
  %v416 = vpop.f32.mrf.mxu0
  %v417 = vadd.f32 %v338, %v416
  %v418 = vpop.f32.mrf.mxu0
  %v419 = vadd.f32 %v338, %v418
  %420 = vmatmul.bf16.gmra.mxu0 %v375
  %v421 = vpop.f32.mrf.mxu0
  %v422 = vadd.f32 %v338, %v421
  %v423 = vpop.f32.mrf.mxu0
  %v424 = vadd.f32 %v338, %v423
  %425 = vdwg.mxu0
  %vm426 = vcmask 171008
  %427 = vst.msk [vmem:[%s5] sm:$0xff] %vm426, %v387
  %428 = vst.msk [vmem:[%s5 + $0x8] sm:$0xff] %vm426, %v389
  %429 = vst.msk [vmem:[%s5 + $0x10] sm:$0xff] %vm426, %v392
  %430 = vst.msk [vmem:[%s5 + $0x18] sm:$0xff] %vm426, %v394
  %431 = vst.msk [vmem:[%s5 + $0x20] sm:$0xff] %vm426, %v397
  %432 = vst.msk [vmem:[%s5 + $0x28] sm:$0xff] %vm426, %v399
  %433 = vst.msk [vmem:[%s5 + $0x30] sm:$0xff] %vm426, %v402
  %434 = vst.msk [vmem:[%s5 + $0x38] sm:$0xff] %vm426, %v404
  %435 = vst.msk [vmem:[%s5 + $0x40] sm:$0xff] %vm426, %v407
  %436 = vst.msk [vmem:[%s5 + $0x48] sm:$0xff] %vm426, %v409
  %437 = vst.msk [vmem:[%s5 + $0x50] sm:$0xff] %vm426, %v412
  %438 = vst.msk [vmem:[%s5 + $0x58] sm:$0xff] %vm426, %v414
  %439 = vst.msk [vmem:[%s5 + $0x60] sm:$0xff] %vm426, %v417
  %440 = vst.msk [vmem:[%s5 + $0x68] sm:$0xff] %vm426, %v419
  %441 = vst.msk [vmem:[%s5 + $0x70] sm:$0xff] %vm426, %v422
  %442 = vst.msk [vmem:[%s5 + $0x78] sm:$0xff] %vm426, %v424
  // Predicated region
  $region22: #{coco_deeplab_forward.4} parent=0 // pred_check
    _
  $region23: #{coco_deeplab_forward.4} parent=0 // pred_check_branch
    %444 = sbr.rel (0) target = $region25
  $region24: #{coco_deeplab_forward.4} parent=0 // pred_region
    _
  $region25: #{coco_deeplab_forward.4} parent=0 // pred_fallthru
    _
  // Predicated region
  $region26: #{coco_deeplab_forward.4} parent=0 // pred_check
    _
  $region27: #{coco_deeplab_forward.4} parent=0 // pred_check_branch
    %446 = sbr.rel (0) target = $region29
  $region28: #{coco_deeplab_forward.4} parent=0 // pred_region
    _
  $region29: #{coco_deeplab_forward.4} parent=0 // pred_fallthru
    _

// kernel: coco_deeplab_forward.5
$region0: #{coco_deeplab_forward.5}
  #allocation0 [shape = 'u32[]', space=smem, size = 0x4, offset = 0x4, fixed_abs, tag = 'smem constant byte address 0x4 - core index']
  #allocation1 [shape = 'u32[72,128]{1,0:T(1,128)}', space=vmem, size = 0x9000, scoped, tag = 'internal scratch']
  #allocation4 [shape = 's32[]', space=sflag, size = 0x4, offset = 0, fixed_abs, tag = 'sflag constant byte address 0x0 - dummy sync flag']
  %s0 = inlined_call_operand.vmem [shape: f32[2,8,168], index: 0, kind: input, shape index: {}]
  %s1 = inlined_call_operand.vmem [shape: f32[32,8], index: 1, kind: input, shape index: {}]
  %s2 = inlined_call_operand.vmem [shape: f32[8,32], index: 2, kind: input, shape index: {}]
  %s3 = inlined_call_operand.hbm [shape: f32[2,21,32,32], index: 3, kind: output, shape index: {}]
  %s4 = sld [smem:[#allocation0]]
  $region45: #{coco_deeplab_forward.5} parent=0
    _
  %s6 = ssub.s32 1, %s4
  %s7 = scalar_select 0, %s6, %s4
  $region1: #{coco_deeplab_forward.5} parent=0
    #allocation2 [shape = 'u8[344064]{0}', space=vmem, size = 0x54000, scoped, tag = 'output window, operand 0']
    #allocation3 [shape = 's32[2]{0}', space=sflag, size = 0x8, scoped, tag = 'scoped memory for coco_deeplab_forward.5']
    %8 = vsyncpa [#allocation3], 0
    %s9 = scalar_lea.sflag [#allocation3], 1
    %10 = vsyncpa %s9, 0
    loop: start=0, step=1, limit=6
    $region2: #{coco_deeplab_forward.5} parent=1 // loop_pre_header
      _
    $region3: #{coco_deeplab_forward.5} parent=1 // loop_header
      %s12 = sphi 0, %s16
      %p13 = scmp.ge.s32.totalorder %s12, 6
      %s19 = sphi 0, %s31
      %s20 = sphi 0, %s27
      %s21 = sphi 0, %s19
      %s22 = sphi 0, %s20
      %s23 = sphi 0, %s21
      %s24 = sphi 0, %s22
      %s34 = sphi 0, %s36
      %s37 = sphi 0, %s34
      %s38 = sphi 0, %s37
      %s54 = sphi 0, %s38
      %s60 = sphi 0, %s62
      %s63 = sphi 0, %s60
      %s64 = sphi 0, %s63
      %s80 = sphi 0, %s64
      %s84 = sphi 0, %s84
      %s86 = sphi 0, %s84
      %s87 = sphi 0, %s86
      %s101 = sphi 0, %s87
      %s109 = sphi 0, %s111
      %s112 = sphi 0, %s109
      %s113 = sphi 0, %s112
      %s129 = sphi 0, %s113
    $region4: #{coco_deeplab_forward.5} parent=1 // loop_header_branch
      %15 = sbr.rel (%p13) target = $region8
    $region5: #{coco_deeplab_forward.5} parent=1 // loop_body
      %s17 = ssub.s32 %s12, 1
      %s18 = ssub.s32 %s12, 2
      %s25 = sadd.s32 1, %s20
      %p26 = scmp.ge.s32.totalorder %s25, 2
      %s27 = scalar_select %p26, 0, %s25
      %s28 = sadd.s32 1, %s19
      %s29 = scalar_select %p26, %s28, %s19
      %p30 = scmp.ge.s32.totalorder %s29, 2
      %s31 = scalar_select %p30, 0, %s29
      %s32 = ssub.s32 %s19, %s31
      %p33 = scmp.eq.s32.totalorder %s32, 0
      %s35 = sadd.s32 %s34, 1
      %s36 = scalar_select %p33, %s34, %s35
      %p39 = pneg %p33
      %p40 = scmp.eq.s32.totalorder %s12, 3
      %p41 = por %p39, %p40
      %p42 = scmp.ne.s32.totalorder %s34, %s37
      %p43 = scmp.eq.s32.totalorder %s12, 0
      %p44 = por %p42, %p43
      %p45 = scmp.ne.s32.totalorder %s34, %s37
      %p46 = scmp.eq.s32.totalorder %s17, 3
      %p47 = por %p45, %p46
      %p48 = scmp.ne.s32.totalorder %s37, %s38
      %p49 = scmp.eq.s32.totalorder %s17, 0
      %p50 = por %p48, %p49
      %p51 = scmp.ne.s32.totalorder %s37, %s38
      %p52 = scmp.eq.s32.totalorder %s18, 3
      %p53 = por %p51, %p52
      %p55 = scmp.ne.s32.totalorder %s38, %s54
      %p56 = scmp.eq.s32.totalorder %s18, 0
      %p57 = por %p55, %p56
      %s58 = ssub.s32 %s20, %s27
      %p59 = scmp.eq.s32.totalorder %s58, 0
      %s61 = sadd.s32 %s60, 1
      %s62 = scalar_select %p59, %s60, %s61
      %p65 = pneg %p59
      %p66 = scmp.eq.s32.totalorder %s12, 3
      %p67 = por %p65, %p66
      %p68 = scmp.ne.s32.totalorder %s60, %s63
      %p69 = scmp.eq.s32.totalorder %s12, 0
      %p70 = por %p68, %p69
      %p71 = scmp.ne.s32.totalorder %s60, %s63
      %p72 = scmp.eq.s32.totalorder %s17, 3
      %p73 = por %p71, %p72
      %p74 = scmp.ne.s32.totalorder %s63, %s64
      %p75 = scmp.eq.s32.totalorder %s17, 0
      %p76 = por %p74, %p75
      %p77 = scmp.ne.s32.totalorder %s63, %s64
      %p78 = scmp.eq.s32.totalorder %s18, 3
      %p79 = por %p77, %p78
      %p81 = scmp.ne.s32.totalorder %s64, %s80
      %p82 = scmp.eq.s32.totalorder %s18, 0
      %p83 = por %p81, %p82
      %s85 = sadd.s32 %s84, 1
      %p88 = scmp.eq.s32.totalorder %s12, 3
      %p89 = scmp.ne.s32.totalorder %s84, %s86
      %p90 = scmp.eq.s32.totalorder %s12, 0
      %p91 = por %p89, %p90
      %p92 = scmp.ne.s32.totalorder %s84, %s86
      %p93 = scmp.eq.s32.totalorder %s17, 3
      %p94 = por %p92, %p93
      %p95 = scmp.ne.s32.totalorder %s86, %s87
      %p96 = scmp.eq.s32.totalorder %s17, 0
      %p97 = por %p95, %p96
      %p98 = scmp.ne.s32.totalorder %s86, %s87
      %p99 = scmp.eq.s32.totalorder %s18, 3
      %p100 = por %p98, %p99
      %p102 = scmp.ne.s32.totalorder %s87, %s101
      %p103 = scmp.eq.s32.totalorder %s18, 0
      %p104 = por %p102, %p103
      %s105 = ssub.s32 %s19, %s31
      %s106 = ssub.s32 %s20, %s27
      %s107 = sor.u32 %s105, %s106
      %p108 = scmp.eq.s32.totalorder %s107, 0
      %s110 = sadd.s32 %s109, 1
      %s111 = scalar_select %p108, %s109, %s110
      %p114 = pneg %p108
      %p115 = scmp.eq.s32.totalorder %s12, 3
      %p116 = por %p114, %p115
      %p117 = scmp.ne.s32.totalorder %s109, %s112
      %p118 = scmp.eq.s32.totalorder %s12, 0
      %p119 = por %p117, %p118
      %p120 = scmp.ne.s32.totalorder %s109, %s112
      %p121 = scmp.eq.s32.totalorder %s17, 3
      %p122 = por %p120, %p121
      %p123 = scmp.ne.s32.totalorder %s112, %s113
      %p124 = scmp.eq.s32.totalorder %s17, 0
      %p125 = por %p123, %p124
      %p126 = scmp.ne.s32.totalorder %s112, %s113
      %p127 = scmp.eq.s32.totalorder %s18, 3
      %p128 = por %p126, %p127
      %p130 = scmp.ne.s32.totalorder %s113, %s129
      %p131 = scmp.eq.s32.totalorder %s18, 0
      %p132 = por %p130, %p131
      %p133 = scmp.le.s32.totalorder 1, %s12
      %p134 = scmp.lt.s32.totalorder %s12, 5
      %p135 = pnand %p133, %p134
      %p136 = pneg %p135
      // Predicated region
      $region9: #{coco_deeplab_forward.5} parent=5 // pred_check
        _
      $region10: #{coco_deeplab_forward.5} parent=5 // pred_check_branch
        %138 = sbr.rel (%p135) target = $region12
      $region11: #{coco_deeplab_forward.5} parent=5 // pred_region
        %s139 = ssub.s32 %s12, 1
        // Predicated region
        $region13: #{coco_deeplab_forward.5} parent=11 // pred_check
          %p140 = pneg %p97
        $region14: #{coco_deeplab_forward.5} parent=11 // pred_check_branch
          %142 = sbr.rel (%p140) target = $region16
        $region15: #{coco_deeplab_forward.5} parent=11 // pred_region
          _
        $region16: #{coco_deeplab_forward.5} parent=11 // pred_fallthru
          _
      $region12: #{coco_deeplab_forward.5} parent=5 // pred_fallthru
        _
      %p143 = scmp.lt.s32.totalorder %s12, 4
      // Predicated region
      $region17: #{coco_deeplab_forward.5} parent=5 // pred_check
        %p144 = pneg %p143
      $region18: #{coco_deeplab_forward.5} parent=5 // pred_check_branch
        %146 = sbr.rel (%p144) target = $region20
      $region19: #{coco_deeplab_forward.5} parent=5 // pred_region
        // Predicated region
        $region21: #{coco_deeplab_forward.5} parent=19 // pred_check
          %p147 = pneg %p44
        $region22: #{coco_deeplab_forward.5} parent=19 // pred_check_branch
          %149 = sbr.rel (%p147) target = $region24
        $region23: #{coco_deeplab_forward.5} parent=19 // pred_region
          %p150 = scmp.lt.s32.totalorder %s19, 1
          %s151 = scalar_select %p150, %s19, 1
          %s152 = smul.addr %s151, 2
          %s153 = smul.addr %s152, 8
          %s154 = scalar_lea.vmem %s0, %s153
        $region24: #{coco_deeplab_forward.5} parent=19 // pred_fallthru
          _
        // Predicated region
        $region25: #{coco_deeplab_forward.5} parent=19 // pred_check
          %p155 = pneg %p70
        $region26: #{coco_deeplab_forward.5} parent=19 // pred_check_branch
          %157 = sbr.rel (%p155) target = $region28
        $region27: #{coco_deeplab_forward.5} parent=19 // pred_region
          %s158 = smul.u32 2, %s20
          %p159 = scmp.lt.s32.totalorder %s158, 3
          %s160 = scalar_select %p159, %s158, 3
          %s161 = smul.addr %s160, 8
          %s162 = scalar_lea.vmem %s1, %s161
          %s163 = smul.u32 2, %s20
        $region28: #{coco_deeplab_forward.5} parent=19 // pred_fallthru
          _
      $region20: #{coco_deeplab_forward.5} parent=5 // pred_fallthru
        _
      %p164 = scmp.le.s32.totalorder 1, %s12
      %p165 = scmp.lt.s32.totalorder %s12, 5
      %p166 = pnand %p164, %p165
      %p167 = pneg %p166
      // Predicated region
      $region29: #{coco_deeplab_forward.5} parent=5 // pred_check
        _
      $region30: #{coco_deeplab_forward.5} parent=5 // pred_check_branch
        %169 = sbr.rel (%p166) target = $region32
      $region31: #{coco_deeplab_forward.5} parent=5 // pred_region
        %s170 = ssub.s32 %s12, 1
        %p171 = scmp.lt.s32.totalorder %s21, 1
        %s172 = scalar_select %p171, %s21, 1
        %s173 = smul.addr %s172, 2
        %s174 = smul.addr %s173, 8
        %s175 = scalar_lea.vmem %s0, %s174
        %p176 = pneg %p50
        %p177 = pneg %p47
        %s178 = smul.u32 2, %s22
        %p179 = scmp.lt.s32.totalorder %s178, 3
        %s180 = scalar_select %p179, %s178, 3
        %s181 = smul.addr %s180, 8
        %s182 = scalar_lea.vmem %s1, %s181
        %p183 = pneg %p76
        %p184 = pneg %p73
        %p185 = pneg %p97
        %p186 = pneg %p94
        %p187 = pneg %p125
        %p188 = pneg %p122
        %s189 = sand.u32 %s112, 1
        %s190 = scalar_lea.sflag [#allocation3], %s189
        %s191 = sand.u32 %s112, 1
        %s192 = smul.addr %s191, 336
        %s193 = scalar_lea.vmem [#allocation2], %s192
        %p194 = scmp.lt.s32.totalorder %s21, 1
        %s195 = scalar_select %p194, %s21, 1
        %s196 = smul.addr %s195, 2
        %s197 = smul.addr %s196, 8
        %s198 = scalar_lea.vmem %s0, %s197
        %s199 = smul.u32 2, %s22
        %p200 = scmp.lt.s32.totalorder %s199, 3
        %s201 = scalar_select %p200, %s199, 3
        %s202 = smul.addr %s201, 8
        %s203 = scalar_lea.vmem %s1, %s202
        %s204 = smul.u32 2, %s22
        %s205 = smul.u32 2, %s22
        %v206 = vld [vmem:[%s203] sm:$0xff]
        %v207 = vld [vmem:[%s203 + $0x8] sm:$0xff]
        %v208 = vld [vmem:[%s198] sm:$0xff]
        %v209 = vld [vmem:[%s198 + $0x8] sm:$0xff]
        %vm210 = vcmask 64512
        %v212 = vsel %vm210, %v206, 0
        %v215 = vsel %vm210, %v207, 0
        %217 = vmatpush.msra.mxu0 0.0
        %218 = vmatpush.msra.mxu0 0.0
        %219 = vmatpush.msra.mxu0 0.0
        %220 = vmatpush.msra.mxu0 0.0
        %221 = vmatpush.msra.mxu0 0.0
        %222 = vmatpush.msra.mxu0 0.0
        %223 = vmatpush.msra.mxu0 0.0
        %224 = vmatpush.msra.mxu0 0.0
        %225 = vmatpush.msra.mxu0 0.0
        %226 = vmatpush.msra.mxu0 0.0
        %227 = vmatpush.msra.mxu0 0.0
        %228 = vmatpush.msra.mxu0 0.0
        %229 = vmatpush.msra.mxu0 0.0
        %230 = vmatpush.msra.mxu0 0.0
        %231 = vmatpush.msra.mxu0 0.0
        %232 = vmatpush.msra.mxu0 %v208
        %233 = vmatmul.f32.gmra.mxu0 %v212
        %v234 = vpop.f32.mrf.mxu0
        %v235 = vadd.f32 0.0, %v234
        %236 = vmatmul.f32.gmra.mxu0 %v215
        %v237 = vpop.f32.mrf.mxu0
        %v238 = vadd.f32 0.0, %v237
        %239 = vdwg.mxu0
        %240 = vmatpush.msra.mxu0 0.0
        %241 = vmatpush.msra.mxu0 0.0
        %242 = vmatpush.msra.mxu0 0.0
        %243 = vmatpush.msra.mxu0 0.0
        %244 = vmatpush.msra.mxu0 0.0
        %245 = vmatpush.msra.mxu0 0.0
        %246 = vmatpush.msra.mxu0 0.0
        %247 = vmatpush.msra.mxu0 0.0
        %248 = vmatpush.msra.mxu0 0.0
        %249 = vmatpush.msra.mxu0 0.0
        %250 = vmatpush.msra.mxu0 0.0
        %251 = vmatpush.msra.mxu0 0.0
        %252 = vmatpush.msra.mxu0 0.0
        %253 = vmatpush.msra.mxu0 0.0
        %254 = vmatpush.msra.mxu0 0.0
        %255 = vmatpush.msra.mxu0 %v209
        %256 = vmatmul.f32.gmra.mxu0 %v212
        %v257 = vpop.f32.mrf.mxu0
        %v258 = vadd.f32 0.0, %v257
        %259 = vmatmul.f32.gmra.mxu0 %v215
        %v260 = vpop.f32.mrf.mxu0
        %v261 = vadd.f32 0.0, %v260
        %262 = vdwg.mxu0
        %v263 = vld [vmem:[%s2] sm:$0xff]
        %v265 = vsel %vm210, %v235, 0
        %v268 = vsel %vm210, %v238, 0
        %270 = vmatpush.msra.mxu0 0.0
        %271 = vmatpush.msra.mxu0 0.0
        %272 = vmatpush.msra.mxu0 0.0
        %273 = vmatpush.msra.mxu0 0.0
        %274 = vmatpush.msra.mxu0 0.0
        %275 = vmatpush.msra.mxu0 0.0
        %276 = vmatpush.msra.mxu0 0.0
        %277 = vmatpush.msra.mxu0 0.0
        %278 = vmatpush.msra.mxu0 0.0
        %279 = vmatpush.msra.mxu0 0.0
        %280 = vmatpush.msra.mxu0 0.0
        %281 = vmatpush.msra.mxu0 0.0
        %282 = vmatpush.msra.mxu0 0.0
        %283 = vmatpush.msra.mxu0 0.0
        %284 = vmatpush.msra.mxu0 0.0
        %285 = vmatpush.msra.mxu0 %v263
        %286 = vmatmul.f32.gmra.mxu0 %v265
        %v287 = vpop.f32.mrf.mxu0
        %v288 = vadd.f32 0.0, %v287
        %289 = vmatmul.f32.gmra.mxu0 %v268
        %v290 = vpop.f32.mrf.mxu0
        %v291 = vadd.f32 0.0, %v290
        %292 = vdwg.mxu0
        %vm293 = vcmask 261120
        %294 = vst.msk [vmem:[%s193] sm:$0xff] %vm293, %v288
        %295 = vst.msk [vmem:[%s193 + $0x8] sm:$0xff] %vm293, %v291
        %v296 = vld [vmem:[%s2] sm:$0xff]
        %297 = vrot.lane.b32.xlu0 %v235, 120
        %v298 = vpop.permute.xlu0 %297
        %299 = vrot.lane.b32.xlu0 %v238, 120
        %v300 = vpop.permute.xlu0 %299
        %v301 = vsel %vm210, %v298, 0
        %v303 = vsel %vm210, %v300, 0
        %305 = vmatpush.msra.mxu0 0.0
        %306 = vmatpush.msra.mxu0 0.0
        %307 = vmatpush.msra.mxu0 0.0
        %308 = vmatpush.msra.mxu0 0.0
        %309 = vmatpush.msra.mxu0 0.0
        %310 = vmatpush.msra.mxu0 0.0
        %311 = vmatpush.msra.mxu0 0.0
        %312 = vmatpush.msra.mxu0 0.0
        %313 = vmatpush.msra.mxu0 0.0
        %314 = vmatpush.msra.mxu0 0.0
        %315 = vmatpush.msra.mxu0 0.0
        %316 = vmatpush.msra.mxu0 0.0
        %317 = vmatpush.msra.mxu0 0.0
        %318 = vmatpush.msra.mxu0 0.0
        %319 = vmatpush.msra.mxu0 0.0
        %320 = vmatpush.msra.mxu0 %v296
        %321 = vmatmul.f32.gmra.mxu0 %v301
        %v322 = vpop.f32.mrf.mxu0
        %v323 = vadd.f32 0.0, %v322
        %324 = vmatmul.f32.gmra.mxu0 %v303
        %v325 = vpop.f32.mrf.mxu0
        %v326 = vadd.f32 0.0, %v325
        %327 = vdwg.mxu0
        %s328 = scalar_lea.vmem %s193, 16 [#allocation2]
        %329 = vst.msk [vmem:[%s328] sm:$0xff] %vm293, %v323
        %330 = vst.msk [vmem:[%s328 + $0x8] sm:$0xff] %vm293, %v326
        %v331 = vmax.f32 %v288, %v323
        %v332 = vmax.f32 %v291, %v326
        %v333 = vld [vmem:[%s2] sm:$0xff]
        %334 = vrot.lane.b32.xlu0 %v235, 112
        %v335 = vpop.permute.xlu0 %334
        %336 = vrot.lane.b32.xlu0 %v238, 112
        %v337 = vpop.permute.xlu0 %336
        %v338 = vsel %vm210, %v335, 0
        %v340 = vsel %vm210, %v337, 0
        %342 = vmatpush.msra.mxu0 0.0
        %343 = vmatpush.msra.mxu0 0.0
        %344 = vmatpush.msra.mxu0 0.0
        %345 = vmatpush.msra.mxu0 0.0
        %346 = vmatpush.msra.mxu0 0.0
        %347 = vmatpush.msra.mxu0 0.0
        %348 = vmatpush.msra.mxu0 0.0
        %349 = vmatpush.msra.mxu0 0.0
        %350 = vmatpush.msra.mxu0 0.0
        %351 = vmatpush.msra.mxu0 0.0
        %352 = vmatpush.msra.mxu0 0.0
        %353 = vmatpush.msra.mxu0 0.0
        %354 = vmatpush.msra.mxu0 0.0
        %355 = vmatpush.msra.mxu0 0.0
        %356 = vmatpush.msra.mxu0 0.0
        %357 = vmatpush.msra.mxu0 %v333
        %358 = vmatmul.f32.gmra.mxu0 %v338
        %v359 = vpop.f32.mrf.mxu0
        %v360 = vadd.f32 0.0, %v359
        %361 = vmatmul.f32.gmra.mxu0 %v340
        %v362 = vpop.f32.mrf.mxu0
        %v363 = vadd.f32 0.0, %v362
        %364 = vdwg.mxu0
        %s365 = scalar_lea.vmem %s193, 32 [#allocation2]
        %366 = vst.msk [vmem:[%s365] sm:$0xff] %vm293, %v360
        %367 = vst.msk [vmem:[%s365 + $0x8] sm:$0xff] %vm293, %v363
        %v368 = vmax.f32 %v331, %v360
        %v369 = vmax.f32 %v332, %v363
        %v370 = vld [vmem:[%s2] sm:$0xff]
        %371 = vrot.lane.b32.xlu0 %v235, 104
        %v372 = vpop.permute.xlu0 %371
        %373 = vrot.lane.b32.xlu0 %v238, 104
        %v374 = vpop.permute.xlu0 %373
        %v375 = vsel %vm210, %v372, 0
        %v377 = vsel %vm210, %v374, 0
        %379 = vmatpush.msra.mxu0 0.0
        %380 = vmatpush.msra.mxu0 0.0
        %381 = vmatpush.msra.mxu0 0.0
        %382 = vmatpush.msra.mxu0 0.0
        %383 = vmatpush.msra.mxu0 0.0
        %384 = vmatpush.msra.mxu0 0.0
        %385 = vmatpush.msra.mxu0 0.0
        %386 = vmatpush.msra.mxu0 0.0
        %387 = vmatpush.msra.mxu0 0.0
        %388 = vmatpush.msra.mxu0 0.0
        %389 = vmatpush.msra.mxu0 0.0
        %390 = vmatpush.msra.mxu0 0.0
        %391 = vmatpush.msra.mxu0 0.0
        %392 = vmatpush.msra.mxu0 0.0
        %393 = vmatpush.msra.mxu0 0.0
        %394 = vmatpush.msra.mxu0 %v370
        %395 = vmatmul.f32.gmra.mxu0 %v375
        %v396 = vpop.f32.mrf.mxu0
        %v397 = vadd.f32 0.0, %v396
        %398 = vmatmul.f32.gmra.mxu0 %v377
        %v399 = vpop.f32.mrf.mxu0
        %v400 = vadd.f32 0.0, %v399
        %401 = vdwg.mxu0
        %s402 = scalar_lea.vmem %s193, 48 [#allocation2]
        %403 = vst.msk [vmem:[%s402] sm:$0xff] %vm293, %v397
        %404 = vst.msk [vmem:[%s402 + $0x8] sm:$0xff] %vm293, %v400
        %v405 = vmax.f32 %v368, %v397
        %v406 = vmax.f32 %v369, %v400
        %v407 = vld [vmem:[%s2] sm:$0xff]
        %408 = vrot.lane.b32.xlu0 %v235, 96
        %v409 = vpop.permute.xlu0 %408
        %410 = vrot.lane.b32.xlu0 %v238, 96
        %v411 = vpop.permute.xlu0 %410
        %v412 = vsel %vm210, %v409, 0
        %v414 = vsel %vm210, %v411, 0
        %416 = vmatpush.msra.mxu0 0.0
        %417 = vmatpush.msra.mxu0 0.0
        %418 = vmatpush.msra.mxu0 0.0
        %419 = vmatpush.msra.mxu0 0.0
        %420 = vmatpush.msra.mxu0 0.0
        %421 = vmatpush.msra.mxu0 0.0
        %422 = vmatpush.msra.mxu0 0.0
        %423 = vmatpush.msra.mxu0 0.0
        %424 = vmatpush.msra.mxu0 0.0
        %425 = vmatpush.msra.mxu0 0.0
        %426 = vmatpush.msra.mxu0 0.0
        %427 = vmatpush.msra.mxu0 0.0
        %428 = vmatpush.msra.mxu0 0.0
        %429 = vmatpush.msra.mxu0 0.0
        %430 = vmatpush.msra.mxu0 0.0
        %431 = vmatpush.msra.mxu0 %v407
        %432 = vmatmul.f32.gmra.mxu0 %v412
        %v433 = vpop.f32.mrf.mxu0
        %v434 = vadd.f32 0.0, %v433
        %435 = vmatmul.f32.gmra.mxu0 %v414
        %v436 = vpop.f32.mrf.mxu0
        %v437 = vadd.f32 0.0, %v436
        %438 = vdwg.mxu0
        %s439 = scalar_lea.vmem %s193, 64 [#allocation2]
        %440 = vst.msk [vmem:[%s439] sm:$0xff] %vm293, %v434
        %441 = vst.msk [vmem:[%s439 + $0x8] sm:$0xff] %vm293, %v437
        %v442 = vmax.f32 %v405, %v434
        %v443 = vmax.f32 %v406, %v437
        %v444 = vld [vmem:[%s2] sm:$0xff]
        %445 = vrot.lane.b32.xlu0 %v235, 88
        %v446 = vpop.permute.xlu0 %445
        %447 = vrot.lane.b32.xlu0 %v238, 88
        %v448 = vpop.permute.xlu0 %447
        %v449 = vsel %vm210, %v446, 0
        %v451 = vsel %vm210, %v448, 0
        %453 = vmatpush.msra.mxu0 0.0
        %454 = vmatpush.msra.mxu0 0.0
        %455 = vmatpush.msra.mxu0 0.0
        %456 = vmatpush.msra.mxu0 0.0
        %457 = vmatpush.msra.mxu0 0.0
        %458 = vmatpush.msra.mxu0 0.0
        %459 = vmatpush.msra.mxu0 0.0
        %460 = vmatpush.msra.mxu0 0.0
        %461 = vmatpush.msra.mxu0 0.0
        %462 = vmatpush.msra.mxu0 0.0
        %463 = vmatpush.msra.mxu0 0.0
        %464 = vmatpush.msra.mxu0 0.0
        %465 = vmatpush.msra.mxu0 0.0
        %466 = vmatpush.msra.mxu0 0.0
        %467 = vmatpush.msra.mxu0 0.0
        %468 = vmatpush.msra.mxu0 %v444
        %469 = vmatmul.f32.gmra.mxu0 %v449
        %v470 = vpop.f32.mrf.mxu0
        %v471 = vadd.f32 0.0, %v470
        %472 = vmatmul.f32.gmra.mxu0 %v451
        %v473 = vpop.f32.mrf.mxu0
        %v474 = vadd.f32 0.0, %v473
        %475 = vdwg.mxu0
        %s476 = scalar_lea.vmem %s193, 80 [#allocation2]
        %477 = vst.msk [vmem:[%s476] sm:$0xff] %vm293, %v471
        %478 = vst.msk [vmem:[%s476 + $0x8] sm:$0xff] %vm293, %v474
        %v479 = vmax.f32 %v442, %v471
        %v480 = vmax.f32 %v443, %v474
        %v481 = vld [vmem:[%s2] sm:$0xff]
        %482 = vrot.lane.b32.xlu0 %v235, 80
        %v483 = vpop.permute.xlu0 %482
        %484 = vrot.lane.b32.xlu0 %v238, 80
        %v485 = vpop.permute.xlu0 %484
        %v486 = vsel %vm210, %v483, 0
        %v488 = vsel %vm210, %v485, 0
        %490 = vmatpush.msra.mxu0 0.0
        %491 = vmatpush.msra.mxu0 0.0
        %492 = vmatpush.msra.mxu0 0.0
        %493 = vmatpush.msra.mxu0 0.0
        %494 = vmatpush.msra.mxu0 0.0
        %495 = vmatpush.msra.mxu0 0.0
        %496 = vmatpush.msra.mxu0 0.0
        %497 = vmatpush.msra.mxu0 0.0
        %498 = vmatpush.msra.mxu0 0.0
        %499 = vmatpush.msra.mxu0 0.0
        %500 = vmatpush.msra.mxu0 0.0
        %501 = vmatpush.msra.mxu0 0.0
        %502 = vmatpush.msra.mxu0 0.0
        %503 = vmatpush.msra.mxu0 0.0
        %504 = vmatpush.msra.mxu0 0.0
        %505 = vmatpush.msra.mxu0 %v481
        %506 = vmatmul.f32.gmra.mxu0 %v486
        %v507 = vpop.f32.mrf.mxu0
        %v508 = vadd.f32 0.0, %v507
        %509 = vmatmul.f32.gmra.mxu0 %v488
        %v510 = vpop.f32.mrf.mxu0
        %v511 = vadd.f32 0.0, %v510
        %512 = vdwg.mxu0
        %s513 = scalar_lea.vmem %s193, 96 [#allocation2]
        %514 = vst.msk [vmem:[%s513] sm:$0xff] %vm293, %v508
        %515 = vst.msk [vmem:[%s513 + $0x8] sm:$0xff] %vm293, %v511
        %v516 = vmax.f32 %v479, %v508
        %v517 = vmax.f32 %v480, %v511
        %v518 = vld [vmem:[%s2] sm:$0xff]
        %519 = vrot.lane.b32.xlu0 %v235, 72
        %v520 = vpop.permute.xlu0 %519
        %521 = vrot.lane.b32.xlu0 %v238, 72
        %v522 = vpop.permute.xlu0 %521
        %v523 = vsel %vm210, %v520, 0
        %v525 = vsel %vm210, %v522, 0
        %527 = vmatpush.msra.mxu0 0.0
        %528 = vmatpush.msra.mxu0 0.0
        %529 = vmatpush.msra.mxu0 0.0
        %530 = vmatpush.msra.mxu0 0.0
        %531 = vmatpush.msra.mxu0 0.0
        %532 = vmatpush.msra.mxu0 0.0
        %533 = vmatpush.msra.mxu0 0.0
        %534 = vmatpush.msra.mxu0 0.0
        %535 = vmatpush.msra.mxu0 0.0
        %536 = vmatpush.msra.mxu0 0.0
        %537 = vmatpush.msra.mxu0 0.0
        %538 = vmatpush.msra.mxu0 0.0
        %539 = vmatpush.msra.mxu0 0.0
        %540 = vmatpush.msra.mxu0 0.0
        %541 = vmatpush.msra.mxu0 0.0
        %542 = vmatpush.msra.mxu0 %v518
        %543 = vmatmul.f32.gmra.mxu0 %v523
        %v544 = vpop.f32.mrf.mxu0
        %v545 = vadd.f32 0.0, %v544
        %546 = vmatmul.f32.gmra.mxu0 %v525
        %v547 = vpop.f32.mrf.mxu0
        %v548 = vadd.f32 0.0, %v547
        %549 = vdwg.mxu0
        %s550 = scalar_lea.vmem %s193, 112 [#allocation2]
        %551 = vst.msk [vmem:[%s550] sm:$0xff] %vm293, %v545
        %552 = vst.msk [vmem:[%s550 + $0x8] sm:$0xff] %vm293, %v548
        %v553 = vmax.f32 %v516, %v545
        %v554 = vmax.f32 %v517, %v548
        %v555 = vld [vmem:[%s2] sm:$0xff]
        %556 = vrot.lane.b32.xlu0 %v235, 64
        %v557 = vpop.permute.xlu0 %556
        %558 = vrot.lane.b32.xlu0 %v238, 64
        %v559 = vpop.permute.xlu0 %558
        %v560 = vsel %vm210, %v557, 0
        %v562 = vsel %vm210, %v559, 0
        %564 = vmatpush.msra.mxu0 0.0
        %565 = vmatpush.msra.mxu0 0.0
        %566 = vmatpush.msra.mxu0 0.0
        %567 = vmatpush.msra.mxu0 0.0
        %568 = vmatpush.msra.mxu0 0.0
        %569 = vmatpush.msra.mxu0 0.0
        %570 = vmatpush.msra.mxu0 0.0
        %571 = vmatpush.msra.mxu0 0.0
        %572 = vmatpush.msra.mxu0 0.0
        %573 = vmatpush.msra.mxu0 0.0
        %574 = vmatpush.msra.mxu0 0.0
        %575 = vmatpush.msra.mxu0 0.0
        %576 = vmatpush.msra.mxu0 0.0
        %577 = vmatpush.msra.mxu0 0.0
        %578 = vmatpush.msra.mxu0 0.0
        %579 = vmatpush.msra.mxu0 %v555
        %580 = vmatmul.f32.gmra.mxu0 %v560
        %v581 = vpop.f32.mrf.mxu0
        %v582 = vadd.f32 0.0, %v581
        %583 = vmatmul.f32.gmra.mxu0 %v562
        %v584 = vpop.f32.mrf.mxu0
        %v585 = vadd.f32 0.0, %v584
        %586 = vdwg.mxu0
        %s587 = scalar_lea.vmem %s193, 128 [#allocation2]
        %588 = vst.msk [vmem:[%s587] sm:$0xff] %vm293, %v582
        %589 = vst.msk [vmem:[%s587 + $0x8] sm:$0xff] %vm293, %v585
        %v590 = vmax.f32 %v553, %v582
        %v591 = vmax.f32 %v554, %v585
        %v592 = vld [vmem:[%s2] sm:$0xff]
        %593 = vrot.lane.b32.xlu0 %v235, 56
        %v594 = vpop.permute.xlu0 %593
        %595 = vrot.lane.b32.xlu0 %v238, 56
        %v596 = vpop.permute.xlu0 %595
        %v597 = vsel %vm210, %v594, 0
        %v599 = vsel %vm210, %v596, 0
        %601 = vmatpush.msra.mxu0 0.0
        %602 = vmatpush.msra.mxu0 0.0
        %603 = vmatpush.msra.mxu0 0.0
        %604 = vmatpush.msra.mxu0 0.0
        %605 = vmatpush.msra.mxu0 0.0
        %606 = vmatpush.msra.mxu0 0.0
        %607 = vmatpush.msra.mxu0 0.0
        %608 = vmatpush.msra.mxu0 0.0
        %609 = vmatpush.msra.mxu0 0.0
        %610 = vmatpush.msra.mxu0 0.0
        %611 = vmatpush.msra.mxu0 0.0
        %612 = vmatpush.msra.mxu0 0.0
        %613 = vmatpush.msra.mxu0 0.0
        %614 = vmatpush.msra.mxu0 0.0
        %615 = vmatpush.msra.mxu0 0.0
        %616 = vmatpush.msra.mxu0 %v592
        %617 = vmatmul.f32.gmra.mxu0 %v597
        %v618 = vpop.f32.mrf.mxu0
        %v619 = vadd.f32 0.0, %v618
        %620 = vmatmul.f32.gmra.mxu0 %v599
        %v621 = vpop.f32.mrf.mxu0
        %v622 = vadd.f32 0.0, %v621
        %623 = vdwg.mxu0
        %s624 = scalar_lea.vmem %s193, 144 [#allocation2]
        %625 = vst.msk [vmem:[%s624] sm:$0xff] %vm293, %v619
        %626 = vst.msk [vmem:[%s624 + $0x8] sm:$0xff] %vm293, %v622
        %v627 = vmax.f32 %v590, %v619
        %v628 = vmax.f32 %v591, %v622
        %v629 = vld [vmem:[%s2] sm:$0xff]
        %630 = vrot.lane.b32.xlu0 %v235, 48
        %v631 = vpop.permute.xlu0 %630
        %632 = vrot.lane.b32.xlu0 %v238, 48
        %v633 = vpop.permute.xlu0 %632
        %v634 = vsel %vm210, %v631, 0
        %v636 = vsel %vm210, %v633, 0
        %638 = vmatpush.msra.mxu0 0.0
        %639 = vmatpush.msra.mxu0 0.0
        %640 = vmatpush.msra.mxu0 0.0
        %641 = vmatpush.msra.mxu0 0.0
        %642 = vmatpush.msra.mxu0 0.0
        %643 = vmatpush.msra.mxu0 0.0
        %644 = vmatpush.msra.mxu0 0.0
        %645 = vmatpush.msra.mxu0 0.0
        %646 = vmatpush.msra.mxu0 0.0
        %647 = vmatpush.msra.mxu0 0.0
        %648 = vmatpush.msra.mxu0 0.0
        %649 = vmatpush.msra.mxu0 0.0
        %650 = vmatpush.msra.mxu0 0.0
        %651 = vmatpush.msra.mxu0 0.0
        %652 = vmatpush.msra.mxu0 0.0
        %653 = vmatpush.msra.mxu0 %v629
        %654 = vmatmul.f32.gmra.mxu0 %v634
        %v655 = vpop.f32.mrf.mxu0
        %v656 = vadd.f32 0.0, %v655
        %657 = vmatmul.f32.gmra.mxu0 %v636
        %v658 = vpop.f32.mrf.mxu0
        %v659 = vadd.f32 0.0, %v658
        %660 = vdwg.mxu0
        %s661 = scalar_lea.vmem %s193, 160 [#allocation2]
        %662 = vst.msk [vmem:[%s661] sm:$0xff] %vm293, %v656
        %663 = vst.msk [vmem:[%s661 + $0x8] sm:$0xff] %vm293, %v659
        %v664 = vmax.f32 %v627, %v656
        %v665 = vmax.f32 %v628, %v659
        %v666 = vld [vmem:[%s2] sm:$0xff]
        %667 = vrot.lane.b32.xlu0 %v235, 40
        %v668 = vpop.permute.xlu0 %667
        %669 = vrot.lane.b32.xlu0 %v238, 40
        %v670 = vpop.permute.xlu0 %669
        %v671 = vsel %vm210, %v668, 0
        %v673 = vsel %vm210, %v670, 0
        %675 = vmatpush.msra.mxu0 0.0
        %676 = vmatpush.msra.mxu0 0.0
        %677 = vmatpush.msra.mxu0 0.0
        %678 = vmatpush.msra.mxu0 0.0
        %679 = vmatpush.msra.mxu0 0.0
        %680 = vmatpush.msra.mxu0 0.0
        %681 = vmatpush.msra.mxu0 0.0
        %682 = vmatpush.msra.mxu0 0.0
        %683 = vmatpush.msra.mxu0 0.0
        %684 = vmatpush.msra.mxu0 0.0
        %685 = vmatpush.msra.mxu0 0.0
        %686 = vmatpush.msra.mxu0 0.0
        %687 = vmatpush.msra.mxu0 0.0
        %688 = vmatpush.msra.mxu0 0.0
        %689 = vmatpush.msra.mxu0 0.0
        %690 = vmatpush.msra.mxu0 %v666
        %691 = vmatmul.f32.gmra.mxu0 %v671
        %v692 = vpop.f32.mrf.mxu0
        %v693 = vadd.f32 0.0, %v692
        %694 = vmatmul.f32.gmra.mxu0 %v673
        %v695 = vpop.f32.mrf.mxu0
        %v696 = vadd.f32 0.0, %v695
        %697 = vdwg.mxu0
        %s698 = scalar_lea.vmem %s193, 176 [#allocation2]
        %699 = vst.msk [vmem:[%s698] sm:$0xff] %vm293, %v693
        %700 = vst.msk [vmem:[%s698 + $0x8] sm:$0xff] %vm293, %v696
        %v701 = vmax.f32 %v664, %v693
        %v702 = vmax.f32 %v665, %v696
        %v703 = vld [vmem:[%s2] sm:$0xff]
        %704 = vrot.lane.b32.xlu0 %v235, 32
        %v705 = vpop.permute.xlu0 %704
        %706 = vrot.lane.b32.xlu0 %v238, 32
        %v707 = vpop.permute.xlu0 %706
        %v708 = vsel %vm210, %v705, 0
        %v710 = vsel %vm210, %v707, 0
        %712 = vmatpush.msra.mxu0 0.0
        %713 = vmatpush.msra.mxu0 0.0
        %714 = vmatpush.msra.mxu0 0.0
        %715 = vmatpush.msra.mxu0 0.0
        %716 = vmatpush.msra.mxu0 0.0
        %717 = vmatpush.msra.mxu0 0.0
        %718 = vmatpush.msra.mxu0 0.0
        %719 = vmatpush.msra.mxu0 0.0
        %720 = vmatpush.msra.mxu0 0.0
        %721 = vmatpush.msra.mxu0 0.0
        %722 = vmatpush.msra.mxu0 0.0
        %723 = vmatpush.msra.mxu0 0.0
        %724 = vmatpush.msra.mxu0 0.0
        %725 = vmatpush.msra.mxu0 0.0
        %726 = vmatpush.msra.mxu0 0.0
        %727 = vmatpush.msra.mxu0 %v703
        %728 = vmatmul.f32.gmra.mxu0 %v708
        %v729 = vpop.f32.mrf.mxu0
        %v730 = vadd.f32 0.0, %v729
        %731 = vmatmul.f32.gmra.mxu0 %v710
        %v732 = vpop.f32.mrf.mxu0
        %v733 = vadd.f32 0.0, %v732
        %734 = vdwg.mxu0
        %s735 = scalar_lea.vmem %s193, 192 [#allocation2]
        %736 = vst.msk [vmem:[%s735] sm:$0xff] %vm293, %v730
        %737 = vst.msk [vmem:[%s735 + $0x8] sm:$0xff] %vm293, %v733
        %v738 = vmax.f32 %v701, %v730
        %v739 = vmax.f32 %v702, %v733
        %v740 = vld [vmem:[%s2] sm:$0xff]
        %741 = vrot.lane.b32.xlu0 %v235, 24
        %v742 = vpop.permute.xlu0 %741
        %743 = vrot.lane.b32.xlu0 %v238, 24
        %v744 = vpop.permute.xlu0 %743
        %v745 = vsel %vm210, %v742, 0
        %v747 = vsel %vm210, %v744, 0
        %749 = vmatpush.msra.mxu0 0.0
        %750 = vmatpush.msra.mxu0 0.0
        %751 = vmatpush.msra.mxu0 0.0
        %752 = vmatpush.msra.mxu0 0.0
        %753 = vmatpush.msra.mxu0 0.0
        %754 = vmatpush.msra.mxu0 0.0
        %755 = vmatpush.msra.mxu0 0.0
        %756 = vmatpush.msra.mxu0 0.0
        %757 = vmatpush.msra.mxu0 0.0
        %758 = vmatpush.msra.mxu0 0.0
        %759 = vmatpush.msra.mxu0 0.0
        %760 = vmatpush.msra.mxu0 0.0
        %761 = vmatpush.msra.mxu0 0.0
        %762 = vmatpush.msra.mxu0 0.0
        %763 = vmatpush.msra.mxu0 0.0
        %764 = vmatpush.msra.mxu0 %v740
        %765 = vmatmul.f32.gmra.mxu0 %v745
        %v766 = vpop.f32.mrf.mxu0
        %v767 = vadd.f32 0.0, %v766
        %768 = vmatmul.f32.gmra.mxu0 %v747
        %v769 = vpop.f32.mrf.mxu0
        %v770 = vadd.f32 0.0, %v769
        %771 = vdwg.mxu0
        %s772 = scalar_lea.vmem %s193, 208 [#allocation2]
        %773 = vst.msk [vmem:[%s772] sm:$0xff] %vm293, %v767
        %774 = vst.msk [vmem:[%s772 + $0x8] sm:$0xff] %vm293, %v770
        %v775 = vmax.f32 %v738, %v767
        %v776 = vmax.f32 %v739, %v770
        %v777 = vld [vmem:[%s2] sm:$0xff]
        %778 = vrot.lane.b32.xlu0 %v235, 16
        %v779 = vpop.permute.xlu0 %778
        %780 = vrot.lane.b32.xlu0 %v238, 16
        %v781 = vpop.permute.xlu0 %780
        %v782 = vsel %vm210, %v779, 0
        %v784 = vsel %vm210, %v781, 0
        %786 = vmatpush.msra.mxu0 0.0
        %787 = vmatpush.msra.mxu0 0.0
        %788 = vmatpush.msra.mxu0 0.0
        %789 = vmatpush.msra.mxu0 0.0
        %790 = vmatpush.msra.mxu0 0.0
        %791 = vmatpush.msra.mxu0 0.0
        %792 = vmatpush.msra.mxu0 0.0
        %793 = vmatpush.msra.mxu0 0.0
        %794 = vmatpush.msra.mxu0 0.0
        %795 = vmatpush.msra.mxu0 0.0
        %796 = vmatpush.msra.mxu0 0.0
        %797 = vmatpush.msra.mxu0 0.0
        %798 = vmatpush.msra.mxu0 0.0
        %799 = vmatpush.msra.mxu0 0.0
        %800 = vmatpush.msra.mxu0 0.0
        %801 = vmatpush.msra.mxu0 %v777
        %802 = vmatmul.f32.gmra.mxu0 %v782
        %v803 = vpop.f32.mrf.mxu0
        %v804 = vadd.f32 0.0, %v803
        %805 = vmatmul.f32.gmra.mxu0 %v784
        %v806 = vpop.f32.mrf.mxu0
        %v807 = vadd.f32 0.0, %v806
        %808 = vdwg.mxu0
        %s809 = scalar_lea.vmem %s193, 224 [#allocation2]
        %810 = vst.msk [vmem:[%s809] sm:$0xff] %vm293, %v804
        %811 = vst.msk [vmem:[%s809 + $0x8] sm:$0xff] %vm293, %v807
        %v812 = vmax.f32 %v775, %v804
        %v813 = vmax.f32 %v776, %v807
        %v814 = vld [vmem:[%s2] sm:$0xff]
        %815 = vrot.lane.b32.xlu0 %v235, 8
        %v816 = vpop.permute.xlu0 %815
        %817 = vrot.lane.b32.xlu0 %v238, 8
        %v818 = vpop.permute.xlu0 %817
        %v819 = vsel %vm210, %v816, 0
        %v821 = vsel %vm210, %v818, 0
        %823 = vmatpush.msra.mxu0 0.0
        %824 = vmatpush.msra.mxu0 0.0
        %825 = vmatpush.msra.mxu0 0.0
        %826 = vmatpush.msra.mxu0 0.0
        %827 = vmatpush.msra.mxu0 0.0
        %828 = vmatpush.msra.mxu0 0.0
        %829 = vmatpush.msra.mxu0 0.0
        %830 = vmatpush.msra.mxu0 0.0
        %831 = vmatpush.msra.mxu0 0.0
        %832 = vmatpush.msra.mxu0 0.0
        %833 = vmatpush.msra.mxu0 0.0
        %834 = vmatpush.msra.mxu0 0.0
        %835 = vmatpush.msra.mxu0 0.0
        %836 = vmatpush.msra.mxu0 0.0
        %837 = vmatpush.msra.mxu0 0.0
        %838 = vmatpush.msra.mxu0 %v814
        %839 = vmatmul.f32.gmra.mxu0 %v819
        %v840 = vpop.f32.mrf.mxu0
        %v841 = vadd.f32 0.0, %v840
        %842 = vmatmul.f32.gmra.mxu0 %v821
        %v843 = vpop.f32.mrf.mxu0
        %v844 = vadd.f32 0.0, %v843
        %845 = vdwg.mxu0
        %s846 = scalar_lea.vmem %s193, 240 [#allocation2]
        %847 = vst.msk [vmem:[%s846] sm:$0xff] %vm293, %v841
        %848 = vst.msk [vmem:[%s846 + $0x8] sm:$0xff] %vm293, %v844
        %v849 = vmax.f32 %v812, %v841
        %v850 = vmax.f32 %v813, %v844
        %v851 = vld [vmem:[%s2] sm:$0xff]
        %v853 = vsel %vm210, %v258, 0
        %v856 = vsel %vm210, %v261, 0
        %858 = vmatpush.msra.mxu0 0.0
        %859 = vmatpush.msra.mxu0 0.0
        %860 = vmatpush.msra.mxu0 0.0
        %861 = vmatpush.msra.mxu0 0.0
        %862 = vmatpush.msra.mxu0 0.0
        %863 = vmatpush.msra.mxu0 0.0
        %864 = vmatpush.msra.mxu0 0.0
        %865 = vmatpush.msra.mxu0 0.0
        %866 = vmatpush.msra.mxu0 0.0
        %867 = vmatpush.msra.mxu0 0.0
        %868 = vmatpush.msra.mxu0 0.0
        %869 = vmatpush.msra.mxu0 0.0
        %870 = vmatpush.msra.mxu0 0.0
        %871 = vmatpush.msra.mxu0 0.0
        %872 = vmatpush.msra.mxu0 0.0
        %873 = vmatpush.msra.mxu0 %v851
        %874 = vmatmul.f32.gmra.mxu0 %v853
        %v875 = vpop.f32.mrf.mxu0
        %v876 = vadd.f32 0.0, %v875
        %877 = vmatmul.f32.gmra.mxu0 %v856
        %v878 = vpop.f32.mrf.mxu0
        %v879 = vadd.f32 0.0, %v878
        %880 = vdwg.mxu0
        %s881 = scalar_lea.vmem %s193, 256 [#allocation2]
        %882 = vst.msk [vmem:[%s881] sm:$0xff] %vm293, %v876
        %883 = vst.msk [vmem:[%s881 + $0x8] sm:$0xff] %vm293, %v879
        %v884 = vmax.f32 %v849, %v876
        %v885 = vmax.f32 %v850, %v879
        %v886 = vld [vmem:[%s2] sm:$0xff]
        %887 = vrot.lane.b32.xlu0 %v258, 120
        %v888 = vpop.permute.xlu0 %887
        %889 = vrot.lane.b32.xlu0 %v261, 120
        %v890 = vpop.permute.xlu0 %889
        %v891 = vsel %vm210, %v888, 0
        %v893 = vsel %vm210, %v890, 0
        %895 = vmatpush.msra.mxu0 0.0
        %896 = vmatpush.msra.mxu0 0.0
        %897 = vmatpush.msra.mxu0 0.0
        %898 = vmatpush.msra.mxu0 0.0
        %899 = vmatpush.msra.mxu0 0.0
        %900 = vmatpush.msra.mxu0 0.0
        %901 = vmatpush.msra.mxu0 0.0
        %902 = vmatpush.msra.mxu0 0.0
        %903 = vmatpush.msra.mxu0 0.0
        %904 = vmatpush.msra.mxu0 0.0
        %905 = vmatpush.msra.mxu0 0.0
        %906 = vmatpush.msra.mxu0 0.0
        %907 = vmatpush.msra.mxu0 0.0
        %908 = vmatpush.msra.mxu0 0.0
        %909 = vmatpush.msra.mxu0 0.0
        %910 = vmatpush.msra.mxu0 %v886
        %911 = vmatmul.f32.gmra.mxu0 %v891
        %v912 = vpop.f32.mrf.mxu0
        %v913 = vadd.f32 0.0, %v912
        %914 = vmatmul.f32.gmra.mxu0 %v893
        %v915 = vpop.f32.mrf.mxu0
        %v916 = vadd.f32 0.0, %v915
        %917 = vdwg.mxu0
        %s918 = scalar_lea.vmem %s193, 272 [#allocation2]
        %919 = vst.msk [vmem:[%s918] sm:$0xff] %vm293, %v913
        %920 = vst.msk [vmem:[%s918 + $0x8] sm:$0xff] %vm293, %v916
        %v921 = vmax.f32 %v884, %v913
        %v922 = vmax.f32 %v885, %v916
        %v923 = vld [vmem:[%s2] sm:$0xff]
        %924 = vrot.lane.b32.xlu0 %v258, 112
        %v925 = vpop.permute.xlu0 %924
        %926 = vrot.lane.b32.xlu0 %v261, 112
        %v927 = vpop.permute.xlu0 %926
        %v928 = vsel %vm210, %v925, 0
        %v930 = vsel %vm210, %v927, 0
        %932 = vmatpush.msra.mxu0 0.0
        %933 = vmatpush.msra.mxu0 0.0
        %934 = vmatpush.msra.mxu0 0.0
        %935 = vmatpush.msra.mxu0 0.0
        %936 = vmatpush.msra.mxu0 0.0
        %937 = vmatpush.msra.mxu0 0.0
        %938 = vmatpush.msra.mxu0 0.0
        %939 = vmatpush.msra.mxu0 0.0
        %940 = vmatpush.msra.mxu0 0.0
        %941 = vmatpush.msra.mxu0 0.0
        %942 = vmatpush.msra.mxu0 0.0
        %943 = vmatpush.msra.mxu0 0.0
        %944 = vmatpush.msra.mxu0 0.0
        %945 = vmatpush.msra.mxu0 0.0
        %946 = vmatpush.msra.mxu0 0.0
        %947 = vmatpush.msra.mxu0 %v923
        %948 = vmatmul.f32.gmra.mxu0 %v928
        %v949 = vpop.f32.mrf.mxu0
        %v950 = vadd.f32 0.0, %v949
        %951 = vmatmul.f32.gmra.mxu0 %v930
        %v952 = vpop.f32.mrf.mxu0
        %v953 = vadd.f32 0.0, %v952
        %954 = vdwg.mxu0
        %s955 = scalar_lea.vmem %s193, 288 [#allocation2]
        %956 = vst.msk [vmem:[%s955] sm:$0xff] %vm293, %v950
        %957 = vst.msk [vmem:[%s955 + $0x8] sm:$0xff] %vm293, %v953
        %v958 = vmax.f32 %v921, %v950
        %v959 = vmax.f32 %v922, %v953
        %v960 = vld [vmem:[%s2] sm:$0xff]
        %961 = vrot.lane.b32.xlu0 %v258, 104
        %v962 = vpop.permute.xlu0 %961
        %963 = vrot.lane.b32.xlu0 %v261, 104
        %v964 = vpop.permute.xlu0 %963
        %v965 = vsel %vm210, %v962, 0
        %v967 = vsel %vm210, %v964, 0
        %969 = vmatpush.msra.mxu0 0.0
        %970 = vmatpush.msra.mxu0 0.0
        %971 = vmatpush.msra.mxu0 0.0
        %972 = vmatpush.msra.mxu0 0.0
        %973 = vmatpush.msra.mxu0 0.0
        %974 = vmatpush.msra.mxu0 0.0
        %975 = vmatpush.msra.mxu0 0.0
        %976 = vmatpush.msra.mxu0 0.0
        %977 = vmatpush.msra.mxu0 0.0
        %978 = vmatpush.msra.mxu0 0.0
        %979 = vmatpush.msra.mxu0 0.0
        %980 = vmatpush.msra.mxu0 0.0
        %981 = vmatpush.msra.mxu0 0.0
        %982 = vmatpush.msra.mxu0 0.0
        %983 = vmatpush.msra.mxu0 0.0
        %984 = vmatpush.msra.mxu0 %v960
        %985 = vmatmul.f32.gmra.mxu0 %v965
        %v986 = vpop.f32.mrf.mxu0
        %v987 = vadd.f32 0.0, %v986
        %988 = vmatmul.f32.gmra.mxu0 %v967
        %v989 = vpop.f32.mrf.mxu0
        %v990 = vadd.f32 0.0, %v989
        %991 = vdwg.mxu0
        %s992 = scalar_lea.vmem %s193, 304 [#allocation2]
        %993 = vst.msk [vmem:[%s992] sm:$0xff] %vm293, %v987
        %994 = vst.msk [vmem:[%s992 + $0x8] sm:$0xff] %vm293, %v990
        %v995 = vmax.f32 %v958, %v987
        %v996 = vmax.f32 %v959, %v990
        %v997 = vld [vmem:[%s2] sm:$0xff]
        %998 = vrot.lane.b32.xlu0 %v258, 96
        %v999 = vpop.permute.xlu0 %998
        %1000 = vrot.lane.b32.xlu0 %v261, 96
        %v1001 = vpop.permute.xlu0 %1000
        %v1002 = vsel %vm210, %v999, 0
        %v1004 = vsel %vm210, %v1001, 0
        %1006 = vmatpush.msra.mxu0 0.0
        %1007 = vmatpush.msra.mxu0 0.0
        %1008 = vmatpush.msra.mxu0 0.0
        %1009 = vmatpush.msra.mxu0 0.0
        %1010 = vmatpush.msra.mxu0 0.0
        %1011 = vmatpush.msra.mxu0 0.0
        %1012 = vmatpush.msra.mxu0 0.0
        %1013 = vmatpush.msra.mxu0 0.0
        %1014 = vmatpush.msra.mxu0 0.0
        %1015 = vmatpush.msra.mxu0 0.0
        %1016 = vmatpush.msra.mxu0 0.0
        %1017 = vmatpush.msra.mxu0 0.0
        %1018 = vmatpush.msra.mxu0 0.0
        %1019 = vmatpush.msra.mxu0 0.0
        %1020 = vmatpush.msra.mxu0 0.0
        %1021 = vmatpush.msra.mxu0 %v997
        %1022 = vmatmul.f32.gmra.mxu0 %v1002
        %v1023 = vpop.f32.mrf.mxu0
        %v1024 = vadd.f32 0.0, %v1023
        %1025 = vmatmul.f32.gmra.mxu0 %v1004
        %v1026 = vpop.f32.mrf.mxu0
        %v1027 = vadd.f32 0.0, %v1026
        %1028 = vdwg.mxu0
        %s1029 = scalar_lea.vmem %s193, 320 [#allocation2]
        %1030 = vst.msk [vmem:[%s1029] sm:$0xff] %vm293, %v1024
        %1031 = vst.msk [vmem:[%s1029 + $0x8] sm:$0xff] %vm293, %v1027
        %v1032 = vmax.f32 %v995, %v1024
        %v1033 = vmax.f32 %v996, %v1027
        %v1034 = vld [vmem:[%s193] sm:$0xff]
        %v1035 = vld [vmem:[%s193 + $0x8] sm:$0xff]
        %v1036 = vsub.f32 %v1034, %v1032
        %v1037 = vsub.f32 %v1035, %v1033
        %v1038 = vmul.f32 %v1036, 1.442695
        %v1039 = vpow.pop %v1038
        %v1040 = vmul.f32 %v1037, 1.442695
        %v1041 = vpow.pop %v1040
        %1042 = vst.msk [vmem:[%s193] sm:$0xff] %vm293, %v1039
        %1043 = vst.msk [vmem:[%s193 + $0x8] sm:$0xff] %vm293, %v1041
        %v1044 = vld [vmem:[%s328] sm:$0xff]
        %v1045 = vld [vmem:[%s328 + $0x8] sm:$0xff]
        %v1046 = vsub.f32 %v1044, %v1032
        %v1047 = vsub.f32 %v1045, %v1033
        %v1048 = vmul.f32 %v1046, 1.442695
        %v1049 = vpow.pop %v1048
        %v1050 = vmul.f32 %v1047, 1.442695
        %v1051 = vpow.pop %v1050
        %1052 = vst.msk [vmem:[%s328] sm:$0xff] %vm293, %v1049
        %1053 = vst.msk [vmem:[%s328 + $0x8] sm:$0xff] %vm293, %v1051
        %v1054 = vadd.f32 %v1039, %v1049
        %v1055 = vadd.f32 %v1041, %v1051
        %v1056 = vld [vmem:[%s365] sm:$0xff]
        %v1057 = vld [vmem:[%s365 + $0x8] sm:$0xff]
        %v1058 = vsub.f32 %v1056, %v1032
        %v1059 = vsub.f32 %v1057, %v1033
        %v1060 = vmul.f32 %v1058, 1.442695
        %v1061 = vpow.pop %v1060
        %v1062 = vmul.f32 %v1059, 1.442695
        %v1063 = vpow.pop %v1062
        %1064 = vst.msk [vmem:[%s365] sm:$0xff] %vm293, %v1061
        %1065 = vst.msk [vmem:[%s365 + $0x8] sm:$0xff] %vm293, %v1063
        %v1066 = vadd.f32 %v1054, %v1061
        %v1067 = vadd.f32 %v1055, %v1063
        %v1068 = vld [vmem:[%s402] sm:$0xff]
        %v1069 = vld [vmem:[%s402 + $0x8] sm:$0xff]
        %v1070 = vsub.f32 %v1068, %v1032
        %v1071 = vsub.f32 %v1069, %v1033
        %v1072 = vmul.f32 %v1070, 1.442695
        %v1073 = vpow.pop %v1072
        %v1074 = vmul.f32 %v1071, 1.442695
        %v1075 = vpow.pop %v1074
        %1076 = vst.msk [vmem:[%s402] sm:$0xff] %vm293, %v1073
        %1077 = vst.msk [vmem:[%s402 + $0x8] sm:$0xff] %vm293, %v1075
        %v1078 = vadd.f32 %v1066, %v1073
        %v1079 = vadd.f32 %v1067, %v1075
        %v1080 = vld [vmem:[%s439] sm:$0xff]
        %v1081 = vld [vmem:[%s439 + $0x8] sm:$0xff]
        %v1082 = vsub.f32 %v1080, %v1032
        %v1083 = vsub.f32 %v1081, %v1033
        %v1084 = vmul.f32 %v1082, 1.442695
        %v1085 = vpow.pop %v1084
        %v1086 = vmul.f32 %v1083, 1.442695
        %v1087 = vpow.pop %v1086
        %1088 = vst.msk [vmem:[%s439] sm:$0xff] %vm293, %v1085
        %1089 = vst.msk [vmem:[%s439 + $0x8] sm:$0xff] %vm293, %v1087
        %v1090 = vadd.f32 %v1078, %v1085
        %v1091 = vadd.f32 %v1079, %v1087
        %v1092 = vld [vmem:[%s476] sm:$0xff]
        %v1093 = vld [vmem:[%s476 + $0x8] sm:$0xff]
        %v1094 = vsub.f32 %v1092, %v1032
        %v1095 = vsub.f32 %v1093, %v1033
        %v1096 = vmul.f32 %v1094, 1.442695
        %v1097 = vpow.pop %v1096
        %v1098 = vmul.f32 %v1095, 1.442695
        %v1099 = vpow.pop %v1098
        %1100 = vst.msk [vmem:[%s476] sm:$0xff] %vm293, %v1097
        %1101 = vst.msk [vmem:[%s476 + $0x8] sm:$0xff] %vm293, %v1099
        %v1102 = vadd.f32 %v1090, %v1097
        %v1103 = vadd.f32 %v1091, %v1099
        %v1104 = vld [vmem:[%s513] sm:$0xff]
        %v1105 = vld [vmem:[%s513 + $0x8] sm:$0xff]
        %v1106 = vsub.f32 %v1104, %v1032
        %v1107 = vsub.f32 %v1105, %v1033
        %v1108 = vmul.f32 %v1106, 1.442695
        %v1109 = vpow.pop %v1108
        %v1110 = vmul.f32 %v1107, 1.442695
        %v1111 = vpow.pop %v1110
        %1112 = vst.msk [vmem:[%s513] sm:$0xff] %vm293, %v1109
        %1113 = vst.msk [vmem:[%s513 + $0x8] sm:$0xff] %vm293, %v1111
        %v1114 = vadd.f32 %v1102, %v1109
        %v1115 = vadd.f32 %v1103, %v1111
        %v1116 = vld [vmem:[%s550] sm:$0xff]
        %v1117 = vld [vmem:[%s550 + $0x8] sm:$0xff]
        %v1118 = vsub.f32 %v1116, %v1032
        %v1119 = vsub.f32 %v1117, %v1033
        %v1120 = vmul.f32 %v1118, 1.442695
        %v1121 = vpow.pop %v1120
        %v1122 = vmul.f32 %v1119, 1.442695
        %v1123 = vpow.pop %v1122
        %1124 = vst.msk [vmem:[%s550] sm:$0xff] %vm293, %v1121
        %1125 = vst.msk [vmem:[%s550 + $0x8] sm:$0xff] %vm293, %v1123
        %v1126 = vadd.f32 %v1114, %v1121
        %v1127 = vadd.f32 %v1115, %v1123
        %v1128 = vld [vmem:[%s587] sm:$0xff]
        %v1129 = vld [vmem:[%s587 + $0x8] sm:$0xff]
        %v1130 = vsub.f32 %v1128, %v1032
        %v1131 = vsub.f32 %v1129, %v1033
        %v1132 = vmul.f32 %v1130, 1.442695
        %v1133 = vpow.pop %v1132
        %v1134 = vmul.f32 %v1131, 1.442695
        %v1135 = vpow.pop %v1134
        %1136 = vst.msk [vmem:[%s587] sm:$0xff] %vm293, %v1133
        %1137 = vst.msk [vmem:[%s587 + $0x8] sm:$0xff] %vm293, %v1135
        %v1138 = vadd.f32 %v1126, %v1133
        %v1139 = vadd.f32 %v1127, %v1135
        %v1140 = vld [vmem:[%s624] sm:$0xff]
        %v1141 = vld [vmem:[%s624 + $0x8] sm:$0xff]
        %v1142 = vsub.f32 %v1140, %v1032
        %v1143 = vsub.f32 %v1141, %v1033
        %v1144 = vmul.f32 %v1142, 1.442695
        %v1145 = vpow.pop %v1144
        %v1146 = vmul.f32 %v1143, 1.442695
        %v1147 = vpow.pop %v1146
        %1148 = vst.msk [vmem:[%s624] sm:$0xff] %vm293, %v1145
        %1149 = vst.msk [vmem:[%s624 + $0x8] sm:$0xff] %vm293, %v1147
        %v1150 = vadd.f32 %v1138, %v1145
        %v1151 = vadd.f32 %v1139, %v1147
        %v1152 = vld [vmem:[%s661] sm:$0xff]
        %v1153 = vld [vmem:[%s661 + $0x8] sm:$0xff]
        %v1154 = vsub.f32 %v1152, %v1032
        %v1155 = vsub.f32 %v1153, %v1033
        %v1156 = vmul.f32 %v1154, 1.442695
        %v1157 = vpow.pop %v1156
        %v1158 = vmul.f32 %v1155, 1.442695
        %v1159 = vpow.pop %v1158
        %1160 = vst.msk [vmem:[%s661] sm:$0xff] %vm293, %v1157
        %1161 = vst.msk [vmem:[%s661 + $0x8] sm:$0xff] %vm293, %v1159
        %v1162 = vadd.f32 %v1150, %v1157
        %v1163 = vadd.f32 %v1151, %v1159
        %v1164 = vld [vmem:[%s698] sm:$0xff]
        %v1165 = vld [vmem:[%s698 + $0x8] sm:$0xff]
        %v1166 = vsub.f32 %v1164, %v1032
        %v1167 = vsub.f32 %v1165, %v1033
        %v1168 = vmul.f32 %v1166, 1.442695
        %v1169 = vpow.pop %v1168
        %v1170 = vmul.f32 %v1167, 1.442695
        %v1171 = vpow.pop %v1170
        %1172 = vst.msk [vmem:[%s698] sm:$0xff] %vm293, %v1169
        %1173 = vst.msk [vmem:[%s698 + $0x8] sm:$0xff] %vm293, %v1171
        %v1174 = vadd.f32 %v1162, %v1169
        %v1175 = vadd.f32 %v1163, %v1171
        %v1176 = vld [vmem:[%s735] sm:$0xff]
        %v1177 = vld [vmem:[%s735 + $0x8] sm:$0xff]
        %v1178 = vsub.f32 %v1176, %v1032
        %v1179 = vsub.f32 %v1177, %v1033
        %v1180 = vmul.f32 %v1178, 1.442695
        %v1181 = vpow.pop %v1180
        %v1182 = vmul.f32 %v1179, 1.442695
        %v1183 = vpow.pop %v1182
        %1184 = vst.msk [vmem:[%s735] sm:$0xff] %vm293, %v1181
        %1185 = vst.msk [vmem:[%s735 + $0x8] sm:$0xff] %vm293, %v1183
        %v1186 = vadd.f32 %v1174, %v1181
        %v1187 = vadd.f32 %v1175, %v1183
        %v1188 = vld [vmem:[%s772] sm:$0xff]
        %v1189 = vld [vmem:[%s772 + $0x8] sm:$0xff]
        %v1190 = vsub.f32 %v1188, %v1032
        %v1191 = vsub.f32 %v1189, %v1033
        %v1192 = vmul.f32 %v1190, 1.442695
        %v1193 = vpow.pop %v1192
        %v1194 = vmul.f32 %v1191, 1.442695
        %v1195 = vpow.pop %v1194
        %1196 = vst.msk [vmem:[%s772] sm:$0xff] %vm293, %v1193
        %1197 = vst.msk [vmem:[%s772 + $0x8] sm:$0xff] %vm293, %v1195
        %v1198 = vadd.f32 %v1186, %v1193
        %v1199 = vadd.f32 %v1187, %v1195
        %v1200 = vld [vmem:[%s809] sm:$0xff]
        %v1201 = vld [vmem:[%s809 + $0x8] sm:$0xff]
        %v1202 = vsub.f32 %v1200, %v1032
        %v1203 = vsub.f32 %v1201, %v1033
        %v1204 = vmul.f32 %v1202, 1.442695
        %v1205 = vpow.pop %v1204
        %v1206 = vmul.f32 %v1203, 1.442695
        %v1207 = vpow.pop %v1206
        %1208 = vst.msk [vmem:[%s809] sm:$0xff] %vm293, %v1205
        %1209 = vst.msk [vmem:[%s809 + $0x8] sm:$0xff] %vm293, %v1207
        %v1210 = vadd.f32 %v1198, %v1205
        %v1211 = vadd.f32 %v1199, %v1207
        %v1212 = vld [vmem:[%s846] sm:$0xff]
        %v1213 = vld [vmem:[%s846 + $0x8] sm:$0xff]
        %v1214 = vsub.f32 %v1212, %v1032
        %v1215 = vsub.f32 %v1213, %v1033
        %v1216 = vmul.f32 %v1214, 1.442695
        %v1217 = vpow.pop %v1216
        %v1218 = vmul.f32 %v1215, 1.442695
        %v1219 = vpow.pop %v1218
        %1220 = vst.msk [vmem:[%s846] sm:$0xff] %vm293, %v1217
        %1221 = vst.msk [vmem:[%s846 + $0x8] sm:$0xff] %vm293, %v1219
        %v1222 = vadd.f32 %v1210, %v1217
        %v1223 = vadd.f32 %v1211, %v1219
        %v1224 = vld [vmem:[%s881] sm:$0xff]
        %v1225 = vld [vmem:[%s881 + $0x8] sm:$0xff]
        %v1226 = vsub.f32 %v1224, %v1032
        %v1227 = vsub.f32 %v1225, %v1033
        %v1228 = vmul.f32 %v1226, 1.442695
        %v1229 = vpow.pop %v1228
        %v1230 = vmul.f32 %v1227, 1.442695
        %v1231 = vpow.pop %v1230
        %1232 = vst.msk [vmem:[%s881] sm:$0xff] %vm293, %v1229
        %1233 = vst.msk [vmem:[%s881 + $0x8] sm:$0xff] %vm293, %v1231
        %v1234 = vadd.f32 %v1222, %v1229
        %v1235 = vadd.f32 %v1223, %v1231
        %v1236 = vld [vmem:[%s918] sm:$0xff]
        %v1237 = vld [vmem:[%s918 + $0x8] sm:$0xff]
        %v1238 = vsub.f32 %v1236, %v1032
        %v1239 = vsub.f32 %v1237, %v1033
        %v1240 = vmul.f32 %v1238, 1.442695
        %v1241 = vpow.pop %v1240
        %v1242 = vmul.f32 %v1239, 1.442695
        %v1243 = vpow.pop %v1242
        %1244 = vst.msk [vmem:[%s918] sm:$0xff] %vm293, %v1241
        %1245 = vst.msk [vmem:[%s918 + $0x8] sm:$0xff] %vm293, %v1243
        %v1246 = vadd.f32 %v1234, %v1241
        %v1247 = vadd.f32 %v1235, %v1243
        %v1248 = vld [vmem:[%s955] sm:$0xff]
        %v1249 = vld [vmem:[%s955 + $0x8] sm:$0xff]
        %v1250 = vsub.f32 %v1248, %v1032
        %v1251 = vsub.f32 %v1249, %v1033
        %v1252 = vmul.f32 %v1250, 1.442695
        %v1253 = vpow.pop %v1252
        %v1254 = vmul.f32 %v1251, 1.442695
        %v1255 = vpow.pop %v1254
        %1256 = vst.msk [vmem:[%s955] sm:$0xff] %vm293, %v1253
        %1257 = vst.msk [vmem:[%s955 + $0x8] sm:$0xff] %vm293, %v1255
        %v1258 = vadd.f32 %v1246, %v1253
        %v1259 = vadd.f32 %v1247, %v1255
        %v1260 = vld [vmem:[%s992] sm:$0xff]
        %v1261 = vld [vmem:[%s992 + $0x8] sm:$0xff]
        %v1262 = vsub.f32 %v1260, %v1032
        %v1263 = vsub.f32 %v1261, %v1033
        %v1264 = vmul.f32 %v1262, 1.442695
        %v1265 = vpow.pop %v1264
        %v1266 = vmul.f32 %v1263, 1.442695
        %v1267 = vpow.pop %v1266
        %1268 = vst.msk [vmem:[%s992] sm:$0xff] %vm293, %v1265
        %1269 = vst.msk [vmem:[%s992 + $0x8] sm:$0xff] %vm293, %v1267
        %v1270 = vadd.f32 %v1258, %v1265
        %v1271 = vadd.f32 %v1259, %v1267
        %v1272 = vld [vmem:[%s1029] sm:$0xff]
        %v1273 = vld [vmem:[%s1029 + $0x8] sm:$0xff]
        %v1274 = vsub.f32 %v1272, %v1032
        %v1275 = vsub.f32 %v1273, %v1033
        %v1276 = vmul.f32 %v1274, 1.442695
        %v1277 = vpow.pop %v1276
        %v1278 = vmul.f32 %v1275, 1.442695
        %v1279 = vpow.pop %v1278
        %1280 = vst.msk [vmem:[%s1029] sm:$0xff] %vm293, %v1277
        %1281 = vst.msk [vmem:[%s1029 + $0x8] sm:$0xff] %vm293, %v1279
        %v1282 = vadd.f32 %v1270, %v1277
        %v1283 = vadd.f32 %v1271, %v1279
        %v1284 = vrcp.pop %v1282
        %v1285 = vrcp.pop %v1283
        %v1286 = vld [vmem:[%s193] sm:$0xff]
        %v1287 = vld [vmem:[%s193 + $0x8] sm:$0xff]
        %v1288 = vmul.f32 %v1286, %v1284
        %v1289 = vmul.f32 %v1287, %v1285
        %1290 = vst.msk [vmem:[%s193] sm:$0xff] %vm293, %v1288
        %1291 = vst.msk [vmem:[%s193 + $0x8] sm:$0xff] %vm293, %v1289
        %v1292 = vld [vmem:[%s328] sm:$0xff]
        %v1293 = vld [vmem:[%s328 + $0x8] sm:$0xff]
        %v1294 = vmul.f32 %v1292, %v1284
        %v1295 = vmul.f32 %v1293, %v1285
        %1296 = vst.msk [vmem:[%s328] sm:$0xff] %vm293, %v1294
        %1297 = vst.msk [vmem:[%s328 + $0x8] sm:$0xff] %vm293, %v1295
        %v1298 = vld [vmem:[%s365] sm:$0xff]
        %v1299 = vld [vmem:[%s365 + $0x8] sm:$0xff]
        %v1300 = vmul.f32 %v1298, %v1284
        %v1301 = vmul.f32 %v1299, %v1285
        %1302 = vst.msk [vmem:[%s365] sm:$0xff] %vm293, %v1300
        %1303 = vst.msk [vmem:[%s365 + $0x8] sm:$0xff] %vm293, %v1301
        %v1304 = vld [vmem:[%s402] sm:$0xff]
        %v1305 = vld [vmem:[%s402 + $0x8] sm:$0xff]
        %v1306 = vmul.f32 %v1304, %v1284
        %v1307 = vmul.f32 %v1305, %v1285
        %1308 = vst.msk [vmem:[%s402] sm:$0xff] %vm293, %v1306
        %1309 = vst.msk [vmem:[%s402 + $0x8] sm:$0xff] %vm293, %v1307
        %v1310 = vld [vmem:[%s439] sm:$0xff]
        %v1311 = vld [vmem:[%s439 + $0x8] sm:$0xff]
        %v1312 = vmul.f32 %v1310, %v1284
        %v1313 = vmul.f32 %v1311, %v1285
        %1314 = vst.msk [vmem:[%s439] sm:$0xff] %vm293, %v1312
        %1315 = vst.msk [vmem:[%s439 + $0x8] sm:$0xff] %vm293, %v1313
        %v1316 = vld [vmem:[%s476] sm:$0xff]
        %v1317 = vld [vmem:[%s476 + $0x8] sm:$0xff]
        %v1318 = vmul.f32 %v1316, %v1284
        %v1319 = vmul.f32 %v1317, %v1285
        %1320 = vst.msk [vmem:[%s476] sm:$0xff] %vm293, %v1318
        %1321 = vst.msk [vmem:[%s476 + $0x8] sm:$0xff] %vm293, %v1319
        %v1322 = vld [vmem:[%s513] sm:$0xff]
        %v1323 = vld [vmem:[%s513 + $0x8] sm:$0xff]
        %v1324 = vmul.f32 %v1322, %v1284
        %v1325 = vmul.f32 %v1323, %v1285
        %1326 = vst.msk [vmem:[%s513] sm:$0xff] %vm293, %v1324
        %1327 = vst.msk [vmem:[%s513 + $0x8] sm:$0xff] %vm293, %v1325
        %v1328 = vld [vmem:[%s550] sm:$0xff]
        %v1329 = vld [vmem:[%s550 + $0x8] sm:$0xff]
        %v1330 = vmul.f32 %v1328, %v1284
        %v1331 = vmul.f32 %v1329, %v1285
        %1332 = vst.msk [vmem:[%s550] sm:$0xff] %vm293, %v1330
        %1333 = vst.msk [vmem:[%s550 + $0x8] sm:$0xff] %vm293, %v1331
        %v1334 = vld [vmem:[%s587] sm:$0xff]
        %v1335 = vld [vmem:[%s587 + $0x8] sm:$0xff]
        %v1336 = vmul.f32 %v1334, %v1284
        %v1337 = vmul.f32 %v1335, %v1285
        %1338 = vst.msk [vmem:[%s587] sm:$0xff] %vm293, %v1336
        %1339 = vst.msk [vmem:[%s587 + $0x8] sm:$0xff] %vm293, %v1337
        %v1340 = vld [vmem:[%s624] sm:$0xff]
        %v1341 = vld [vmem:[%s624 + $0x8] sm:$0xff]
        %v1342 = vmul.f32 %v1340, %v1284
        %v1343 = vmul.f32 %v1341, %v1285
        %1344 = vst.msk [vmem:[%s624] sm:$0xff] %vm293, %v1342
        %1345 = vst.msk [vmem:[%s624 + $0x8] sm:$0xff] %vm293, %v1343
        %v1346 = vld [vmem:[%s661] sm:$0xff]
        %v1347 = vld [vmem:[%s661 + $0x8] sm:$0xff]
        %v1348 = vmul.f32 %v1346, %v1284
        %v1349 = vmul.f32 %v1347, %v1285
        %1350 = vst.msk [vmem:[%s661] sm:$0xff] %vm293, %v1348
        %1351 = vst.msk [vmem:[%s661 + $0x8] sm:$0xff] %vm293, %v1349
        %v1352 = vld [vmem:[%s698] sm:$0xff]
        %v1353 = vld [vmem:[%s698 + $0x8] sm:$0xff]
        %v1354 = vmul.f32 %v1352, %v1284
        %v1355 = vmul.f32 %v1353, %v1285
        %1356 = vst.msk [vmem:[%s698] sm:$0xff] %vm293, %v1354
        %1357 = vst.msk [vmem:[%s698 + $0x8] sm:$0xff] %vm293, %v1355
        %v1358 = vld [vmem:[%s735] sm:$0xff]
        %v1359 = vld [vmem:[%s735 + $0x8] sm:$0xff]
        %v1360 = vmul.f32 %v1358, %v1284
        %v1361 = vmul.f32 %v1359, %v1285
        %1362 = vst.msk [vmem:[%s735] sm:$0xff] %vm293, %v1360
        %1363 = vst.msk [vmem:[%s735 + $0x8] sm:$0xff] %vm293, %v1361
        %v1364 = vld [vmem:[%s772] sm:$0xff]
        %v1365 = vld [vmem:[%s772 + $0x8] sm:$0xff]
        %v1366 = vmul.f32 %v1364, %v1284
        %v1367 = vmul.f32 %v1365, %v1285
        %1368 = vst.msk [vmem:[%s772] sm:$0xff] %vm293, %v1366
        %1369 = vst.msk [vmem:[%s772 + $0x8] sm:$0xff] %vm293, %v1367
        %v1370 = vld [vmem:[%s809] sm:$0xff]
        %v1371 = vld [vmem:[%s809 + $0x8] sm:$0xff]
        %v1372 = vmul.f32 %v1370, %v1284
        %v1373 = vmul.f32 %v1371, %v1285
        %1374 = vst.msk [vmem:[%s809] sm:$0xff] %vm293, %v1372
        %1375 = vst.msk [vmem:[%s809 + $0x8] sm:$0xff] %vm293, %v1373
        %v1376 = vld [vmem:[%s846] sm:$0xff]
        %v1377 = vld [vmem:[%s846 + $0x8] sm:$0xff]
        %v1378 = vmul.f32 %v1376, %v1284
        %v1379 = vmul.f32 %v1377, %v1285
        %1380 = vst.msk [vmem:[%s846] sm:$0xff] %vm293, %v1378
        %1381 = vst.msk [vmem:[%s846 + $0x8] sm:$0xff] %vm293, %v1379
        %v1382 = vld [vmem:[%s881] sm:$0xff]
        %v1383 = vld [vmem:[%s881 + $0x8] sm:$0xff]
        %v1384 = vmul.f32 %v1382, %v1284
        %v1385 = vmul.f32 %v1383, %v1285
        %1386 = vst.msk [vmem:[%s881] sm:$0xff] %vm293, %v1384
        %1387 = vst.msk [vmem:[%s881 + $0x8] sm:$0xff] %vm293, %v1385
        %v1388 = vld [vmem:[%s918] sm:$0xff]
        %v1389 = vld [vmem:[%s918 + $0x8] sm:$0xff]
        %v1390 = vmul.f32 %v1388, %v1284
        %v1391 = vmul.f32 %v1389, %v1285
        %1392 = vst.msk [vmem:[%s918] sm:$0xff] %vm293, %v1390
        %1393 = vst.msk [vmem:[%s918 + $0x8] sm:$0xff] %vm293, %v1391
        %v1394 = vld [vmem:[%s955] sm:$0xff]
        %v1395 = vld [vmem:[%s955 + $0x8] sm:$0xff]
        %v1396 = vmul.f32 %v1394, %v1284
        %v1397 = vmul.f32 %v1395, %v1285
        %1398 = vst.msk [vmem:[%s955] sm:$0xff] %vm293, %v1396
        %1399 = vst.msk [vmem:[%s955 + $0x8] sm:$0xff] %vm293, %v1397
        %v1400 = vld [vmem:[%s992] sm:$0xff]
        %v1401 = vld [vmem:[%s992 + $0x8] sm:$0xff]
        %v1402 = vmul.f32 %v1400, %v1284
        %v1403 = vmul.f32 %v1401, %v1285
        %1404 = vst.msk [vmem:[%s992] sm:$0xff] %vm293, %v1402
        %1405 = vst.msk [vmem:[%s992 + $0x8] sm:$0xff] %vm293, %v1403
        %v1406 = vld [vmem:[%s1029] sm:$0xff]
        %v1407 = vld [vmem:[%s1029 + $0x8] sm:$0xff]
        %v1408 = vmul.f32 %v1406, %v1284
        %v1409 = vmul.f32 %v1407, %v1285
        %1410 = vst.msk [vmem:[%s1029] sm:$0xff] %vm293, %v1408
        %1411 = vst.msk [vmem:[%s1029 + $0x8] sm:$0xff] %vm293, %v1409
        %s1412 = sand.u32 %s112, 1
        %s1413 = scalar_lea.sflag [#allocation3], %s1412
        %s1414 = sand.u32 %s112, 1
        %s1415 = smul.addr %s1414, 336
        %s1416 = scalar_lea.vmem [#allocation2], %s1415
        // Predicated region
        $region33: #{coco_deeplab_forward.5} parent=31 // pred_check
          %p1417 = pneg %p122
        $region34: #{coco_deeplab_forward.5} parent=31 // pred_check_branch
          %1419 = sbr.rel (%p1417) target = $region36
        $region35: #{coco_deeplab_forward.5} parent=31 // pred_region
          #allocation5 [shape = 'u32[6]{0}', space=smem, size = 0x18, scoped, tag = 'DMA stride descriptor']
          %s1420 = smul.u32 2, %s22
          %1422 = vsyncadd %s1413, 0
          %s1423 = smul.addr %s21, 84
          %s1424 = sadd.s32 %s1420, %s1423
          %s1425 = smul.addr %s1424, 8
          %s1426 = scalar_lea.hbm %s3, %s1425
          %s1428 = sshll.u32 1, 14
          %s1429 = sxor.u32 4294967295, %s1428
          %s1432 = sshll.u32 7, 18
          %s1433 = sxor.u32 4294967295, %s1432
          %s1434 = sand.u32 0, %s1433
          %s1436 = sor.u32 %s1434, 0
          %s1437 = sshll.u32 %s1416, 4
          %s1438 = int_to_ptr.vmem [resolvable:$true] %s1437
          %s1439 = sshll.u32 %s1426, 4
          %s1440 = int_to_ptr.hbm [resolvable:$true] %s1439
          %1446 = sst [smem:[#allocation5]] 256
          %s1447 = scalar_lea.smem [#allocation5], 1
          %1448 = sst [smem:[%s1447]] 512
          %s1449 = scalar_lea.smem [#allocation5], 2
          %1450 = sst [smem:[%s1449]] 2
          %s1451 = scalar_lea.smem [#allocation5], 3
          %1452 = sst [smem:[%s1451]] 128
          %s1453 = scalar_lea.smem [#allocation5], 4
          %1454 = sst [smem:[%s1453]] 128
          %s1455 = scalar_lea.smem [#allocation5], 5
          %1456 = sst [smem:[%s1455]] 8
          %1458 = dma.general %s1438, 5376, %s1440, %s1413, [#allocation4], [#allocation5], %s1436, 0
        $region36: #{coco_deeplab_forward.5} parent=31 // pred_fallthru
          _
      $region32: #{coco_deeplab_forward.5} parent=5 // pred_fallthru
        _
      %p1459 = scmp.le.s32.totalorder 2, %s12
      // Predicated region
      $region37: #{coco_deeplab_forward.5} parent=5 // pred_check
        %p1460 = pneg %p1459
      $region38: #{coco_deeplab_forward.5} parent=5 // pred_check_branch
        %1462 = sbr.rel (%p1460) target = $region40
      $region39: #{coco_deeplab_forward.5} parent=5 // pred_region
        %s1463 = ssub.s32 %s12, 2
        // Predicated region
        $region41: #{coco_deeplab_forward.5} parent=39 // pred_check
          %p1464 = pneg %p128
        $region42: #{coco_deeplab_forward.5} parent=39 // pred_check_branch
          %1466 = sbr.rel (%p1464) target = $region44
        $region43: #{coco_deeplab_forward.5} parent=39 // pred_region
          %s1467 = sand.u32 %s113, 1
          %s1468 = scalar_lea.sflag [#allocation3], %s1467
          %s1469 = sand.u32 %s113, 1
          %s1470 = smul.addr %s1469, 336
          %s1471 = scalar_lea.vmem [#allocation2], %s1470
          %1473 = dma.done %s1468, 5376
        $region44: #{coco_deeplab_forward.5} parent=39 // pred_fallthru
          _
      $region40: #{coco_deeplab_forward.5} parent=5 // pred_fallthru
        _
    $region6: #{coco_deeplab_forward.5} parent=1 // loop_footer
      %s16 = sadd.s32 1, %s12
    $region7: #{coco_deeplab_forward.5} parent=1 // loop_footer_branch
      %11 = sbr.rel target = $region3
    $region8: #{coco_deeplab_forward.5} parent=1 // loop_exit
      _
    %1474 = vsyncpa [#allocation3], 1
    %s1475 = scalar_lea.sflag [#allocation3], 1
    %1476 = vsyncpa %s1475, 1

</llo_original>
